<compile_context>
chip_gen: v5e
topology: v5e:2x2
jax: 0.10.0
libtpu: 0.0.40
codegen_flags: <defaults>
</compile_context>

<pallas_src>
import functools

import jax
import jax.numpy as jnp
import numpy as np
from jax import lax
from jax.experimental import pallas as pl
from jax.experimental.pallas import tpu as pltpu

_NEG_SLOPE = 0.01   # nn.LeakyReLU default
_EPS = 1e-5         # nn.InstanceNorm2d default eps (affine=False)


def _round_up(x, m):
    return ((x + m - 1) // m) * m


# ---------------- in-kernel helpers ------------------------------------------


def _leaky(x):
    return jnp.where(x > 0, x, _NEG_SLOPE * x)


def _shift_cols(x, d):
    """y[:, p] = x[:, p + d] with zero fill (d may be negative)."""
    if d == 0:
        return x
    c = x.shape[0]
    z = jnp.zeros((c, abs(d)), x.dtype)
    if d > 0:
        return jnp.concatenate([x[:, d:], z], axis=1)
    return jnp.concatenate([z, x[:, :d]], axis=1)


def _masked_instance_norm(x, mask, nb, lr, count):
    """Per-sample instance norm on the fused (C, nb*lr) lane axis.

    x is zero outside the valid region; mask (1, nb*lr) marks valid pixels.
    Two-pass (mean, then centered variance)."""
    inv_cnt = 1.0 / float(count)
    pieces = []
    for n in range(nb):                                   # nb is small, static
        sl = x[:, n * lr:(n + 1) * lr]                    # lane-tile aligned
        msl = mask[:, n * lr:(n + 1) * lr]
        mean = jnp.sum(sl, axis=1, keepdims=True) * inv_cnt
        cen = jnp.where(msl > 0, sl - mean, 0.0)
        var = jnp.sum(cen * cen, axis=1, keepdims=True) * inv_cnt
        pieces.append(cen * lax.rsqrt(var + _EPS))
    return pieces[0] if nb == 1 else jnp.concatenate(pieces, axis=1)


# ---------------- Pallas kernel ----------------------------------------------


def _res_block_kernel(x_ref, w1_ref, b1_ref, w2_ref, b2_ref,
                      mx_ref, mh_ref, sel_ref, o_ref,
                      *, nb, lr, wpad, hw, h1w1):
    xp = x_ref[0].astype(jnp.float32)          # (C, nb*lr) zero-padded input
    mask_x = mx_ref[...]                       # (1, nb*lr) valid-input mask
    mask_h = mh_ref[...]                       # (1, nb*lr) valid conv2-input mask
    sel = sel_ref[...]                         # (nb*lr, nb*H2*W2) 0/1 pick

    # ---- skip branch: 3x3 box sum via separable lane shifts, strided pick --
    row = xp + _shift_cols(xp, 1) + _shift_cols(xp, 2)
    box = row + _shift_cols(row, wpad) + _shift_cols(row, 2 * wpad)
    skip = jnp.dot(box, sel, preferred_element_type=jnp.float32) * (1.0 / 9.0)

    # ---- norm1 (per-sample, lane-dense, two-pass) ---------------------------
    xn = _masked_instance_norm(xp, mask_x, nb, lr, hw)

    # ---- conv1 (+bias, leaky) at the padded/extended resolution -------------
    h = None
    for kh in range(3):
        for kw in range(3):
            part = jnp.dot(w1_ref[kh * 3 + kw],
                           _shift_cols(xn, kh * wpad + kw),
                           preferred_element_type=jnp.float32)
            h = part if h is None else h + part
    h = _leaky(h + b1_ref[...])

    # ---- re-pad for conv2: same frame geometry -> one lane shift + mask -----
    hp = jnp.where(mask_h > 0, _shift_cols(h, -(wpad + 1)), 0.0)
    hn = _masked_instance_norm(hp, mask_h, nb, lr, h1w1)

    # ---- conv2 at extended resolution; strided pick via Sel; +bias; leaky ---
    y = None
    for kh in range(3):
        for kw in range(3):
            part = jnp.dot(w2_ref[kh * 3 + kw],
                           _shift_cols(hn, kh * wpad + kw),
                           preferred_element_type=jnp.float32)
            y = part if y is None else y + part
    y_out = _leaky(jnp.dot(y, sel, preferred_element_type=jnp.float32)
                   + b2_ref[...])

    o_ref[0] = (y_out + skip).astype(o_ref.dtype)   # lane-dense (C, nb*H2*W2)


# ---------------- wrapper -----------------------------------------------------


def res_block_strided(images, w1, b1, w2, b2, *, stride, down_padding,
                      groups=1, samples_per_block=None):
    N, C, H, W = images.shape
    assert C % groups == 0
    s, dp = stride, down_padding

    hpad, wpad = H + 2 * dp, W + 2 * dp       # conv1 padded-input frame
    h1, w1sp = hpad - 2, wpad - 2             # conv1 output (stride 1)
    # conv2's padded input frame is (h1 + 2, w1sp + 2) == (hpad, wpad): reused.
    h2 = (hpad - 3) // s + 1                  # conv2 / avg-pool output
    w2sp = (wpad - 3) // s + 1

    l = hpad * wpad
    lr = _round_up(l, 128)                    # per-sample lane extent
    ow_s = h2 * w2sp                          # per-sample output pixels

    # Samples per grid step: amortize step overhead, make the stored output
    # lane-dense (>=128), keep N % nb == 0 and the fused width modest.
    if samples_per_block is None:
        nb = 1
        while (N % (2 * nb) == 0) and (nb * ow_s < 128) and (2 * nb * lr <= 8192):
            nb *= 2
    else:
        nb = samples_per_block
    assert N % nb == 0
    nblk = N // nb
    lf = nb * lr
    ow = nb * ow_s

    # ---- input prep (plain XLA): zero-pad, flatten, lane-pad, fuse nb -------
    xpad = jnp.pad(images.astype(jnp.float32),
                   ((0, 0), (0, 0), (dp, dp), (dp, dp)))
    xflat = jnp.pad(xpad.reshape(N, C, l), ((0, 0), (0, 0), (0, lr - l)))
    xprep = xflat.reshape(nblk, nb, C, lr).transpose(0, 2, 1, 3).reshape(
        nblk, C, lf)

    # ---- weights: (C, C//g, 3, 3) -> (9, C, C) block-diagonal (one dot/tap) -
    def expand(w):
        cg = C // groups
        wg = w.reshape(groups, cg, cg, 3, 3).astype(jnp.float32)
        full = jnp.zeros((C, C, 3, 3), jnp.float32)
        for g in range(groups):
            full = full.at[g * cg:(g + 1) * cg, g * cg:(g + 1) * cg].set(wg[g])
        return jnp.transpose(full, (2, 3, 0, 1)).reshape(9, C, C)

    w1m, w2m = expand(w1), expand(w2)
    b1m = b1.reshape(C, 1).astype(jnp.float32)
    b2m = b2.reshape(C, 1).astype(jnp.float32)

    # ---- masks & strided-pick matrix (host-side constants) ------------------
    mx2 = np.zeros((hpad, wpad), np.float32)
    mx2[dp:dp + H, dp:dp + W] = 1.0                       # valid raw input
    mh2 = np.zeros((hpad, wpad), np.float32)
    mh2[1:1 + h1, 1:1 + w1sp] = 1.0                       # valid conv1 output

    def rep(m2d):
        f = np.zeros((lr,), np.float32)
        f[:l] = m2d.reshape(-1)
        return jnp.asarray(np.tile(f, nb)[None, :])       # (1, nb*lr)

    mask_x, mask_h = rep(mx2), rep(mh2)

    sel_np = np.zeros((lf, ow), np.float32)
    for n in range(nb):
        for ho in range(h2):
            for wo in range(w2sp):
                sel_np[n * lr + (s * ho) * wpad + s * wo,
                       n * ow_s + ho * w2sp + wo] = 1.0
    sel = jnp.asarray(sel_np)

    kernel = functools.partial(_res_block_kernel, nb=nb, lr=lr, wpad=wpad,
                               hw=H * W, h1w1=h1 * w1sp)

    flops = nblk * (2 * 2 * 9 * C * C * lf + 2 * 2 * C * lf * ow
                    + 40 * C * lf)
    bytes_accessed = (images.size + N * C * ow_s + sel_np.size
                      + 2 * lf + 2 * 9 * C * C) * 4

    out = pl.pallas_call(
        kernel,
        out_shape=jax.ShapeDtypeStruct((nblk, C, ow), jnp.float32),
        grid_spec=pltpu.PrefetchScalarGridSpec(
            num_scalar_prefetch=0,
            grid=(nblk,),
            in_specs=[
                pl.BlockSpec((1, C, lf), lambda i: (i, 0, 0)),
                pl.BlockSpec((9, C, C), lambda i: (0, 0, 0)),
                pl.BlockSpec((C, 1), lambda i: (0, 0)),
                pl.BlockSpec((9, C, C), lambda i: (0, 0, 0)),
                pl.BlockSpec((C, 1), lambda i: (0, 0)),
                pl.BlockSpec((1, lf), lambda i: (0, 0)),
                pl.BlockSpec((1, lf), lambda i: (0, 0)),
                pl.BlockSpec((lf, ow), lambda i: (0, 0)),
            ],
            out_specs=pl.BlockSpec((1, C, ow), lambda i: (i, 0, 0)),
        ),
        compiler_params=pltpu.CompilerParams(
            dimension_semantics=("parallel",)),
        cost_estimate=pl.CostEstimate(flops=int(flops),
                                      transcendentals=int(2 * N * C),
                                      bytes_accessed=int(bytes_accessed)),
    )(xprep, w1m, b1m, w2m, b2m, mask_x, mask_h, sel)

    out = out.reshape(nblk, C, nb, h2, w2sp).transpose(0, 2, 1, 3, 4)
    return out.reshape(N, C, h2, w2sp)


# ---------------- pure-JAX reference (correctness check only) ----------------


def _reference(images, w1, b1, w2, b2, *, stride, down_padding, groups):
    def inorm(x):
        m = jnp.mean(x, axis=(2, 3), keepdims=True)
        v = jnp.mean((x - m) ** 2, axis=(2, 3), keepdims=True)
        return (x - m) / jnp.sqrt(v + _EPS)

    def lrelu(x):
        return jnp.where(x > 0, x, _NEG_SLOPE * x)

    def conv(x, w, b, st, p):
        y = lax.conv_general_dilated(
            x, w, window_strides=(st, st), padding=[(p, p), (p, p)],
            dimension_numbers=("NCHW", "OIHW", "NCHW"),
            feature_group_count=groups)
        return y + b.reshape(1, -1, 1, 1)

    h = lrelu(conv(inorm(images), w1, b1, 1, down_padding))
    h2 = lrelu(conv(inorm(h), w2, b2, stride, 1))
    pooled = lax.reduce_window(
        images, 0.0, lax.add, (1, 1, 3, 3), (1, 1, stride, stride),
        [(0, 0), (0, 0), (down_padding, down_padding),
         (down_padding, down_padding)]) / 9.0
    return pooled + h2


if __name__ == "__main__":
    key = jax.random.PRNGKey(0)
    N, C, H, W = 2, 4, 16, 16
    stride, down_padding, groups = 2, 1, 1
    k_img, k_w1, k_w2 = jax.random.split(key, 3)

    images = jax.random.normal(k_img, (N, C, H, W), jnp.float32)

    # deterministic kaiming_uniform_-style init (a=0 -> bound = sqrt(6/fan_in))
    fan_in = (C // groups) * 9
    bound = float(np.sqrt(6.0 / fan_in))
    w1 = jax.random.uniform(k_w1, (C, C // groups, 3, 3), jnp.float32,
                            -bound, bound)
    w2 = jax.random.uniform(k_w2, (C, C // groups, 3, 3), jnp.float32,
                            -bound, bound)
    b1 = jnp.zeros((C,), jnp.float32)   # conv bias.data.fill_(0)
    b2 = jnp.zeros((C,), jnp.float32)

    out = res_block_strided(images, w1, b1, w2, b2, stride=stride,
                            down_padding=down_padding, groups=groups)
    out = jax.block_until_ready(out)

    ref = _reference(images, w1, b1, w2, b2, stride=stride,
                     down_padding=down_padding, groups=groups)
    assert out.shape == ref.shape == (N, C, 8, 8)
    # MXU default precision (bf16 passes) vs f32 reference -> loose tolerance.
    np.testing.assert_allclose(np.asarray(out), np.asarray(ref),
                               rtol=5e-2, atol=5e-2)
    print("KERNEL_OK")
</pallas_src>

<mosaic_0001>
module attributes {stable_mosaic.version = 11 : i64} {
  func.func @_res_block_kernel(%arg0: i32, %arg1: memref<1x4x768xf32, #tpu.memory_space<vmem>>, %arg2: memref<9x4x4xf32, #tpu.memory_space<vmem>>, %arg3: memref<4x1xf32, #tpu.memory_space<vmem>>, %arg4: memref<9x4x4xf32, #tpu.memory_space<vmem>>, %arg5: memref<4x1xf32, #tpu.memory_space<vmem>>, %arg6: memref<1x768xf32, #tpu.memory_space<vmem>>, %arg7: memref<1x768xf32, #tpu.memory_space<vmem>>, %arg8: memref<768x128xf32, #tpu.memory_space<vmem>>, %arg9: memref<1x4x128xf32, #tpu.memory_space<vmem>>) attributes {dimension_semantics = [#tpu.dimension_semantics<parallel>], iteration_bounds = array<i64: 1>, scalar_prefetch = 0 : i64, scratch_operands = 0 : i64, tpu.core_type = #tpu.core_type<tc>, window_params = [{transform_indices = @transform_0, window_bounds = array<i64: 1, 4, 768>}, {pipeline_mode = #tpu.pipeline_mode<synchronous>, transform_indices = @transform_1, window_bounds = array<i64: 9, 4, 4>}, {pipeline_mode = #tpu.pipeline_mode<synchronous>, transform_indices = @transform_2, window_bounds = array<i64: 4, 1>}, {pipeline_mode = #tpu.pipeline_mode<synchronous>, transform_indices = @transform_3, window_bounds = array<i64: 9, 4, 4>}, {pipeline_mode = #tpu.pipeline_mode<synchronous>, transform_indices = @transform_4, window_bounds = array<i64: 4, 1>}, {pipeline_mode = #tpu.pipeline_mode<synchronous>, transform_indices = @transform_5, window_bounds = array<i64: 1, 768>}, {pipeline_mode = #tpu.pipeline_mode<synchronous>, transform_indices = @transform_6, window_bounds = array<i64: 1, 768>}, {pipeline_mode = #tpu.pipeline_mode<synchronous>, transform_indices = @transform_7, window_bounds = array<i64: 768, 128>}, {transform_indices = @transform_8, window_bounds = array<i64: 1, 4, 128>}]} {
    %c0 = arith.constant 0 : index
    %c0_0 = arith.constant 0 : index
    %c0_1 = arith.constant 0 : index
    %0 = vector.load %arg1[%c0, %c0_0, %c0_1] : memref<1x4x768xf32, #tpu.memory_space<vmem>>, vector<1x4x768xf32>
    %1 = vector.shape_cast %0 : vector<1x4x768xf32> to vector<4x768xf32>
    %c0_2 = arith.constant 0 : index
    %c0_3 = arith.constant 0 : index
    %2 = vector.load %arg6[%c0_2, %c0_3] : memref<1x768xf32, #tpu.memory_space<vmem>>, vector<1x768xf32>
    %c0_4 = arith.constant 0 : index
    %c0_5 = arith.constant 0 : index
    %3 = vector.load %arg7[%c0_4, %c0_5] : memref<1x768xf32, #tpu.memory_space<vmem>>, vector<1x768xf32>
    %c0_6 = arith.constant 0 : index
    %c0_7 = arith.constant 0 : index
    %4 = vector.load %arg8[%c0_6, %c0_7] : memref<768x128xf32, #tpu.memory_space<vmem>>, vector<768x128xf32>
    %cst = arith.constant 0.000000e+00 : f32
    %5 = vector.broadcast %cst : f32 to vector<4x1xf32>
    %6 = vector.extract_strided_slice %1 {offsets = [0, 1], sizes = [4, 767], strides = [1, 1]} : vector<4x768xf32> to vector<4x767xf32>
    %7 = tpu.concatenate %6, %5 in 1 : vector<4x767xf32>, vector<4x1xf32> -> vector<4x768xf32>
    %8 = arith.addf %1, %7 : vector<4x768xf32>
    %cst_8 = arith.constant 0.000000e+00 : f32
    %9 = vector.broadcast %cst_8 : f32 to vector<4x2xf32>
    %10 = vector.extract_strided_slice %1 {offsets = [0, 2], sizes = [4, 766], strides = [1, 1]} : vector<4x768xf32> to vector<4x766xf32>
    %11 = tpu.concatenate %10, %9 in 1 : vector<4x766xf32>, vector<4x2xf32> -> vector<4x768xf32>
    %12 = arith.addf %8, %11 : vector<4x768xf32>
    %cst_9 = arith.constant 0.000000e+00 : f32
    %13 = vector.broadcast %cst_9 : f32 to vector<4x18xf32>
    %14 = vector.extract_strided_slice %12 {offsets = [0, 18], sizes = [4, 750], strides = [1, 1]} : vector<4x768xf32> to vector<4x750xf32>
    %15 = tpu.concatenate %14, %13 in 1 : vector<4x750xf32>, vector<4x18xf32> -> vector<4x768xf32>
    %16 = arith.addf %12, %15 : vector<4x768xf32>
    %cst_10 = arith.constant 0.000000e+00 : f32
    %17 = vector.broadcast %cst_10 : f32 to vector<4x36xf32>
    %18 = vector.extract_strided_slice %12 {offsets = [0, 36], sizes = [4, 732], strides = [1, 1]} : vector<4x768xf32> to vector<4x732xf32>
    %19 = tpu.concatenate %18, %17 in 1 : vector<4x732xf32>, vector<4x36xf32> -> vector<4x768xf32>
    %20 = arith.addf %16, %19 : vector<4x768xf32>
    %cst_11 = arith.constant dense<0.000000e+00> : vector<4x128xf32>
    %21 = tpu.matmul %20, %4, %cst_11 {dimension_numbers = #tpu.dot_dimension_numbers<[1], [0], [0], [1], [0, 0, 1, 1], [], []>} : vector<4x768xf32>, vector<768x128xf32>, vector<4x128xf32> -> vector<4x128xf32>
    %cst_12 = arith.constant 0.111111112 : f32
    %22 = vector.broadcast %cst_12 : f32 to vector<4x128xf32>
    %23 = arith.mulf %21, %22 : vector<4x128xf32>
    %24 = vector.extract_strided_slice %1 {offsets = [0, 0], sizes = [4, 384], strides = [1, 1]} : vector<4x768xf32> to vector<4x384xf32>
    %25 = vector.extract_strided_slice %2 {offsets = [0, 0], sizes = [1, 384], strides = [1, 1]} : vector<1x768xf32> to vector<1x384xf32>
    %cst_13 = arith.constant dense<0.000000e+00> : vector<4xf32>
    %26 = vector.multi_reduction <add>, %24, %cst_13 [1] : vector<4x384xf32> to vector<4xf32>
    %27 = vector.shape_cast %26 : vector<4xf32> to vector<4x1xf32>
    %cst_14 = arith.constant 3.906250e-03 : f32
    %28 = vector.broadcast %cst_14 : f32 to vector<4x1xf32>
    %29 = arith.mulf %27, %28 : vector<4x1xf32>
    %cst_15 = arith.constant 0.000000e+00 : f32
    %30 = vector.broadcast %cst_15 : f32 to vector<1x384xf32>
    %31 = arith.cmpf ogt, %25, %30 : vector<1x384xf32>
    %32 = vector.broadcast %29 : vector<4x1xf32> to vector<4x384xf32>
    %33 = arith.subf %24, %32 : vector<4x384xf32>
    %cst_16 = arith.constant 0.000000e+00 : f32
    %34 = vector.shape_cast %31 : vector<1x384xi1> to vector<1x384xi1>
    %35 = vector.broadcast %34 : vector<1x384xi1> to vector<4x384xi1>
    %36 = vector.broadcast %cst_16 : f32 to vector<4x384xf32>
    %37 = arith.select %35, %33, %36 : vector<4x384xi1>, vector<4x384xf32>
    %38 = arith.mulf %37, %37 : vector<4x384xf32>
    %cst_17 = arith.constant dense<0.000000e+00> : vector<4xf32>
    %39 = vector.multi_reduction <add>, %38, %cst_17 [1] : vector<4x384xf32> to vector<4xf32>
    %40 = vector.shape_cast %39 : vector<4xf32> to vector<4x1xf32>
    %cst_18 = arith.constant 3.906250e-03 : f32
    %41 = vector.broadcast %cst_18 : f32 to vector<4x1xf32>
    %42 = arith.mulf %40, %41 : vector<4x1xf32>
    %cst_19 = arith.constant 9.99999974E-6 : f32
    %43 = vector.broadcast %cst_19 : f32 to vector<4x1xf32>
    %44 = arith.addf %42, %43 : vector<4x1xf32>
    %45 = math.rsqrt %44 : vector<4x1xf32>
    %46 = vector.broadcast %45 : vector<4x1xf32> to vector<4x384xf32>
    %47 = arith.mulf %37, %46 : vector<4x384xf32>
    %48 = vector.extract_strided_slice %1 {offsets = [0, 384], sizes = [4, 384], strides = [1, 1]} : vector<4x768xf32> to vector<4x384xf32>
    %49 = vector.extract_strided_slice %2 {offsets = [0, 384], sizes = [1, 384], strides = [1, 1]} : vector<1x768xf32> to vector<1x384xf32>
    %cst_20 = arith.constant dense<0.000000e+00> : vector<4xf32>
    %50 = vector.multi_reduction <add>, %48, %cst_20 [1] : vector<4x384xf32> to vector<4xf32>
    %51 = vector.shape_cast %50 : vector<4xf32> to vector<4x1xf32>
    %cst_21 = arith.constant 3.906250e-03 : f32
    %52 = vector.broadcast %cst_21 : f32 to vector<4x1xf32>
    %53 = arith.mulf %51, %52 : vector<4x1xf32>
    %cst_22 = arith.constant 0.000000e+00 : f32
    %54 = vector.broadcast %cst_22 : f32 to vector<1x384xf32>
    %55 = arith.cmpf ogt, %49, %54 : vector<1x384xf32>
    %56 = vector.broadcast %53 : vector<4x1xf32> to vector<4x384xf32>
    %57 = arith.subf %48, %56 : vector<4x384xf32>
    %cst_23 = arith.constant 0.000000e+00 : f32
    %58 = vector.shape_cast %55 : vector<1x384xi1> to vector<1x384xi1>
    %59 = vector.broadcast %58 : vector<1x384xi1> to vector<4x384xi1>
    %60 = vector.broadcast %cst_23 : f32 to vector<4x384xf32>
    %61 = arith.select %59, %57, %60 : vector<4x384xi1>, vector<4x384xf32>
    %62 = arith.mulf %61, %61 : vector<4x384xf32>
    %cst_24 = arith.constant dense<0.000000e+00> : vector<4xf32>
    %63 = vector.multi_reduction <add>, %62, %cst_24 [1] : vector<4x384xf32> to vector<4xf32>
    %64 = vector.shape_cast %63 : vector<4xf32> to vector<4x1xf32>
    %cst_25 = arith.constant 3.906250e-03 : f32
    %65 = vector.broadcast %cst_25 : f32 to vector<4x1xf32>
    %66 = arith.mulf %64, %65 : vector<4x1xf32>
    %cst_26 = arith.constant 9.99999974E-6 : f32
    %67 = vector.broadcast %cst_26 : f32 to vector<4x1xf32>
    %68 = arith.addf %66, %67 : vector<4x1xf32>
    %69 = math.rsqrt %68 : vector<4x1xf32>
    %70 = vector.broadcast %69 : vector<4x1xf32> to vector<4x384xf32>
    %71 = arith.mulf %61, %70 : vector<4x384xf32>
    %72 = tpu.concatenate %47, %71 in 1 : vector<4x384xf32>, vector<4x384xf32> -> vector<4x768xf32>
    %c0_27 = arith.constant 0 : index
    %c0_28 = arith.constant 0 : index
    %c0_29 = arith.constant 0 : index
    %73 = vector.load %arg2[%c0_27, %c0_28, %c0_29] : memref<9x4x4xf32, #tpu.memory_space<vmem>>, vector<1x4x4xf32>
    %74 = vector.shape_cast %73 : vector<1x4x4xf32> to vector<4x4xf32>
    %cst_30 = arith.constant dense<0.000000e+00> : vector<4x768xf32>
    %75 = tpu.matmul %74, %72, %cst_30 {dimension_numbers = #tpu.dot_dimension_numbers<[1], [0], [0], [1], [0, 0, 1, 1], [], []>} : vector<4x4xf32>, vector<4x768xf32>, vector<4x768xf32> -> vector<4x768xf32>
    %c1 = arith.constant 1 : index
    %c0_31 = arith.constant 0 : index
    %c0_32 = arith.constant 0 : index
    %76 = vector.load %arg2[%c1, %c0_31, %c0_32] : memref<9x4x4xf32, #tpu.memory_space<vmem>>, vector<1x4x4xf32>
    %77 = vector.shape_cast %76 : vector<1x4x4xf32> to vector<4x4xf32>
    %cst_33 = arith.constant 0.000000e+00 : f32
    %78 = vector.broadcast %cst_33 : f32 to vector<4x1xf32>
    %79 = vector.extract_strided_slice %72 {offsets = [0, 1], sizes = [4, 767], strides = [1, 1]} : vector<4x768xf32> to vector<4x767xf32>
    %80 = tpu.concatenate %79, %78 in 1 : vector<4x767xf32>, vector<4x1xf32> -> vector<4x768xf32>
    %cst_34 = arith.constant dense<0.000000e+00> : vector<4x768xf32>
    %81 = tpu.matmul %77, %80, %cst_34 {dimension_numbers = #tpu.dot_dimension_numbers<[1], [0], [0], [1], [0, 0, 1, 1], [], []>} : vector<4x4xf32>, vector<4x768xf32>, vector<4x768xf32> -> vector<4x768xf32>
    %82 = arith.addf %75, %81 : vector<4x768xf32>
    %c2 = arith.constant 2 : index
    %c0_35 = arith.constant 0 : index
    %c0_36 = arith.constant 0 : index
    %83 = vector.load %arg2[%c2, %c0_35, %c0_36] : memref<9x4x4xf32, #tpu.memory_space<vmem>>, vector<1x4x4xf32>
    %84 = vector.shape_cast %83 : vector<1x4x4xf32> to vector<4x4xf32>
    %cst_37 = arith.constant 0.000000e+00 : f32
    %85 = vector.broadcast %cst_37 : f32 to vector<4x2xf32>
    %86 = vector.extract_strided_slice %72 {offsets = [0, 2], sizes = [4, 766], strides = [1, 1]} : vector<4x768xf32> to vector<4x766xf32>
    %87 = tpu.concatenate %86, %85 in 1 : vector<4x766xf32>, vector<4x2xf32> -> vector<4x768xf32>
    %cst_38 = arith.constant dense<0.000000e+00> : vector<4x768xf32>
    %88 = tpu.matmul %84, %87, %cst_38 {dimension_numbers = #tpu.dot_dimension_numbers<[1], [0], [0], [1], [0, 0, 1, 1], [], []>} : vector<4x4xf32>, vector<4x768xf32>, vector<4x768xf32> -> vector<4x768xf32>
    %89 = arith.addf %82, %88 : vector<4x768xf32>
    %c3 = arith.constant 3 : index
    %c0_39 = arith.constant 0 : index
    %c0_40 = arith.constant 0 : index
    %90 = vector.load %arg2[%c3, %c0_39, %c0_40] : memref<9x4x4xf32, #tpu.memory_space<vmem>>, vector<1x4x4xf32>
    %91 = vector.shape_cast %90 : vector<1x4x4xf32> to vector<4x4xf32>
    %cst_41 = arith.constant 0.000000e+00 : f32
    %92 = vector.broadcast %cst_41 : f32 to vector<4x18xf32>
    %93 = vector.extract_strided_slice %72 {offsets = [0, 18], sizes = [4, 750], strides = [1, 1]} : vector<4x768xf32> to vector<4x750xf32>
    %94 = tpu.concatenate %93, %92 in 1 : vector<4x750xf32>, vector<4x18xf32> -> vector<4x768xf32>
    %cst_42 = arith.constant dense<0.000000e+00> : vector<4x768xf32>
    %95 = tpu.matmul %91, %94, %cst_42 {dimension_numbers = #tpu.dot_dimension_numbers<[1], [0], [0], [1], [0, 0, 1, 1], [], []>} : vector<4x4xf32>, vector<4x768xf32>, vector<4x768xf32> -> vector<4x768xf32>
    %96 = arith.addf %89, %95 : vector<4x768xf32>
    %c4 = arith.constant 4 : index
    %c0_43 = arith.constant 0 : index
    %c0_44 = arith.constant 0 : index
    %97 = vector.load %arg2[%c4, %c0_43, %c0_44] : memref<9x4x4xf32, #tpu.memory_space<vmem>>, vector<1x4x4xf32>
    %98 = vector.shape_cast %97 : vector<1x4x4xf32> to vector<4x4xf32>
    %cst_45 = arith.constant 0.000000e+00 : f32
    %99 = vector.broadcast %cst_45 : f32 to vector<4x19xf32>
    %100 = vector.extract_strided_slice %72 {offsets = [0, 19], sizes = [4, 749], strides = [1, 1]} : vector<4x768xf32> to vector<4x749xf32>
    %101 = tpu.concatenate %100, %99 in 1 : vector<4x749xf32>, vector<4x19xf32> -> vector<4x768xf32>
    %cst_46 = arith.constant dense<0.000000e+00> : vector<4x768xf32>
    %102 = tpu.matmul %98, %101, %cst_46 {dimension_numbers = #tpu.dot_dimension_numbers<[1], [0], [0], [1], [0, 0, 1, 1], [], []>} : vector<4x4xf32>, vector<4x768xf32>, vector<4x768xf32> -> vector<4x768xf32>
    %103 = arith.addf %96, %102 : vector<4x768xf32>
    %c5 = arith.constant 5 : index
    %c0_47 = arith.constant 0 : index
    %c0_48 = arith.constant 0 : index
    %104 = vector.load %arg2[%c5, %c0_47, %c0_48] : memref<9x4x4xf32, #tpu.memory_space<vmem>>, vector<1x4x4xf32>
    %105 = vector.shape_cast %104 : vector<1x4x4xf32> to vector<4x4xf32>
    %cst_49 = arith.constant 0.000000e+00 : f32
    %106 = vector.broadcast %cst_49 : f32 to vector<4x20xf32>
    %107 = vector.extract_strided_slice %72 {offsets = [0, 20], sizes = [4, 748], strides = [1, 1]} : vector<4x768xf32> to vector<4x748xf32>
    %108 = tpu.concatenate %107, %106 in 1 : vector<4x748xf32>, vector<4x20xf32> -> vector<4x768xf32>
    %cst_50 = arith.constant dense<0.000000e+00> : vector<4x768xf32>
    %109 = tpu.matmul %105, %108, %cst_50 {dimension_numbers = #tpu.dot_dimension_numbers<[1], [0], [0], [1], [0, 0, 1, 1], [], []>} : vector<4x4xf32>, vector<4x768xf32>, vector<4x768xf32> -> vector<4x768xf32>
    %110 = arith.addf %103, %109 : vector<4x768xf32>
    %c6 = arith.constant 6 : index
    %c0_51 = arith.constant 0 : index
    %c0_52 = arith.constant 0 : index
    %111 = vector.load %arg2[%c6, %c0_51, %c0_52] : memref<9x4x4xf32, #tpu.memory_space<vmem>>, vector<1x4x4xf32>
    %112 = vector.shape_cast %111 : vector<1x4x4xf32> to vector<4x4xf32>
    %cst_53 = arith.constant 0.000000e+00 : f32
    %113 = vector.broadcast %cst_53 : f32 to vector<4x36xf32>
    %114 = vector.extract_strided_slice %72 {offsets = [0, 36], sizes = [4, 732], strides = [1, 1]} : vector<4x768xf32> to vector<4x732xf32>
    %115 = tpu.concatenate %114, %113 in 1 : vector<4x732xf32>, vector<4x36xf32> -> vector<4x768xf32>
    %cst_54 = arith.constant dense<0.000000e+00> : vector<4x768xf32>
    %116 = tpu.matmul %112, %115, %cst_54 {dimension_numbers = #tpu.dot_dimension_numbers<[1], [0], [0], [1], [0, 0, 1, 1], [], []>} : vector<4x4xf32>, vector<4x768xf32>, vector<4x768xf32> -> vector<4x768xf32>
    %117 = arith.addf %110, %116 : vector<4x768xf32>
    %c7 = arith.constant 7 : index
    %c0_55 = arith.constant 0 : index
    %c0_56 = arith.constant 0 : index
    %118 = vector.load %arg2[%c7, %c0_55, %c0_56] : memref<9x4x4xf32, #tpu.memory_space<vmem>>, vector<1x4x4xf32>
    %119 = vector.shape_cast %118 : vector<1x4x4xf32> to vector<4x4xf32>
    %cst_57 = arith.constant 0.000000e+00 : f32
    %120 = vector.broadcast %cst_57 : f32 to vector<4x37xf32>
    %121 = vector.extract_strided_slice %72 {offsets = [0, 37], sizes = [4, 731], strides = [1, 1]} : vector<4x768xf32> to vector<4x731xf32>
    %122 = tpu.concatenate %121, %120 in 1 : vector<4x731xf32>, vector<4x37xf32> -> vector<4x768xf32>
    %cst_58 = arith.constant dense<0.000000e+00> : vector<4x768xf32>
    %123 = tpu.matmul %119, %122, %cst_58 {dimension_numbers = #tpu.dot_dimension_numbers<[1], [0], [0], [1], [0, 0, 1, 1], [], []>} : vector<4x4xf32>, vector<4x768xf32>, vector<4x768xf32> -> vector<4x768xf32>
    %124 = arith.addf %117, %123 : vector<4x768xf32>
    %c8 = arith.constant 8 : index
    %c0_59 = arith.constant 0 : index
    %c0_60 = arith.constant 0 : index
    %125 = vector.load %arg2[%c8, %c0_59, %c0_60] : memref<9x4x4xf32, #tpu.memory_space<vmem>>, vector<1x4x4xf32>
    %126 = vector.shape_cast %125 : vector<1x4x4xf32> to vector<4x4xf32>
    %cst_61 = arith.constant 0.000000e+00 : f32
    %127 = vector.broadcast %cst_61 : f32 to vector<4x38xf32>
    %128 = vector.extract_strided_slice %72 {offsets = [0, 38], sizes = [4, 730], strides = [1, 1]} : vector<4x768xf32> to vector<4x730xf32>
    %129 = tpu.concatenate %128, %127 in 1 : vector<4x730xf32>, vector<4x38xf32> -> vector<4x768xf32>
    %cst_62 = arith.constant dense<0.000000e+00> : vector<4x768xf32>
    %130 = tpu.matmul %126, %129, %cst_62 {dimension_numbers = #tpu.dot_dimension_numbers<[1], [0], [0], [1], [0, 0, 1, 1], [], []>} : vector<4x4xf32>, vector<4x768xf32>, vector<4x768xf32> -> vector<4x768xf32>
    %131 = arith.addf %124, %130 : vector<4x768xf32>
    %c0_63 = arith.constant 0 : index
    %c0_64 = arith.constant 0 : index
    %132 = vector.load %arg3[%c0_63, %c0_64] : memref<4x1xf32, #tpu.memory_space<vmem>>, vector<4x1xf32>
    %133 = vector.broadcast %132 : vector<4x1xf32> to vector<4x768xf32>
    %134 = arith.addf %131, %133 : vector<4x768xf32>
    %cst_65 = arith.constant 0.000000e+00 : f32
    %135 = vector.broadcast %cst_65 : f32 to vector<4x768xf32>
    %136 = arith.cmpf ogt, %134, %135 : vector<4x768xf32>
    %cst_66 = arith.constant 0.00999999977 : f32
    %137 = vector.broadcast %cst_66 : f32 to vector<4x768xf32>
    %138 = arith.mulf %137, %134 : vector<4x768xf32>
    %139 = arith.select %136, %134, %138 : vector<4x768xi1>, vector<4x768xf32>
    %cst_67 = arith.constant 0.000000e+00 : f32
    %140 = vector.broadcast %cst_67 : f32 to vector<1x768xf32>
    %141 = arith.cmpf ogt, %3, %140 : vector<1x768xf32>
    %cst_68 = arith.constant 0.000000e+00 : f32
    %142 = vector.broadcast %cst_68 : f32 to vector<4x19xf32>
    %143 = vector.extract_strided_slice %139 {offsets = [0, 0], sizes = [4, 749], strides = [1, 1]} : vector<4x768xf32> to vector<4x749xf32>
    %144 = tpu.concatenate %142, %143 in 1 : vector<4x19xf32>, vector<4x749xf32> -> vector<4x768xf32>
    %cst_69 = arith.constant 0.000000e+00 : f32
    %145 = vector.shape_cast %141 : vector<1x768xi1> to vector<1x768xi1>
    %146 = vector.broadcast %145 : vector<1x768xi1> to vector<4x768xi1>
    %147 = vector.broadcast %cst_69 : f32 to vector<4x768xf32>
    %148 = arith.select %146, %144, %147 : vector<4x768xi1>, vector<4x768xf32>
    %149 = vector.extract_strided_slice %148 {offsets = [0, 0], sizes = [4, 384], strides = [1, 1]} : vector<4x768xf32> to vector<4x384xf32>
    %150 = vector.extract_strided_slice %3 {offsets = [0, 0], sizes = [1, 384], strides = [1, 1]} : vector<1x768xf32> to vector<1x384xf32>
    %cst_70 = arith.constant dense<0.000000e+00> : vector<4xf32>
    %151 = vector.multi_reduction <add>, %149, %cst_70 [1] : vector<4x384xf32> to vector<4xf32>
    %152 = vector.shape_cast %151 : vector<4xf32> to vector<4x1xf32>
    %cst_71 = arith.constant 3.906250e-03 : f32
    %153 = vector.broadcast %cst_71 : f32 to vector<4x1xf32>
    %154 = arith.mulf %152, %153 : vector<4x1xf32>
    %cst_72 = arith.constant 0.000000e+00 : f32
    %155 = vector.broadcast %cst_72 : f32 to vector<1x384xf32>
    %156 = arith.cmpf ogt, %150, %155 : vector<1x384xf32>
    %157 = vector.broadcast %154 : vector<4x1xf32> to vector<4x384xf32>
    %158 = arith.subf %149, %157 : vector<4x384xf32>
    %cst_73 = arith.constant 0.000000e+00 : f32
    %159 = vector.shape_cast %156 : vector<1x384xi1> to vector<1x384xi1>
    %160 = vector.broadcast %159 : vector<1x384xi1> to vector<4x384xi1>
    %161 = vector.broadcast %cst_73 : f32 to vector<4x384xf32>
    %162 = arith.select %160, %158, %161 : vector<4x384xi1>, vector<4x384xf32>
    %163 = arith.mulf %162, %162 : vector<4x384xf32>
    %cst_74 = arith.constant dense<0.000000e+00> : vector<4xf32>
    %164 = vector.multi_reduction <add>, %163, %cst_74 [1] : vector<4x384xf32> to vector<4xf32>
    %165 = vector.shape_cast %164 : vector<4xf32> to vector<4x1xf32>
    %cst_75 = arith.constant 3.906250e-03 : f32
    %166 = vector.broadcast %cst_75 : f32 to vector<4x1xf32>
    %167 = arith.mulf %165, %166 : vector<4x1xf32>
    %cst_76 = arith.constant 9.99999974E-6 : f32
    %168 = vector.broadcast %cst_76 : f32 to vector<4x1xf32>
    %169 = arith.addf %167, %168 : vector<4x1xf32>
    %170 = math.rsqrt %169 : vector<4x1xf32>
    %171 = vector.broadcast %170 : vector<4x1xf32> to vector<4x384xf32>
    %172 = arith.mulf %162, %171 : vector<4x384xf32>
    %173 = vector.extract_strided_slice %148 {offsets = [0, 384], sizes = [4, 384], strides = [1, 1]} : vector<4x768xf32> to vector<4x384xf32>
    %174 = vector.extract_strided_slice %3 {offsets = [0, 384], sizes = [1, 384], strides = [1, 1]} : vector<1x768xf32> to vector<1x384xf32>
    %cst_77 = arith.constant dense<0.000000e+00> : vector<4xf32>
    %175 = vector.multi_reduction <add>, %173, %cst_77 [1] : vector<4x384xf32> to vector<4xf32>
    %176 = vector.shape_cast %175 : vector<4xf32> to vector<4x1xf32>
    %cst_78 = arith.constant 3.906250e-03 : f32
    %177 = vector.broadcast %cst_78 : f32 to vector<4x1xf32>
    %178 = arith.mulf %176, %177 : vector<4x1xf32>
    %cst_79 = arith.constant 0.000000e+00 : f32
    %179 = vector.broadcast %cst_79 : f32 to vector<1x384xf32>
    %180 = arith.cmpf ogt, %174, %179 : vector<1x384xf32>
    %181 = vector.broadcast %178 : vector<4x1xf32> to vector<4x384xf32>
    %182 = arith.subf %173, %181 : vector<4x384xf32>
    %cst_80 = arith.constant 0.000000e+00 : f32
    %183 = vector.shape_cast %180 : vector<1x384xi1> to vector<1x384xi1>
    %184 = vector.broadcast %183 : vector<1x384xi1> to vector<4x384xi1>
    %185 = vector.broadcast %cst_80 : f32 to vector<4x384xf32>
    %186 = arith.select %184, %182, %185 : vector<4x384xi1>, vector<4x384xf32>
    %187 = arith.mulf %186, %186 : vector<4x384xf32>
    %cst_81 = arith.constant dense<0.000000e+00> : vector<4xf32>
    %188 = vector.multi_reduction <add>, %187, %cst_81 [1] : vector<4x384xf32> to vector<4xf32>
    %189 = vector.shape_cast %188 : vector<4xf32> to vector<4x1xf32>
    %cst_82 = arith.constant 3.906250e-03 : f32
    %190 = vector.broadcast %cst_82 : f32 to vector<4x1xf32>
    %191 = arith.mulf %189, %190 : vector<4x1xf32>
    %cst_83 = arith.constant 9.99999974E-6 : f32
    %192 = vector.broadcast %cst_83 : f32 to vector<4x1xf32>
    %193 = arith.addf %191, %192 : vector<4x1xf32>
    %194 = math.rsqrt %193 : vector<4x1xf32>
    %195 = vector.broadcast %194 : vector<4x1xf32> to vector<4x384xf32>
    %196 = arith.mulf %186, %195 : vector<4x384xf32>
    %197 = tpu.concatenate %172, %196 in 1 : vector<4x384xf32>, vector<4x384xf32> -> vector<4x768xf32>
    %c0_84 = arith.constant 0 : index
    %c0_85 = arith.constant 0 : index
    %c0_86 = arith.constant 0 : index
    %198 = vector.load %arg4[%c0_84, %c0_85, %c0_86] : memref<9x4x4xf32, #tpu.memory_space<vmem>>, vector<1x4x4xf32>
    %199 = vector.shape_cast %198 : vector<1x4x4xf32> to vector<4x4xf32>
    %cst_87 = arith.constant dense<0.000000e+00> : vector<4x768xf32>
    %200 = tpu.matmul %199, %197, %cst_87 {dimension_numbers = #tpu.dot_dimension_numbers<[1], [0], [0], [1], [0, 0, 1, 1], [], []>} : vector<4x4xf32>, vector<4x768xf32>, vector<4x768xf32> -> vector<4x768xf32>
    %c1_88 = arith.constant 1 : index
    %c0_89 = arith.constant 0 : index
    %c0_90 = arith.constant 0 : index
    %201 = vector.load %arg4[%c1_88, %c0_89, %c0_90] : memref<9x4x4xf32, #tpu.memory_space<vmem>>, vector<1x4x4xf32>
    %202 = vector.shape_cast %201 : vector<1x4x4xf32> to vector<4x4xf32>
    %cst_91 = arith.constant 0.000000e+00 : f32
    %203 = vector.broadcast %cst_91 : f32 to vector<4x1xf32>
    %204 = vector.extract_strided_slice %197 {offsets = [0, 1], sizes = [4, 767], strides = [1, 1]} : vector<4x768xf32> to vector<4x767xf32>
    %205 = tpu.concatenate %204, %203 in 1 : vector<4x767xf32>, vector<4x1xf32> -> vector<4x768xf32>
    %cst_92 = arith.constant dense<0.000000e+00> : vector<4x768xf32>
    %206 = tpu.matmul %202, %205, %cst_92 {dimension_numbers = #tpu.dot_dimension_numbers<[1], [0], [0], [1], [0, 0, 1, 1], [], []>} : vector<4x4xf32>, vector<4x768xf32>, vector<4x768xf32> -> vector<4x768xf32>
    %207 = arith.addf %200, %206 : vector<4x768xf32>
    %c2_93 = arith.constant 2 : index
    %c0_94 = arith.constant 0 : index
    %c0_95 = arith.constant 0 : index
    %208 = vector.load %arg4[%c2_93, %c0_94, %c0_95] : memref<9x4x4xf32, #tpu.memory_space<vmem>>, vector<1x4x4xf32>
    %209 = vector.shape_cast %208 : vector<1x4x4xf32> to vector<4x4xf32>
    %cst_96 = arith.constant 0.000000e+00 : f32
    %210 = vector.broadcast %cst_96 : f32 to vector<4x2xf32>
    %211 = vector.extract_strided_slice %197 {offsets = [0, 2], sizes = [4, 766], strides = [1, 1]} : vector<4x768xf32> to vector<4x766xf32>
    %212 = tpu.concatenate %211, %210 in 1 : vector<4x766xf32>, vector<4x2xf32> -> vector<4x768xf32>
    %cst_97 = arith.constant dense<0.000000e+00> : vector<4x768xf32>
    %213 = tpu.matmul %209, %212, %cst_97 {dimension_numbers = #tpu.dot_dimension_numbers<[1], [0], [0], [1], [0, 0, 1, 1], [], []>} : vector<4x4xf32>, vector<4x768xf32>, vector<4x768xf32> -> vector<4x768xf32>
    %214 = arith.addf %207, %213 : vector<4x768xf32>
    %c3_98 = arith.constant 3 : index
    %c0_99 = arith.constant 0 : index
    %c0_100 = arith.constant 0 : index
    %215 = vector.load %arg4[%c3_98, %c0_99, %c0_100] : memref<9x4x4xf32, #tpu.memory_space<vmem>>, vector<1x4x4xf32>
    %216 = vector.shape_cast %215 : vector<1x4x4xf32> to vector<4x4xf32>
    %cst_101 = arith.constant 0.000000e+00 : f32
    %217 = vector.broadcast %cst_101 : f32 to vector<4x18xf32>
    %218 = vector.extract_strided_slice %197 {offsets = [0, 18], sizes = [4, 750], strides = [1, 1]} : vector<4x768xf32> to vector<4x750xf32>
    %219 = tpu.concatenate %218, %217 in 1 : vector<4x750xf32>, vector<4x18xf32> -> vector<4x768xf32>
    %cst_102 = arith.constant dense<0.000000e+00> : vector<4x768xf32>
    %220 = tpu.matmul %216, %219, %cst_102 {dimension_numbers = #tpu.dot_dimension_numbers<[1], [0], [0], [1], [0, 0, 1, 1], [], []>} : vector<4x4xf32>, vector<4x768xf32>, vector<4x768xf32> -> vector<4x768xf32>
    %221 = arith.addf %214, %220 : vector<4x768xf32>
    %c4_103 = arith.constant 4 : index
    %c0_104 = arith.constant 0 : index
    %c0_105 = arith.constant 0 : index
    %222 = vector.load %arg4[%c4_103, %c0_104, %c0_105] : memref<9x4x4xf32, #tpu.memory_space<vmem>>, vector<1x4x4xf32>
    %223 = vector.shape_cast %222 : vector<1x4x4xf32> to vector<4x4xf32>
    %cst_106 = arith.constant 0.000000e+00 : f32
    %224 = vector.broadcast %cst_106 : f32 to vector<4x19xf32>
    %225 = vector.extract_strided_slice %197 {offsets = [0, 19], sizes = [4, 749], strides = [1, 1]} : vector<4x768xf32> to vector<4x749xf32>
    %226 = tpu.concatenate %225, %224 in 1 : vector<4x749xf32>, vector<4x19xf32> -> vector<4x768xf32>
    %cst_107 = arith.constant dense<0.000000e+00> : vector<4x768xf32>
    %227 = tpu.matmul %223, %226, %cst_107 {dimension_numbers = #tpu.dot_dimension_numbers<[1], [0], [0], [1], [0, 0, 1, 1], [], []>} : vector<4x4xf32>, vector<4x768xf32>, vector<4x768xf32> -> vector<4x768xf32>
    %228 = arith.addf %221, %227 : vector<4x768xf32>
    %c5_108 = arith.constant 5 : index
    %c0_109 = arith.constant 0 : index
    %c0_110 = arith.constant 0 : index
    %229 = vector.load %arg4[%c5_108, %c0_109, %c0_110] : memref<9x4x4xf32, #tpu.memory_space<vmem>>, vector<1x4x4xf32>
    %230 = vector.shape_cast %229 : vector<1x4x4xf32> to vector<4x4xf32>
    %cst_111 = arith.constant 0.000000e+00 : f32
    %231 = vector.broadcast %cst_111 : f32 to vector<4x20xf32>
    %232 = vector.extract_strided_slice %197 {offsets = [0, 20], sizes = [4, 748], strides = [1, 1]} : vector<4x768xf32> to vector<4x748xf32>
    %233 = tpu.concatenate %232, %231 in 1 : vector<4x748xf32>, vector<4x20xf32> -> vector<4x768xf32>
    %cst_112 = arith.constant dense<0.000000e+00> : vector<4x768xf32>
    %234 = tpu.matmul %230, %233, %cst_112 {dimension_numbers = #tpu.dot_dimension_numbers<[1], [0], [0], [1], [0, 0, 1, 1], [], []>} : vector<4x4xf32>, vector<4x768xf32>, vector<4x768xf32> -> vector<4x768xf32>
    %235 = arith.addf %228, %234 : vector<4x768xf32>
    %c6_113 = arith.constant 6 : index
    %c0_114 = arith.constant 0 : index
    %c0_115 = arith.constant 0 : index
    %236 = vector.load %arg4[%c6_113, %c0_114, %c0_115] : memref<9x4x4xf32, #tpu.memory_space<vmem>>, vector<1x4x4xf32>
    %237 = vector.shape_cast %236 : vector<1x4x4xf32> to vector<4x4xf32>
    %cst_116 = arith.constant 0.000000e+00 : f32
    %238 = vector.broadcast %cst_116 : f32 to vector<4x36xf32>
    %239 = vector.extract_strided_slice %197 {offsets = [0, 36], sizes = [4, 732], strides = [1, 1]} : vector<4x768xf32> to vector<4x732xf32>
    %240 = tpu.concatenate %239, %238 in 1 : vector<4x732xf32>, vector<4x36xf32> -> vector<4x768xf32>
    %cst_117 = arith.constant dense<0.000000e+00> : vector<4x768xf32>
    %241 = tpu.matmul %237, %240, %cst_117 {dimension_numbers = #tpu.dot_dimension_numbers<[1], [0], [0], [1], [0, 0, 1, 1], [], []>} : vector<4x4xf32>, vector<4x768xf32>, vector<4x768xf32> -> vector<4x768xf32>
    %242 = arith.addf %235, %241 : vector<4x768xf32>
    %c7_118 = arith.constant 7 : index
    %c0_119 = arith.constant 0 : index
    %c0_120 = arith.constant 0 : index
    %243 = vector.load %arg4[%c7_118, %c0_119, %c0_120] : memref<9x4x4xf32, #tpu.memory_space<vmem>>, vector<1x4x4xf32>
    %244 = vector.shape_cast %243 : vector<1x4x4xf32> to vector<4x4xf32>
    %cst_121 = arith.constant 0.000000e+00 : f32
    %245 = vector.broadcast %cst_121 : f32 to vector<4x37xf32>
    %246 = vector.extract_strided_slice %197 {offsets = [0, 37], sizes = [4, 731], strides = [1, 1]} : vector<4x768xf32> to vector<4x731xf32>
    %247 = tpu.concatenate %246, %245 in 1 : vector<4x731xf32>, vector<4x37xf32> -> vector<4x768xf32>
    %cst_122 = arith.constant dense<0.000000e+00> : vector<4x768xf32>
    %248 = tpu.matmul %244, %247, %cst_122 {dimension_numbers = #tpu.dot_dimension_numbers<[1], [0], [0], [1], [0, 0, 1, 1], [], []>} : vector<4x4xf32>, vector<4x768xf32>, vector<4x768xf32> -> vector<4x768xf32>
    %249 = arith.addf %242, %248 : vector<4x768xf32>
    %c8_123 = arith.constant 8 : index
    %c0_124 = arith.constant 0 : index
    %c0_125 = arith.constant 0 : index
    %250 = vector.load %arg4[%c8_123, %c0_124, %c0_125] : memref<9x4x4xf32, #tpu.memory_space<vmem>>, vector<1x4x4xf32>
    %251 = vector.shape_cast %250 : vector<1x4x4xf32> to vector<4x4xf32>
    %cst_126 = arith.constant 0.000000e+00 : f32
    %252 = vector.broadcast %cst_126 : f32 to vector<4x38xf32>
    %253 = vector.extract_strided_slice %197 {offsets = [0, 38], sizes = [4, 730], strides = [1, 1]} : vector<4x768xf32> to vector<4x730xf32>
    %254 = tpu.concatenate %253, %252 in 1 : vector<4x730xf32>, vector<4x38xf32> -> vector<4x768xf32>
    %cst_127 = arith.constant dense<0.000000e+00> : vector<4x768xf32>
    %255 = tpu.matmul %251, %254, %cst_127 {dimension_numbers = #tpu.dot_dimension_numbers<[1], [0], [0], [1], [0, 0, 1, 1], [], []>} : vector<4x4xf32>, vector<4x768xf32>, vector<4x768xf32> -> vector<4x768xf32>
    %256 = arith.addf %249, %255 : vector<4x768xf32>
    %cst_128 = arith.constant dense<0.000000e+00> : vector<4x128xf32>
    %257 = tpu.matmul %256, %4, %cst_128 {dimension_numbers = #tpu.dot_dimension_numbers<[1], [0], [0], [1], [0, 0, 1, 1], [], []>} : vector<4x768xf32>, vector<768x128xf32>, vector<4x128xf32> -> vector<4x128xf32>
    %c0_129 = arith.constant 0 : index
    %c0_130 = arith.constant 0 : index
    %258 = vector.load %arg5[%c0_129, %c0_130] : memref<4x1xf32, #tpu.memory_space<vmem>>, vector<4x1xf32>
    %259 = vector.broadcast %258 : vector<4x1xf32> to vector<4x128xf32>
    %260 = arith.addf %257, %259 : vector<4x128xf32>
    %cst_131 = arith.constant 0.000000e+00 : f32
    %261 = vector.broadcast %cst_131 : f32 to vector<4x128xf32>
    %262 = arith.cmpf ogt, %260, %261 : vector<4x128xf32>
    %cst_132 = arith.constant 0.00999999977 : f32
    %263 = vector.broadcast %cst_132 : f32 to vector<4x128xf32>
    %264 = arith.mulf %263, %260 : vector<4x128xf32>
    %265 = arith.select %262, %260, %264 : vector<4x128xi1>, vector<4x128xf32>
    %266 = arith.addf %265, %23 : vector<4x128xf32>
    %c0_133 = arith.constant 0 : index
    %c0_134 = arith.constant 0 : index
    %c0_135 = arith.constant 0 : index
    %267 = vector.load %arg9[%c0_133, %c0_134, %c0_135] : memref<1x4x128xf32, #tpu.memory_space<vmem>>, vector<1x4x128xf32>
    %268 = vector.shape_cast %267 : vector<1x4x128xf32> to vector<4x128xf32>
    %269 = vector.shape_cast %266 : vector<4x128xf32> to vector<1x4x128xf32>
    tpu.vector_store %arg9[%c0_133, %c0_134, %c0_135], %269 {strides = array<i32>} : memref<1x4x128xf32, #tpu.memory_space<vmem>>, vector<1x4x128xf32>,
    return
  }
  func.func @transform_0(%arg0: i32) -> (i32, i32, i32) {
    %c0_i32 = arith.constant 0 : i32
    %c0_i32_0 = arith.constant 0 : i32
    %c0_i32_1 = arith.constant 0 : i32
    return %arg0, %c0_i32, %c0_i32_0 : i32, i32, i32
  }
  func.func @transform_1(%arg0: i32) -> (i32, i32, i32) {
    %c0_i32 = arith.constant 0 : i32
    %c0_i32_0 = arith.constant 0 : i32
    %c0_i32_1 = arith.constant 0 : i32
    %c0_i32_2 = arith.constant 0 : i32
    return %c0_i32, %c0_i32_0, %c0_i32_1 : i32, i32, i32
  }
  func.func @transform_2(%arg0: i32) -> (i32, i32) {
    %c0_i32 = arith.constant 0 : i32
    %c0_i32_0 = arith.constant 0 : i32
    %c0_i32_1 = arith.constant 0 : i32
    return %c0_i32, %c0_i32_0 : i32, i32
  }
  func.func @transform_3(%arg0: i32) -> (i32, i32, i32) {
    %c0_i32 = arith.constant 0 : i32
    %c0_i32_0 = arith.constant 0 : i32
    %c0_i32_1 = arith.constant 0 : i32
    %c0_i32_2 = arith.constant 0 : i32
    return %c0_i32, %c0_i32_0, %c0_i32_1 : i32, i32, i32
  }
  func.func @transform_4(%arg0: i32) -> (i32, i32) {
    %c0_i32 = arith.constant 0 : i32
    %c0_i32_0 = arith.constant 0 : i32
    %c0_i32_1 = arith.constant 0 : i32
    return %c0_i32, %c0_i32_0 : i32, i32
  }
  func.func @transform_5(%arg0: i32) -> (i32, i32) {
    %c0_i32 = arith.constant 0 : i32
    %c0_i32_0 = arith.constant 0 : i32
    %c0_i32_1 = arith.constant 0 : i32
    return %c0_i32, %c0_i32_0 : i32, i32
  }
  func.func @transform_6(%arg0: i32) -> (i32, i32) {
    %c0_i32 = arith.constant 0 : i32
    %c0_i32_0 = arith.constant 0 : i32
    %c0_i32_1 = arith.constant 0 : i32
    return %c0_i32, %c0_i32_0 : i32, i32
  }
  func.func @transform_7(%arg0: i32) -> (i32, i32) {
    %c0_i32 = arith.constant 0 : i32
    %c0_i32_0 = arith.constant 0 : i32
    %c0_i32_1 = arith.constant 0 : i32
    return %c0_i32, %c0_i32_0 : i32, i32
  }
  func.func @transform_8(%arg0: i32) -> (i32, i32, i32) {
    %c0_i32 = arith.constant 0 : i32
    %c0_i32_0 = arith.constant 0 : i32
    %c0_i32_1 = arith.constant 0 : i32
    return %arg0, %c0_i32, %c0_i32_0 : i32, i32, i32
  }
}

</mosaic_0001>

<llo_original>
// kernel: tpu_custom_call.1
$region0: #{tpu_custom_call.1}
  #allocation0 [shape = 'u32[]', space=smem, size = 0x4, offset = 0x4, fixed_abs, tag = 'smem constant byte address 0x4 - core index']
  #allocation1 [shape = 'u32[72,128]{1,0:T(1,128)}', space=vmem, size = 0x9000, scoped, tag = 'internal scratch']
  %s0 = inlined_call_operand.vmem [shape: f32[1,4,768], index: 0, kind: input, shape index: {}]
  %s1 = inlined_call_operand.vmem [shape: f32[9,4,4], index: 1, kind: input, shape index: {}]
  %s2 = inlined_call_operand.vmem [shape: f32[4,1], index: 2, kind: input, shape index: {}]
  %s3 = inlined_call_operand.vmem [shape: f32[9,4,4], index: 3, kind: input, shape index: {}]
  %s4 = inlined_call_operand.vmem [shape: f32[4,1], index: 4, kind: input, shape index: {}]
  %s5 = inlined_call_operand.vmem [shape: f32[1,768], index: 5, kind: input, shape index: {}]
  %s6 = inlined_call_operand.vmem [shape: f32[1,768], index: 6, kind: input, shape index: {}]
  %s7 = inlined_call_operand.hbm [shape: f32[768,128], index: 7, kind: input, shape index: {}]
  %s8 = inlined_call_operand.hbm [shape: f32[1,4,128], index: 8, kind: output, shape index: {}]
  %s9 = sld [smem:[#allocation0]]
  $region46: #{tpu_custom_call.1} parent=0
    _
  %s11 = ssub.s32 1, %s9
  %s12 = scalar_select 0, %s11, %s9
  $region1: #{tpu_custom_call.1} parent=0
    #allocation2 [shape = 'u8[393216]{0}', space=vmem, size = 0x60000, scoped, tag = 'input window, operand 7, single buffered']
    #allocation3 [shape = 's32[1]{0}', space=sflag, size = 0x4, scoped, tag = 'scoped memory for tpu_custom_call.1']
    #allocation4 [shape = 's32[1]{0}', space=sflag, size = 0x4, scoped, tag = 'scoped memory for tpu_custom_call.1']
    #allocation5 [shape = 'u8[2048]{0}', space=vmem, size = 0x800, scoped, tag = 'output window, operand 0, single buffered']
    %13 = vsyncpa [#allocation3], 0
    %14 = vsyncpa [#allocation4], 0
    // Predicated region
    $region2: #{tpu_custom_call.1} parent=1 // pred_check
      _
    $region3: #{tpu_custom_call.1} parent=1 // pred_check_branch
      %16 = sbr.rel (0) target = $region5
    $region4: #{tpu_custom_call.1} parent=1 // pred_region
      _
    $region5: #{tpu_custom_call.1} parent=1 // pred_fallthru
      _
    // Predicated region
    $region6: #{tpu_custom_call.1} parent=1 // pred_check
      _
    $region7: #{tpu_custom_call.1} parent=1 // pred_check_branch
      %18 = sbr.rel (0) target = $region9
    $region8: #{tpu_custom_call.1} parent=1 // pred_region
      _
    $region9: #{tpu_custom_call.1} parent=1 // pred_fallthru
      _
    // Predicated region
    $region10: #{tpu_custom_call.1} parent=1 // pred_check
      _
    $region11: #{tpu_custom_call.1} parent=1 // pred_check_branch
      %20 = sbr.rel (0) target = $region13
    $region12: #{tpu_custom_call.1} parent=1 // pred_region
      _
    $region13: #{tpu_custom_call.1} parent=1 // pred_fallthru
      _
    // Predicated region
    $region14: #{tpu_custom_call.1} parent=1 // pred_check
      _
    $region15: #{tpu_custom_call.1} parent=1 // pred_check_branch
      %22 = sbr.rel (0) target = $region17
    $region16: #{tpu_custom_call.1} parent=1 // pred_region
      _
    $region17: #{tpu_custom_call.1} parent=1 // pred_fallthru
      _
    // Predicated region
    $region18: #{tpu_custom_call.1} parent=1 // pred_check
      _
    $region19: #{tpu_custom_call.1} parent=1 // pred_check_branch
      %24 = sbr.rel (0) target = $region21
    $region20: #{tpu_custom_call.1} parent=1 // pred_region
      _
    $region21: #{tpu_custom_call.1} parent=1 // pred_fallthru
      _
    // Predicated region
    $region22: #{tpu_custom_call.1} parent=1 // pred_check
      _
    $region23: #{tpu_custom_call.1} parent=1 // pred_check_branch
      %26 = sbr.rel (0) target = $region25
    $region24: #{tpu_custom_call.1} parent=1 // pred_region
      _
    $region25: #{tpu_custom_call.1} parent=1 // pred_fallthru
      _
    // Predicated region
    $region26: #{tpu_custom_call.1} parent=1 // pred_check
      _
    $region27: #{tpu_custom_call.1} parent=1 // pred_check_branch
      %28 = sbr.rel (0) target = $region29
    $region28: #{tpu_custom_call.1} parent=1 // pred_region
      _
    $region29: #{tpu_custom_call.1} parent=1 // pred_fallthru
      _
    // Predicated region
    $region30: #{tpu_custom_call.1} parent=1 // pred_check
      _
    $region31: #{tpu_custom_call.1} parent=1 // pred_check_branch
      %30 = sbr.rel (0) target = $region33
    $region32: #{tpu_custom_call.1} parent=1 // pred_region
      %32 = vsyncadd [#allocation3], 0
      %s33 = sshll.u32 %s7, 4
      %s34 = int_to_ptr.hbm [resolvable:$true] %s33
      %s35 = sshll.u32 [#allocation2], 4
      %s36 = int_to_ptr.vmem [resolvable:$true] %s35
      %41 = dma.hbm_to_vmem [thread:$0]  %s34, 12288, %s36, [#allocation3], 128, 128, 8
    $region33: #{tpu_custom_call.1} parent=1 // pred_fallthru
      _
    // Predicated region
    $region34: #{tpu_custom_call.1} parent=1 // pred_check
      _
    $region35: #{tpu_custom_call.1} parent=1 // pred_check_branch
      %43 = sbr.rel (0) target = $region37
    $region36: #{tpu_custom_call.1} parent=1 // pred_region
      %45 = dma.done [#allocation3], 12288
    $region37: #{tpu_custom_call.1} parent=1 // pred_fallthru
      _
    %v46 = vld [vmem:[%s0] sm:$0xff]
    %v47 = vld [vmem:[%s0 + $0x8] sm:$0xff]
    %v48 = vld [vmem:[%s0 + $0x10] sm:$0xff]
    %v49 = vld [vmem:[%s5] sm:$0x3f]
    %v50 = vld [vmem:[%s6] sm:$0x3f]
    %v51 = vld [vmem:[#allocation2] sm:$0xff]
    %v52 = vld [vmem:[#allocation2 + $0x8] sm:$0xff]
    %v53 = vld [vmem:[#allocation2 + $0x10] sm:$0xff]
    %v54 = vld [vmem:[#allocation2 + $0x18] sm:$0xff]
    %v55 = vld [vmem:[#allocation2 + $0x20] sm:$0xff]
    %v56 = vld [vmem:[#allocation2 + $0x28] sm:$0xff]
    %v57 = vld [vmem:[#allocation2 + $0x30] sm:$0xff]
    %v58 = vld [vmem:[#allocation2 + $0x38] sm:$0xff]
    %v59 = vld [vmem:[#allocation2 + $0x40] sm:$0xff]
    %v60 = vld [vmem:[#allocation2 + $0x48] sm:$0xff]
    %v61 = vld [vmem:[#allocation2 + $0x50] sm:$0xff]
    %v62 = vld [vmem:[#allocation2 + $0x58] sm:$0xff]
    %v63 = vld [vmem:[#allocation2 + $0x60] sm:$0xff]
    %v64 = vld [vmem:[#allocation2 + $0x68] sm:$0xff]
    %v65 = vld [vmem:[#allocation2 + $0x70] sm:$0xff]
    %v66 = vld [vmem:[#allocation2 + $0x78] sm:$0xff]
    %v67 = vld [vmem:[#allocation2 + $0x80] sm:$0xff]
    %v68 = vld [vmem:[#allocation2 + $0x88] sm:$0xff]
    %v69 = vld [vmem:[#allocation2 + $0x90] sm:$0xff]
    %v70 = vld [vmem:[#allocation2 + $0x98] sm:$0xff]
    %v71 = vld [vmem:[#allocation2 + $0xa0] sm:$0xff]
    %v72 = vld [vmem:[#allocation2 + $0xa8] sm:$0xff]
    %v73 = vld [vmem:[#allocation2 + $0xb0] sm:$0xff]
    %v74 = vld [vmem:[#allocation2 + $0xb8] sm:$0xff]
    %v75 = vld [vmem:[#allocation2 + $0xc0] sm:$0xff]
    %v76 = vld [vmem:[#allocation2 + $0xc8] sm:$0xff]
    %v77 = vld [vmem:[#allocation2 + $0xd0] sm:$0xff]
    %v78 = vld [vmem:[#allocation2 + $0xd8] sm:$0xff]
    %v79 = vld [vmem:[#allocation2 + $0xe0] sm:$0xff]
    %v80 = vld [vmem:[#allocation2 + $0xe8] sm:$0xff]
    %v81 = vld [vmem:[#allocation2 + $0xf0] sm:$0xff]
    %v82 = vld [vmem:[#allocation2 + $0xf8] sm:$0xff]
    %v83 = vld [vmem:[#allocation2 + $0x100] sm:$0xff]
    %v84 = vld [vmem:[#allocation2 + $0x108] sm:$0xff]
    %v85 = vld [vmem:[#allocation2 + $0x110] sm:$0xff]
    %v86 = vld [vmem:[#allocation2 + $0x118] sm:$0xff]
    %v87 = vld [vmem:[#allocation2 + $0x120] sm:$0xff]
    %v88 = vld [vmem:[#allocation2 + $0x128] sm:$0xff]
    %v89 = vld [vmem:[#allocation2 + $0x130] sm:$0xff]
    %v90 = vld [vmem:[#allocation2 + $0x138] sm:$0xff]
    %v91 = vld [vmem:[#allocation2 + $0x140] sm:$0xff]
    %v92 = vld [vmem:[#allocation2 + $0x148] sm:$0xff]
    %v93 = vld [vmem:[#allocation2 + $0x150] sm:$0xff]
    %v94 = vld [vmem:[#allocation2 + $0x158] sm:$0xff]
    %v95 = vld [vmem:[#allocation2 + $0x160] sm:$0xff]
    %v96 = vld [vmem:[#allocation2 + $0x168] sm:$0xff]
    %v97 = vld [vmem:[#allocation2 + $0x170] sm:$0xff]
    %v98 = vld [vmem:[#allocation2 + $0x178] sm:$0xff]
    %v99 = vld [vmem:[#allocation2 + $0x180] sm:$0xff]
    %v100 = vld [vmem:[#allocation2 + $0x188] sm:$0xff]
    %v101 = vld [vmem:[#allocation2 + $0x190] sm:$0xff]
    %v102 = vld [vmem:[#allocation2 + $0x198] sm:$0xff]
    %v103 = vld [vmem:[#allocation2 + $0x1a0] sm:$0xff]
    %v104 = vld [vmem:[#allocation2 + $0x1a8] sm:$0xff]
    %v105 = vld [vmem:[#allocation2 + $0x1b0] sm:$0xff]
    %v106 = vld [vmem:[#allocation2 + $0x1b8] sm:$0xff]
    %v107 = vld [vmem:[#allocation2 + $0x1c0] sm:$0xff]
    %v108 = vld [vmem:[#allocation2 + $0x1c8] sm:$0xff]
    %v109 = vld [vmem:[#allocation2 + $0x1d0] sm:$0xff]
    %v110 = vld [vmem:[#allocation2 + $0x1d8] sm:$0xff]
    %v111 = vld [vmem:[#allocation2 + $0x1e0] sm:$0xff]
    %v112 = vld [vmem:[#allocation2 + $0x1e8] sm:$0xff]
    %v113 = vld [vmem:[#allocation2 + $0x1f0] sm:$0xff]
    %v114 = vld [vmem:[#allocation2 + $0x1f8] sm:$0xff]
    %v115 = vld [vmem:[#allocation2 + $0x200] sm:$0xff]
    %v116 = vld [vmem:[#allocation2 + $0x208] sm:$0xff]
    %v117 = vld [vmem:[#allocation2 + $0x210] sm:$0xff]
    %v118 = vld [vmem:[#allocation2 + $0x218] sm:$0xff]
    %v119 = vld [vmem:[#allocation2 + $0x220] sm:$0xff]
    %v120 = vld [vmem:[#allocation2 + $0x228] sm:$0xff]
    %v121 = vld [vmem:[#allocation2 + $0x230] sm:$0xff]
    %v122 = vld [vmem:[#allocation2 + $0x238] sm:$0xff]
    %v123 = vld [vmem:[#allocation2 + $0x240] sm:$0xff]
    %v124 = vld [vmem:[#allocation2 + $0x248] sm:$0xff]
    %v125 = vld [vmem:[#allocation2 + $0x250] sm:$0xff]
    %v126 = vld [vmem:[#allocation2 + $0x258] sm:$0xff]
    %v127 = vld [vmem:[#allocation2 + $0x260] sm:$0xff]
    %v128 = vld [vmem:[#allocation2 + $0x268] sm:$0xff]
    %v129 = vld [vmem:[#allocation2 + $0x270] sm:$0xff]
    %v130 = vld [vmem:[#allocation2 + $0x278] sm:$0xff]
    %v131 = vld [vmem:[#allocation2 + $0x280] sm:$0xff]
    %v132 = vld [vmem:[#allocation2 + $0x288] sm:$0xff]
    %v133 = vld [vmem:[#allocation2 + $0x290] sm:$0xff]
    %v134 = vld [vmem:[#allocation2 + $0x298] sm:$0xff]
    %v135 = vld [vmem:[#allocation2 + $0x2a0] sm:$0xff]
    %v136 = vld [vmem:[#allocation2 + $0x2a8] sm:$0xff]
    %v137 = vld [vmem:[#allocation2 + $0x2b0] sm:$0xff]
    %v138 = vld [vmem:[#allocation2 + $0x2b8] sm:$0xff]
    %v139 = vld [vmem:[#allocation2 + $0x2c0] sm:$0xff]
    %v140 = vld [vmem:[#allocation2 + $0x2c8] sm:$0xff]
    %v141 = vld [vmem:[#allocation2 + $0x2d0] sm:$0xff]
    %v142 = vld [vmem:[#allocation2 + $0x2d8] sm:$0xff]
    %v143 = vld [vmem:[#allocation2 + $0x2e0] sm:$0xff]
    %v144 = vld [vmem:[#allocation2 + $0x2e8] sm:$0xff]
    %v145 = vld [vmem:[#allocation2 + $0x2f0] sm:$0xff]
    %v146 = vld [vmem:[#allocation2 + $0x2f8] sm:$0xff]
    %150 = vst [vmem:[#allocation1] ss:$2 sm:$0xff] %v46
    %s151 = scalar_lea.vmem [#allocation1], 16
    %152 = vst [vmem:[%s151] ss:$2 sm:$0xff] %v47
    %s153 = scalar_lea.vmem [#allocation1], 32
    %154 = vst [vmem:[%s153] ss:$2 sm:$0xff] %v48
    %v155 = vld.sshfl [vmem:[#allocation1] sm:$0xff pattern:$0x75316420]
    %v156 = vld.sshfl [vmem:[#allocation1 + $0x8] sm:$0xff pattern:$0x75316420]
    %v157 = vld.sshfl [vmem:[#allocation1 + $0x10] sm:$0xff pattern:$0x75316420]
    %v158 = vld.sshfl [vmem:[#allocation1 + $0x18] sm:$0xff pattern:$0x75316420]
    %v159 = vld.sshfl [vmem:[#allocation1 + $0x20] sm:$0xff pattern:$0x75316420]
    %v160 = vld.sshfl [vmem:[#allocation1 + $0x28] sm:$0xff pattern:$0x75316420]
    %161 = vrot.lane.b32.xlu0 %v155, 127
    %v162 = vpop.permute.xlu0 %161
    %163 = vrot.lane.b32.xlu0 %v156, 127
    %v164 = vpop.permute.xlu0 %163
    %165 = vrot.lane.b32.xlu0 %v157, 127
    %v166 = vpop.permute.xlu0 %165
    %167 = vrot.lane.b32.xlu0 %v158, 127
    %v168 = vpop.permute.xlu0 %167
    %169 = vrot.lane.b32.xlu0 %v159, 127
    %v170 = vpop.permute.xlu0 %169
    %171 = vrot.lane.b32.xlu0 %v160, 127
    %v172 = vpop.permute.xlu0 %171
    %vm173 = vcmask 1039360
    %v174 = vsel %vm173, %v162, %v164
    %v175 = vsel %vm173, %v164, %v166
    %v176 = vsel %vm173, %v166, %v168
    %v177 = vsel %vm173, %v168, %v170
    %v178 = vsel %vm173, %v170, %v172
    %v180 = vsel %vm173, %v172, 0.0
    %v182 = vrot.slane %v175, 4
    %v183 = vrot.slane %v177, 4
    %v184 = vrot.slane %v180, 4
    %vm185 = vcmask 1043456
    %v186 = vsel %vm185, %v174, %v182
    %v187 = vsel %vm185, %v176, %v183
    %v188 = vsel %vm185, %v178, %v184
    %v192 = vadd.f32 %v46, %v186
    %v193 = vadd.f32 %v47, %v187
    %v194 = vadd.f32 %v48, %v188
    %195 = vst [vmem:[#allocation1] ss:$2 sm:$0xff] %v46
    %s196 = scalar_lea.vmem [#allocation1], 16
    %197 = vst [vmem:[%s196] ss:$2 sm:$0xff] %v47
    %s198 = scalar_lea.vmem [#allocation1], 32
    %199 = vst [vmem:[%s198] ss:$2 sm:$0xff] %v48
    %v200 = vld.sshfl [vmem:[#allocation1] sm:$0xff pattern:$0x75316420]
    %v201 = vld.sshfl [vmem:[#allocation1 + $0x8] sm:$0xff pattern:$0x75316420]
    %v202 = vld.sshfl [vmem:[#allocation1 + $0x10] sm:$0xff pattern:$0x75316420]
    %v203 = vld.sshfl [vmem:[#allocation1 + $0x18] sm:$0xff pattern:$0x75316420]
    %v204 = vld.sshfl [vmem:[#allocation1 + $0x20] sm:$0xff pattern:$0x75316420]
    %v205 = vld.sshfl [vmem:[#allocation1 + $0x28] sm:$0xff pattern:$0x75316420]
    %206 = vrot.lane.b32.xlu0 %v200, 126
    %v207 = vpop.permute.xlu0 %206
    %208 = vrot.lane.b32.xlu0 %v201, 126
    %v209 = vpop.permute.xlu0 %208
    %210 = vrot.lane.b32.xlu0 %v202, 126
    %v211 = vpop.permute.xlu0 %210
    %212 = vrot.lane.b32.xlu0 %v203, 126
    %v213 = vpop.permute.xlu0 %212
    %214 = vrot.lane.b32.xlu0 %v204, 126
    %v215 = vpop.permute.xlu0 %214
    %216 = vrot.lane.b32.xlu0 %v205, 126
    %v217 = vpop.permute.xlu0 %216
    %vm218 = vcmask 1031168
    %v219 = vsel %vm218, %v207, %v209
    %v220 = vsel %vm218, %v209, %v211
    %v221 = vsel %vm218, %v211, %v213
    %v222 = vsel %vm218, %v213, %v215
    %v223 = vsel %vm218, %v215, %v217
    %v225 = vsel %vm218, %v217, 0.0
    %v227 = vrot.slane %v220, 4
    %v228 = vrot.slane %v222, 4
    %v229 = vrot.slane %v225, 4
    %v230 = vsel %vm185, %v219, %v227
    %v231 = vsel %vm185, %v221, %v228
    %v232 = vsel %vm185, %v223, %v229
    %v236 = vadd.f32 %v192, %v230
    %v237 = vadd.f32 %v193, %v231
    %v238 = vadd.f32 %v194, %v232
    %242 = vst [vmem:[#allocation1] ss:$2 sm:$0xff] %v236
    %s243 = scalar_lea.vmem [#allocation1], 16
    %244 = vst [vmem:[%s243] ss:$2 sm:$0xff] %v237
    %s245 = scalar_lea.vmem [#allocation1], 32
    %246 = vst [vmem:[%s245] ss:$2 sm:$0xff] %v238
    %v247 = vld.sshfl [vmem:[#allocation1] sm:$0xff pattern:$0x75316420]
    %v248 = vld.sshfl [vmem:[#allocation1 + $0x8] sm:$0xff pattern:$0x75316420]
    %v249 = vld.sshfl [vmem:[#allocation1 + $0x10] sm:$0xff pattern:$0x75316420]
    %v250 = vld.sshfl [vmem:[#allocation1 + $0x18] sm:$0xff pattern:$0x75316420]
    %v251 = vld.sshfl [vmem:[#allocation1 + $0x20] sm:$0xff pattern:$0x75316420]
    %v252 = vld.sshfl [vmem:[#allocation1 + $0x28] sm:$0xff pattern:$0x75316420]
    %253 = vrot.lane.b32.xlu0 %v247, 110
    %v254 = vpop.permute.xlu0 %253
    %255 = vrot.lane.b32.xlu0 %v248, 110
    %v256 = vpop.permute.xlu0 %255
    %257 = vrot.lane.b32.xlu0 %v249, 110
    %v258 = vpop.permute.xlu0 %257
    %259 = vrot.lane.b32.xlu0 %v250, 110
    %v260 = vpop.permute.xlu0 %259
    %261 = vrot.lane.b32.xlu0 %v251, 110
    %v262 = vpop.permute.xlu0 %261
    %263 = vrot.lane.b32.xlu0 %v252, 110
    %v264 = vpop.permute.xlu0 %263
    %vm265 = vcmask 900096
    %v266 = vsel %vm265, %v254, %v256
    %v267 = vsel %vm265, %v256, %v258
    %v268 = vsel %vm265, %v258, %v260
    %v269 = vsel %vm265, %v260, %v262
    %v270 = vsel %vm265, %v262, %v264
    %v272 = vsel %vm265, %v264, 0.0
    %v274 = vrot.slane %v267, 4
    %v275 = vrot.slane %v269, 4
    %v276 = vrot.slane %v272, 4
    %v277 = vsel %vm185, %v266, %v274
    %v278 = vsel %vm185, %v268, %v275
    %v279 = vsel %vm185, %v270, %v276
    %v283 = vadd.f32 %v236, %v277
    %v284 = vadd.f32 %v237, %v278
    %v285 = vadd.f32 %v238, %v279
    %286 = vst [vmem:[#allocation1] ss:$2 sm:$0xff] %v236
    %s287 = scalar_lea.vmem [#allocation1], 16
    %288 = vst [vmem:[%s287] ss:$2 sm:$0xff] %v237
    %s289 = scalar_lea.vmem [#allocation1], 32
    %290 = vst [vmem:[%s289] ss:$2 sm:$0xff] %v238
    %v291 = vld.sshfl [vmem:[#allocation1] sm:$0xff pattern:$0x75316420]
    %v292 = vld.sshfl [vmem:[#allocation1 + $0x8] sm:$0xff pattern:$0x75316420]
    %v293 = vld.sshfl [vmem:[#allocation1 + $0x10] sm:$0xff pattern:$0x75316420]
    %v294 = vld.sshfl [vmem:[#allocation1 + $0x18] sm:$0xff pattern:$0x75316420]
    %v295 = vld.sshfl [vmem:[#allocation1 + $0x20] sm:$0xff pattern:$0x75316420]
    %v296 = vld.sshfl [vmem:[#allocation1 + $0x28] sm:$0xff pattern:$0x75316420]
    %297 = vrot.lane.b32.xlu0 %v291, 92
    %v298 = vpop.permute.xlu0 %297
    %299 = vrot.lane.b32.xlu0 %v292, 92
    %v300 = vpop.permute.xlu0 %299
    %301 = vrot.lane.b32.xlu0 %v293, 92
    %v302 = vpop.permute.xlu0 %301
    %303 = vrot.lane.b32.xlu0 %v294, 92
    %v304 = vpop.permute.xlu0 %303
    %305 = vrot.lane.b32.xlu0 %v295, 92
    %v306 = vpop.permute.xlu0 %305
    %307 = vrot.lane.b32.xlu0 %v296, 92
    %v308 = vpop.permute.xlu0 %307
    %vm309 = vcmask 752640
    %v310 = vsel %vm309, %v298, %v300
    %v311 = vsel %vm309, %v300, %v302
    %v312 = vsel %vm309, %v302, %v304
    %v313 = vsel %vm309, %v304, %v306
    %v314 = vsel %vm309, %v306, %v308
    %v316 = vsel %vm309, %v308, 0.0
    %v318 = vrot.slane %v311, 4
    %v319 = vrot.slane %v313, 4
    %v320 = vrot.slane %v316, 4
    %v321 = vsel %vm185, %v310, %v318
    %v322 = vsel %vm185, %v312, %v319
    %v323 = vsel %vm185, %v314, %v320
    %v327 = vadd.f32 %v283, %v321
    %v328 = vadd.f32 %v284, %v322
    %v329 = vadd.f32 %v285, %v323
    %333 = vst [vmem:[#allocation1] ss:$2 sm:$0xff] %v327
    %s334 = scalar_lea.vmem [#allocation1], 16
    %335 = vst [vmem:[%s334] ss:$2 sm:$0xff] %v328
    %s336 = scalar_lea.vmem [#allocation1], 32
    %337 = vst [vmem:[%s336] ss:$2 sm:$0xff] %v329
    %v338 = vld.sshfl [vmem:[#allocation1] sm:$0xff pattern:$0x75316420]
    %v339 = vld.sshfl [vmem:[#allocation1 + $0x8] sm:$0xff pattern:$0x75316420]
    %v340 = vld.sshfl [vmem:[#allocation1 + $0x10] sm:$0xff pattern:$0x75316420]
    %v341 = vld.sshfl [vmem:[#allocation1 + $0x18] sm:$0xff pattern:$0x75316420]
    %v342 = vld.sshfl [vmem:[#allocation1 + $0x20] sm:$0xff pattern:$0x75316420]
    %v343 = vld.sshfl [vmem:[#allocation1 + $0x28] sm:$0xff pattern:$0x75316420]
    %350 = vmatpush.msra.mxu0 %v66
    %351 = vmatpush.msra.mxu0 %v65
    %352 = vmatpush.msra.mxu0 %v64
    %353 = vmatpush.msra.mxu0 %v63
    %354 = vmatpush.msra.mxu0 %v62
    %355 = vmatpush.msra.mxu0 %v61
    %356 = vmatpush.msra.mxu0 %v60
    %357 = vmatpush.msra.mxu0 %v59
    %358 = vmatpush.msra.mxu0 %v58
    %359 = vmatpush.msra.mxu0 %v57
    %360 = vmatpush.msra.mxu0 %v56
    %361 = vmatpush.msra.mxu0 %v55
    %362 = vmatpush.msra.mxu0 %v54
    %363 = vmatpush.msra.mxu0 %v53
    %364 = vmatpush.msra.mxu0 %v52
    %365 = vmatpush.msra.mxu0 %v51
    %366 = vmatmul.f32.gmra.mxu0 %v338
    %v367 = vpop.f32.mrf.mxu0
    %v368 = vadd.f32 0.0, %v367
    %369 = vdwg.mxu0
    %370 = vmatpush.msra.mxu0 %v82
    %371 = vmatpush.msra.mxu0 %v81
    %372 = vmatpush.msra.mxu0 %v80
    %373 = vmatpush.msra.mxu0 %v79
    %374 = vmatpush.msra.mxu0 %v78
    %375 = vmatpush.msra.mxu0 %v77
    %376 = vmatpush.msra.mxu0 %v76
    %377 = vmatpush.msra.mxu0 %v75
    %378 = vmatpush.msra.mxu0 %v74
    %379 = vmatpush.msra.mxu0 %v73
    %380 = vmatpush.msra.mxu0 %v72
    %381 = vmatpush.msra.mxu0 %v71
    %382 = vmatpush.msra.mxu0 %v70
    %383 = vmatpush.msra.mxu0 %v69
    %384 = vmatpush.msra.mxu0 %v68
    %385 = vmatpush.msra.mxu0 %v67
    %386 = vmatmul.f32.gmra.mxu0 %v339
    %v387 = vpop.f32.mrf.mxu0
    %v388 = vadd.f32 %v368, %v387
    %389 = vdwg.mxu0
    %390 = vmatpush.msra.mxu0 %v98
    %391 = vmatpush.msra.mxu0 %v97
    %392 = vmatpush.msra.mxu0 %v96
    %393 = vmatpush.msra.mxu0 %v95
    %394 = vmatpush.msra.mxu0 %v94
    %395 = vmatpush.msra.mxu0 %v93
    %396 = vmatpush.msra.mxu0 %v92
    %397 = vmatpush.msra.mxu0 %v91
    %398 = vmatpush.msra.mxu0 %v90
    %399 = vmatpush.msra.mxu0 %v89
    %400 = vmatpush.msra.mxu0 %v88
    %401 = vmatpush.msra.mxu0 %v87
    %402 = vmatpush.msra.mxu0 %v86
    %403 = vmatpush.msra.mxu0 %v85
    %404 = vmatpush.msra.mxu0 %v84
    %405 = vmatpush.msra.mxu0 %v83
    %406 = vmatmul.f32.gmra.mxu0 %v340
    %v407 = vpop.f32.mrf.mxu0
    %v408 = vadd.f32 %v388, %v407
    %409 = vdwg.mxu0
    %410 = vmatpush.msra.mxu0 %v114
    %411 = vmatpush.msra.mxu0 %v113
    %412 = vmatpush.msra.mxu0 %v112
    %413 = vmatpush.msra.mxu0 %v111
    %414 = vmatpush.msra.mxu0 %v110
    %415 = vmatpush.msra.mxu0 %v109
    %416 = vmatpush.msra.mxu0 %v108
    %417 = vmatpush.msra.mxu0 %v107
    %418 = vmatpush.msra.mxu0 %v106
    %419 = vmatpush.msra.mxu0 %v105
    %420 = vmatpush.msra.mxu0 %v104
    %421 = vmatpush.msra.mxu0 %v103
    %422 = vmatpush.msra.mxu0 %v102
    %423 = vmatpush.msra.mxu0 %v101
    %424 = vmatpush.msra.mxu0 %v100
    %425 = vmatpush.msra.mxu0 %v99
    %426 = vmatmul.f32.gmra.mxu0 %v341
    %v427 = vpop.f32.mrf.mxu0
    %v428 = vadd.f32 %v408, %v427
    %429 = vdwg.mxu0
    %430 = vmatpush.msra.mxu0 %v130
    %431 = vmatpush.msra.mxu0 %v129
    %432 = vmatpush.msra.mxu0 %v128
    %433 = vmatpush.msra.mxu0 %v127
    %434 = vmatpush.msra.mxu0 %v126
    %435 = vmatpush.msra.mxu0 %v125
    %436 = vmatpush.msra.mxu0 %v124
    %437 = vmatpush.msra.mxu0 %v123
    %438 = vmatpush.msra.mxu0 %v122
    %439 = vmatpush.msra.mxu0 %v121
    %440 = vmatpush.msra.mxu0 %v120
    %441 = vmatpush.msra.mxu0 %v119
    %442 = vmatpush.msra.mxu0 %v118
    %443 = vmatpush.msra.mxu0 %v117
    %444 = vmatpush.msra.mxu0 %v116
    %445 = vmatpush.msra.mxu0 %v115
    %446 = vmatmul.f32.gmra.mxu0 %v342
    %v447 = vpop.f32.mrf.mxu0
    %v448 = vadd.f32 %v428, %v447
    %449 = vdwg.mxu0
    %450 = vmatpush.msra.mxu0 %v146
    %451 = vmatpush.msra.mxu0 %v145
    %452 = vmatpush.msra.mxu0 %v144
    %453 = vmatpush.msra.mxu0 %v143
    %454 = vmatpush.msra.mxu0 %v142
    %455 = vmatpush.msra.mxu0 %v141
    %456 = vmatpush.msra.mxu0 %v140
    %457 = vmatpush.msra.mxu0 %v139
    %458 = vmatpush.msra.mxu0 %v138
    %459 = vmatpush.msra.mxu0 %v137
    %460 = vmatpush.msra.mxu0 %v136
    %461 = vmatpush.msra.mxu0 %v135
    %462 = vmatpush.msra.mxu0 %v134
    %463 = vmatpush.msra.mxu0 %v133
    %464 = vmatpush.msra.mxu0 %v132
    %465 = vmatpush.msra.mxu0 %v131
    %466 = vmatmul.f32.gmra.mxu0 %v343
    %v467 = vpop.f32.mrf.mxu0
    %v468 = vadd.f32 %v448, %v467
    %469 = vdwg.mxu0
    %v470 = vmul.f32 %v468, 0.11111111
    %471 = vst [vmem:[#allocation1] ss:$2 sm:$0xff] %v46
    %s472 = scalar_lea.vmem [#allocation1], 16
    %473 = vst [vmem:[%s472] ss:$2 sm:$0xff] %v47
    %v474 = vld.sshfl [vmem:[#allocation1] sm:$0xff pattern:$0x75316420]
    %v475 = vld.sshfl [vmem:[#allocation1 + $0x8] sm:$0xff pattern:$0x75316420]
    %v476 = vld.sshfl [vmem:[#allocation1 + $0x10] sm:$0xff pattern:$0x75316420]
    %v480 = vsel %vm185, %v474, 0.0
    %v481 = vsel %vm185, %v475, 0.0
    %v482 = vadd.f32 %v480, %v481
    %v483 = vsel %vm185, %v476, 0.0
    %v484 = vadd.f32 %v482, %v483
    %485 = vadd.xlane.f32.xlu0 %v484
    %v486 = vpop.xlane.xlu0 %485
    %v487 = vmul.f32 %v486, 0.00390625
    %vm488 = vcmp.gt.f32.partialorder %v49, 0.0
    %v491 = vunpack.c.l.s4 839922192
    %v492 = vunpack.c.0.s8 %v491
    %v493 = vperm.slane %v487, %v492
    %v495 = vsub.f32 %v46, %v493
    %v496 = vsub.f32 %v47, %v493
    %v497 = vsel %vm488, 1, 0
    %v498 = vperm.slane %v497, 0
    %v499 = vperm.slane %v497, 1
    %v500 = vperm.slane %v497, 2
    %vm501 = vcmp.eq.s32.totalorder %v498, 1
    %vm502 = vcmp.eq.s32.totalorder %v499, 1
    %vm503 = vcmp.eq.s32.totalorder %v500, 1
    %506 = vst [vmem:[#allocation1] ss:$2 sm:$0xff] %v495
    %s507 = scalar_lea.vmem [#allocation1], 16
    %508 = vst [vmem:[%s507] ss:$2 sm:$0xff] %v496
    %v509 = vld.sshfl [vmem:[#allocation1] sm:$0xff pattern:$0x75316420]
    %v510 = vld.sshfl [vmem:[#allocation1 + $0x8] sm:$0xff pattern:$0x75316420]
    %v511 = vld.sshfl [vmem:[#allocation1 + $0x10] sm:$0xff pattern:$0x75316420]
    %v515 = vsel %vm501, %v509, 0.0
    %v516 = vsel %vm502, %v510, 0.0
    %v517 = vsel %vm503, %v511, 0.0
    %v518 = vmul.f32 %v515, %v515
    %v519 = vmul.f32 %v516, %v516
    %v520 = vmul.f32 %v517, %v517
    %v521 = vsel %vm185, %v518, 0.0
    %v522 = vsel %vm185, %v519, 0.0
    %v523 = vadd.f32 %v521, %v522
    %v524 = vsel %vm185, %v520, 0.0
    %v525 = vadd.f32 %v523, %v524
    %526 = vadd.xlane.f32.xlu0 %v525
    %v527 = vpop.xlane.xlu0 %526
    %v528 = vmul.f32 %v527, 0.00390625
    %v529 = vadd.f32 %v528, 1e-05
    %v530 = vrsqrt.pop %v529
    %v531 = vmul.f32 %v530, %v529
    %v532 = vmul.f32 %v531, %v530
    %v533 = vmul.f32 0.5, %v532
    %v534 = vsub.f32 1.5, %v533
    %v535 = vmul.f32 %v530, %v534
    %vm536 = vweird.f32 %v529
    %vm537 = vweird.f32 %v530
    %vm538 = vmor %vm536, %vm537
    %v539 = vsel %vm538, %v530, %v535
    %v540 = vmul.f32 %v515, %v539
    %v541 = vmul.f32 %v516, %v539
    %v542 = vmul.f32 %v517, %v539
    %543 = vst [vmem:[#allocation1] ss:$2 sm:$0xff] %v47
    %s544 = scalar_lea.vmem [#allocation1], 16
    %545 = vst [vmem:[%s544] ss:$2 sm:$0xff] %v48
    %v546 = vld.sshfl [vmem:[#allocation1 + $0x8] sm:$0xff pattern:$0x75316420]
    %v547 = vld.sshfl [vmem:[#allocation1 + $0x10] sm:$0xff pattern:$0x75316420]
    %v548 = vld.sshfl [vmem:[#allocation1 + $0x18] sm:$0xff pattern:$0x75316420]
    %v552 = vsel %vm185, %v546, 0.0
    %v553 = vsel %vm185, %v547, 0.0
    %v554 = vadd.f32 %v552, %v553
    %v555 = vsel %vm185, %v548, 0.0
    %v556 = vadd.f32 %v554, %v555
    %557 = vadd.xlane.f32.xlu0 %v556
    %v558 = vpop.xlane.xlu0 %557
    %v559 = vmul.f32 %v558, 0.00390625
    %v561 = vrot.slane %v49, 3
    %vm563 = vcmp.gt.f32.partialorder %v561, 0.0
    %v564 = vrot.slane %v47, 4
    %v565 = vrot.slane %v48, 4
    %v566 = vsel %vm185, %v564, %v565
    %v571 = vunpack.c.l.s4 839922192
    %v572 = vunpack.c.0.s8 %v571
    %v573 = vperm.slane %v559, %v572
    %v575 = vsub.f32 %v566, %v573
    %v576 = vsub.f32 %v565, %v573
    %v577 = vsel %vm563, 1, 0
    %v578 = vperm.slane %v577, 0
    %v579 = vperm.slane %v577, 1
    %v580 = vperm.slane %v577, 2
    %vm581 = vcmp.eq.s32.totalorder %v578, 1
    %vm582 = vcmp.eq.s32.totalorder %v579, 1
    %vm583 = vcmp.eq.s32.totalorder %v580, 1
    %586 = vst [vmem:[#allocation1] ss:$2 sm:$0xff] %v575
    %s587 = scalar_lea.vmem [#allocation1], 16
    %588 = vst [vmem:[%s587] ss:$2 sm:$0xff] %v576
    %v589 = vld.sshfl [vmem:[#allocation1] sm:$0xff pattern:$0x75316420]
    %v590 = vld.sshfl [vmem:[#allocation1 + $0x8] sm:$0xff pattern:$0x75316420]
    %v591 = vld.sshfl [vmem:[#allocation1 + $0x10] sm:$0xff pattern:$0x75316420]
    %v595 = vsel %vm581, %v589, 0.0
    %v596 = vsel %vm582, %v590, 0.0
    %v597 = vsel %vm583, %v591, 0.0
    %v598 = vmul.f32 %v595, %v595
    %v599 = vmul.f32 %v596, %v596
    %v600 = vmul.f32 %v597, %v597
    %v601 = vsel %vm185, %v598, 0.0
    %v602 = vsel %vm185, %v599, 0.0
    %v603 = vadd.f32 %v601, %v602
    %v604 = vsel %vm185, %v600, 0.0
    %v605 = vadd.f32 %v603, %v604
    %606 = vadd.xlane.f32.xlu0 %v605
    %v607 = vpop.xlane.xlu0 %606
    %v608 = vmul.f32 %v607, 0.00390625
    %v609 = vadd.f32 %v608, 1e-05
    %v610 = vrsqrt.pop %v609
    %v611 = vmul.f32 %v610, %v609
    %v612 = vmul.f32 %v611, %v610
    %v613 = vmul.f32 0.5, %v612
    %v614 = vsub.f32 1.5, %v613
    %v615 = vmul.f32 %v610, %v614
    %vm616 = vweird.f32 %v609
    %vm617 = vweird.f32 %v610
    %vm618 = vmor %vm616, %vm617
    %v619 = vsel %vm618, %v610, %v615
    %v620 = vmul.f32 %v595, %v619
    %v621 = vmul.f32 %v596, %v619
    %v622 = vmul.f32 %v597, %v619
    %v623 = vld [vmem:[%s1] sm:$0xf]
    %s624 = scalar_lea.vmem %s1, 4
    %v625 = vld [vmem:[%s624] sm:$0xf]
    %632 = vrot.lane.b32.xlu0 %v540, 127
    %v633 = vpop.permute.xlu0 %632
    %634 = vrot.lane.b32.xlu0 %v541, 127
    %v635 = vpop.permute.xlu0 %634
    %636 = vrot.lane.b32.xlu0 %v542, 127
    %v637 = vpop.permute.xlu0 %636
    %638 = vrot.lane.b32.xlu0 %v620, 127
    %v639 = vpop.permute.xlu0 %638
    %640 = vrot.lane.b32.xlu0 %v621, 127
    %v641 = vpop.permute.xlu0 %640
    %642 = vrot.lane.b32.xlu0 %v622, 127
    %v643 = vpop.permute.xlu0 %642
    %v644 = vsel %vm173, %v633, %v635
    %v645 = vsel %vm173, %v635, %v637
    %v646 = vsel %vm173, %v637, %v639
    %v647 = vsel %vm173, %v639, %v641
    %v648 = vsel %vm173, %v641, %v643
    %v650 = vsel %vm173, %v643, 0.0
    %vm651 = vcmask 31744
    %v653 = vsel %vm651, %v625, 0
    %v655 = vsel %vm185, %v644, 0
    %v657 = vsel %vm185, %v645, 0
    %v659 = vsel %vm185, %v646, 0
    %v661 = vsel %vm185, %v647, 0
    %v663 = vsel %vm185, %v648, 0
    %v666 = vsel %vm185, %v650, 0
    %668 = vmatpush.msra.mxu0 0.0
    %669 = vmatpush.msra.mxu0 0.0
    %670 = vmatpush.msra.mxu0 0.0
    %671 = vmatpush.msra.mxu0 0.0
    %672 = vmatpush.msra.mxu0 0.0
    %673 = vmatpush.msra.mxu0 0.0
    %674 = vmatpush.msra.mxu0 0.0
    %675 = vmatpush.msra.mxu0 0.0
    %676 = vmatpush.msra.mxu0 0.0
    %677 = vmatpush.msra.mxu0 0.0
    %678 = vmatpush.msra.mxu0 0.0
    %679 = vmatpush.msra.mxu0 0.0
    %680 = vmatpush.msra.mxu0 0.0
    %681 = vmatpush.msra.mxu0 0.0
    %682 = vmatpush.msra.mxu0 0.0
    %683 = vmatpush.msra.mxu0 %v655
    %684 = vmatmul.f32.gmra.mxu0 %v653
    %v685 = vpop.f32.mrf.mxu0
    %v686 = vadd.f32 0.0, %v685
    %687 = vdwg.mxu0
    %688 = vmatpush.msra.mxu0 0.0
    %689 = vmatpush.msra.mxu0 0.0
    %690 = vmatpush.msra.mxu0 0.0
    %691 = vmatpush.msra.mxu0 0.0
    %692 = vmatpush.msra.mxu0 0.0
    %693 = vmatpush.msra.mxu0 0.0
    %694 = vmatpush.msra.mxu0 0.0
    %695 = vmatpush.msra.mxu0 0.0
    %696 = vmatpush.msra.mxu0 0.0
    %697 = vmatpush.msra.mxu0 0.0
    %698 = vmatpush.msra.mxu0 0.0
    %699 = vmatpush.msra.mxu0 0.0
    %700 = vmatpush.msra.mxu0 0.0
    %701 = vmatpush.msra.mxu0 0.0
    %702 = vmatpush.msra.mxu0 0.0
    %703 = vmatpush.msra.mxu0 %v657
    %704 = vmatmul.f32.gmra.mxu0 %v653
    %v705 = vpop.f32.mrf.mxu0
    %v706 = vadd.f32 0.0, %v705
    %707 = vdwg.mxu0
    %708 = vmatpush.msra.mxu0 0.0
    %709 = vmatpush.msra.mxu0 0.0
    %710 = vmatpush.msra.mxu0 0.0
    %711 = vmatpush.msra.mxu0 0.0
    %712 = vmatpush.msra.mxu0 0.0
    %713 = vmatpush.msra.mxu0 0.0
    %714 = vmatpush.msra.mxu0 0.0
    %715 = vmatpush.msra.mxu0 0.0
    %716 = vmatpush.msra.mxu0 0.0
    %717 = vmatpush.msra.mxu0 0.0
    %718 = vmatpush.msra.mxu0 0.0
    %719 = vmatpush.msra.mxu0 0.0
    %720 = vmatpush.msra.mxu0 0.0
    %721 = vmatpush.msra.mxu0 0.0
    %722 = vmatpush.msra.mxu0 0.0
    %723 = vmatpush.msra.mxu0 %v659
    %724 = vmatmul.f32.gmra.mxu0 %v653
    %v725 = vpop.f32.mrf.mxu0
    %v726 = vadd.f32 0.0, %v725
    %727 = vdwg.mxu0
    %728 = vmatpush.msra.mxu0 0.0
    %729 = vmatpush.msra.mxu0 0.0
    %730 = vmatpush.msra.mxu0 0.0
    %731 = vmatpush.msra.mxu0 0.0
    %732 = vmatpush.msra.mxu0 0.0
    %733 = vmatpush.msra.mxu0 0.0
    %734 = vmatpush.msra.mxu0 0.0
    %735 = vmatpush.msra.mxu0 0.0
    %736 = vmatpush.msra.mxu0 0.0
    %737 = vmatpush.msra.mxu0 0.0
    %738 = vmatpush.msra.mxu0 0.0
    %739 = vmatpush.msra.mxu0 0.0
    %740 = vmatpush.msra.mxu0 0.0
    %741 = vmatpush.msra.mxu0 0.0
    %742 = vmatpush.msra.mxu0 0.0
    %743 = vmatpush.msra.mxu0 %v661
    %744 = vmatmul.f32.gmra.mxu0 %v653
    %v745 = vpop.f32.mrf.mxu0
    %v746 = vadd.f32 0.0, %v745
    %747 = vdwg.mxu0
    %748 = vmatpush.msra.mxu0 0.0
    %749 = vmatpush.msra.mxu0 0.0
    %750 = vmatpush.msra.mxu0 0.0
    %751 = vmatpush.msra.mxu0 0.0
    %752 = vmatpush.msra.mxu0 0.0
    %753 = vmatpush.msra.mxu0 0.0
    %754 = vmatpush.msra.mxu0 0.0
    %755 = vmatpush.msra.mxu0 0.0
    %756 = vmatpush.msra.mxu0 0.0
    %757 = vmatpush.msra.mxu0 0.0
    %758 = vmatpush.msra.mxu0 0.0
    %759 = vmatpush.msra.mxu0 0.0
    %760 = vmatpush.msra.mxu0 0.0
    %761 = vmatpush.msra.mxu0 0.0
    %762 = vmatpush.msra.mxu0 0.0
    %763 = vmatpush.msra.mxu0 %v663
    %764 = vmatmul.f32.gmra.mxu0 %v653
    %v765 = vpop.f32.mrf.mxu0
    %v766 = vadd.f32 0.0, %v765
    %767 = vdwg.mxu0
    %768 = vmatpush.msra.mxu0 0.0
    %769 = vmatpush.msra.mxu0 0.0
    %770 = vmatpush.msra.mxu0 0.0
    %771 = vmatpush.msra.mxu0 0.0
    %772 = vmatpush.msra.mxu0 0.0
    %773 = vmatpush.msra.mxu0 0.0
    %774 = vmatpush.msra.mxu0 0.0
    %775 = vmatpush.msra.mxu0 0.0
    %776 = vmatpush.msra.mxu0 0.0
    %777 = vmatpush.msra.mxu0 0.0
    %778 = vmatpush.msra.mxu0 0.0
    %779 = vmatpush.msra.mxu0 0.0
    %780 = vmatpush.msra.mxu0 0.0
    %781 = vmatpush.msra.mxu0 0.0
    %782 = vmatpush.msra.mxu0 0.0
    %783 = vmatpush.msra.mxu0 %v666
    %784 = vmatmul.f32.gmra.mxu0 %v653
    %v785 = vpop.f32.mrf.mxu0
    %v786 = vadd.f32 0.0, %v785
    %787 = vdwg.mxu0
    %v789 = vsel %vm651, %v623, 0
    %v791 = vsel %vm185, %v540, 0
    %v793 = vsel %vm185, %v541, 0
    %v795 = vsel %vm185, %v542, 0
    %v797 = vsel %vm185, %v620, 0
    %v799 = vsel %vm185, %v621, 0
    %v801 = vsel %vm185, %v622, 0
    %803 = vmatpush.msra.mxu0 0.0
    %804 = vmatpush.msra.mxu0 0.0
    %805 = vmatpush.msra.mxu0 0.0
    %806 = vmatpush.msra.mxu0 0.0
    %807 = vmatpush.msra.mxu0 0.0
    %808 = vmatpush.msra.mxu0 0.0
    %809 = vmatpush.msra.mxu0 0.0
    %810 = vmatpush.msra.mxu0 0.0
    %811 = vmatpush.msra.mxu0 0.0
    %812 = vmatpush.msra.mxu0 0.0
    %813 = vmatpush.msra.mxu0 0.0
    %814 = vmatpush.msra.mxu0 0.0
    %815 = vmatpush.msra.mxu0 0.0
    %816 = vmatpush.msra.mxu0 0.0
    %817 = vmatpush.msra.mxu0 0.0
    %818 = vmatpush.msra.mxu0 %v791
    %819 = vmatmul.f32.gmra.mxu0 %v789
    %v820 = vpop.f32.mrf.mxu0
    %v821 = vadd.f32 %v686, %v820
    %822 = vdwg.mxu0
    %823 = vmatpush.msra.mxu0 0.0
    %824 = vmatpush.msra.mxu0 0.0
    %825 = vmatpush.msra.mxu0 0.0
    %826 = vmatpush.msra.mxu0 0.0
    %827 = vmatpush.msra.mxu0 0.0
    %828 = vmatpush.msra.mxu0 0.0
    %829 = vmatpush.msra.mxu0 0.0
    %830 = vmatpush.msra.mxu0 0.0
    %831 = vmatpush.msra.mxu0 0.0
    %832 = vmatpush.msra.mxu0 0.0
    %833 = vmatpush.msra.mxu0 0.0
    %834 = vmatpush.msra.mxu0 0.0
    %835 = vmatpush.msra.mxu0 0.0
    %836 = vmatpush.msra.mxu0 0.0
    %837 = vmatpush.msra.mxu0 0.0
    %838 = vmatpush.msra.mxu0 %v793
    %839 = vmatmul.f32.gmra.mxu0 %v789
    %v840 = vpop.f32.mrf.mxu0
    %v841 = vadd.f32 %v706, %v840
    %842 = vdwg.mxu0
    %843 = vmatpush.msra.mxu0 0.0
    %844 = vmatpush.msra.mxu0 0.0
    %845 = vmatpush.msra.mxu0 0.0
    %846 = vmatpush.msra.mxu0 0.0
    %847 = vmatpush.msra.mxu0 0.0
    %848 = vmatpush.msra.mxu0 0.0
    %849 = vmatpush.msra.mxu0 0.0
    %850 = vmatpush.msra.mxu0 0.0
    %851 = vmatpush.msra.mxu0 0.0
    %852 = vmatpush.msra.mxu0 0.0
    %853 = vmatpush.msra.mxu0 0.0
    %854 = vmatpush.msra.mxu0 0.0
    %855 = vmatpush.msra.mxu0 0.0
    %856 = vmatpush.msra.mxu0 0.0
    %857 = vmatpush.msra.mxu0 0.0
    %858 = vmatpush.msra.mxu0 %v795
    %859 = vmatmul.f32.gmra.mxu0 %v789
    %v860 = vpop.f32.mrf.mxu0
    %v861 = vadd.f32 %v726, %v860
    %862 = vdwg.mxu0
    %863 = vmatpush.msra.mxu0 0.0
    %864 = vmatpush.msra.mxu0 0.0
    %865 = vmatpush.msra.mxu0 0.0
    %866 = vmatpush.msra.mxu0 0.0
    %867 = vmatpush.msra.mxu0 0.0
    %868 = vmatpush.msra.mxu0 0.0
    %869 = vmatpush.msra.mxu0 0.0
    %870 = vmatpush.msra.mxu0 0.0
    %871 = vmatpush.msra.mxu0 0.0
    %872 = vmatpush.msra.mxu0 0.0
    %873 = vmatpush.msra.mxu0 0.0
    %874 = vmatpush.msra.mxu0 0.0
    %875 = vmatpush.msra.mxu0 0.0
    %876 = vmatpush.msra.mxu0 0.0
    %877 = vmatpush.msra.mxu0 0.0
    %878 = vmatpush.msra.mxu0 %v797
    %879 = vmatmul.f32.gmra.mxu0 %v789
    %v880 = vpop.f32.mrf.mxu0
    %v881 = vadd.f32 %v746, %v880
    %882 = vdwg.mxu0
    %883 = vmatpush.msra.mxu0 0.0
    %884 = vmatpush.msra.mxu0 0.0
    %885 = vmatpush.msra.mxu0 0.0
    %886 = vmatpush.msra.mxu0 0.0
    %887 = vmatpush.msra.mxu0 0.0
    %888 = vmatpush.msra.mxu0 0.0
    %889 = vmatpush.msra.mxu0 0.0
    %890 = vmatpush.msra.mxu0 0.0
    %891 = vmatpush.msra.mxu0 0.0
    %892 = vmatpush.msra.mxu0 0.0
    %893 = vmatpush.msra.mxu0 0.0
    %894 = vmatpush.msra.mxu0 0.0
    %895 = vmatpush.msra.mxu0 0.0
    %896 = vmatpush.msra.mxu0 0.0
    %897 = vmatpush.msra.mxu0 0.0
    %898 = vmatpush.msra.mxu0 %v799
    %899 = vmatmul.f32.gmra.mxu0 %v789
    %v900 = vpop.f32.mrf.mxu0
    %v901 = vadd.f32 %v766, %v900
    %902 = vdwg.mxu0
    %903 = vmatpush.msra.mxu0 0.0
    %904 = vmatpush.msra.mxu0 0.0
    %905 = vmatpush.msra.mxu0 0.0
    %906 = vmatpush.msra.mxu0 0.0
    %907 = vmatpush.msra.mxu0 0.0
    %908 = vmatpush.msra.mxu0 0.0
    %909 = vmatpush.msra.mxu0 0.0
    %910 = vmatpush.msra.mxu0 0.0
    %911 = vmatpush.msra.mxu0 0.0
    %912 = vmatpush.msra.mxu0 0.0
    %913 = vmatpush.msra.mxu0 0.0
    %914 = vmatpush.msra.mxu0 0.0
    %915 = vmatpush.msra.mxu0 0.0
    %916 = vmatpush.msra.mxu0 0.0
    %917 = vmatpush.msra.mxu0 0.0
    %918 = vmatpush.msra.mxu0 %v801
    %919 = vmatmul.f32.gmra.mxu0 %v789
    %v920 = vpop.f32.mrf.mxu0
    %v921 = vadd.f32 %v786, %v920
    %922 = vdwg.mxu0
    %s923 = scalar_lea.vmem %s1, 8
    %v924 = vld [vmem:[%s923] sm:$0xf]
    %925 = vrot.lane.b32.xlu0 %v540, 126
    %v926 = vpop.permute.xlu0 %925
    %927 = vrot.lane.b32.xlu0 %v541, 126
    %v928 = vpop.permute.xlu0 %927
    %929 = vrot.lane.b32.xlu0 %v542, 126
    %v930 = vpop.permute.xlu0 %929
    %931 = vrot.lane.b32.xlu0 %v620, 126
    %v932 = vpop.permute.xlu0 %931
    %933 = vrot.lane.b32.xlu0 %v621, 126
    %v934 = vpop.permute.xlu0 %933
    %935 = vrot.lane.b32.xlu0 %v622, 126
    %v936 = vpop.permute.xlu0 %935
    %v937 = vsel %vm218, %v926, %v928
    %v938 = vsel %vm218, %v928, %v930
    %v939 = vsel %vm218, %v930, %v932
    %v940 = vsel %vm218, %v932, %v934
    %v941 = vsel %vm218, %v934, %v936
    %v943 = vsel %vm218, %v936, 0.0
    %v945 = vsel %vm651, %v924, 0
    %v947 = vsel %vm185, %v937, 0
    %v949 = vsel %vm185, %v938, 0
    %v951 = vsel %vm185, %v939, 0
    %v953 = vsel %vm185, %v940, 0
    %v955 = vsel %vm185, %v941, 0
    %v958 = vsel %vm185, %v943, 0
    %960 = vmatpush.msra.mxu0 0.0
    %961 = vmatpush.msra.mxu0 0.0
    %962 = vmatpush.msra.mxu0 0.0
    %963 = vmatpush.msra.mxu0 0.0
    %964 = vmatpush.msra.mxu0 0.0
    %965 = vmatpush.msra.mxu0 0.0
    %966 = vmatpush.msra.mxu0 0.0
    %967 = vmatpush.msra.mxu0 0.0
    %968 = vmatpush.msra.mxu0 0.0
    %969 = vmatpush.msra.mxu0 0.0
    %970 = vmatpush.msra.mxu0 0.0
    %971 = vmatpush.msra.mxu0 0.0
    %972 = vmatpush.msra.mxu0 0.0
    %973 = vmatpush.msra.mxu0 0.0
    %974 = vmatpush.msra.mxu0 0.0
    %975 = vmatpush.msra.mxu0 %v947
    %976 = vmatmul.f32.gmra.mxu0 %v945
    %v977 = vpop.f32.mrf.mxu0
    %v978 = vadd.f32 0.0, %v977
    %979 = vdwg.mxu0
    %980 = vmatpush.msra.mxu0 0.0
    %981 = vmatpush.msra.mxu0 0.0
    %982 = vmatpush.msra.mxu0 0.0
    %983 = vmatpush.msra.mxu0 0.0
    %984 = vmatpush.msra.mxu0 0.0
    %985 = vmatpush.msra.mxu0 0.0
    %986 = vmatpush.msra.mxu0 0.0
    %987 = vmatpush.msra.mxu0 0.0
    %988 = vmatpush.msra.mxu0 0.0
    %989 = vmatpush.msra.mxu0 0.0
    %990 = vmatpush.msra.mxu0 0.0
    %991 = vmatpush.msra.mxu0 0.0
    %992 = vmatpush.msra.mxu0 0.0
    %993 = vmatpush.msra.mxu0 0.0
    %994 = vmatpush.msra.mxu0 0.0
    %995 = vmatpush.msra.mxu0 %v949
    %996 = vmatmul.f32.gmra.mxu0 %v945
    %v997 = vpop.f32.mrf.mxu0
    %v998 = vadd.f32 0.0, %v997
    %999 = vdwg.mxu0
    %1000 = vmatpush.msra.mxu0 0.0
    %1001 = vmatpush.msra.mxu0 0.0
    %1002 = vmatpush.msra.mxu0 0.0
    %1003 = vmatpush.msra.mxu0 0.0
    %1004 = vmatpush.msra.mxu0 0.0
    %1005 = vmatpush.msra.mxu0 0.0
    %1006 = vmatpush.msra.mxu0 0.0
    %1007 = vmatpush.msra.mxu0 0.0
    %1008 = vmatpush.msra.mxu0 0.0
    %1009 = vmatpush.msra.mxu0 0.0
    %1010 = vmatpush.msra.mxu0 0.0
    %1011 = vmatpush.msra.mxu0 0.0
    %1012 = vmatpush.msra.mxu0 0.0
    %1013 = vmatpush.msra.mxu0 0.0
    %1014 = vmatpush.msra.mxu0 0.0
    %1015 = vmatpush.msra.mxu0 %v951
    %1016 = vmatmul.f32.gmra.mxu0 %v945
    %v1017 = vpop.f32.mrf.mxu0
    %v1018 = vadd.f32 0.0, %v1017
    %1019 = vdwg.mxu0
    %1020 = vmatpush.msra.mxu0 0.0
    %1021 = vmatpush.msra.mxu0 0.0
    %1022 = vmatpush.msra.mxu0 0.0
    %1023 = vmatpush.msra.mxu0 0.0
    %1024 = vmatpush.msra.mxu0 0.0
    %1025 = vmatpush.msra.mxu0 0.0
    %1026 = vmatpush.msra.mxu0 0.0
    %1027 = vmatpush.msra.mxu0 0.0
    %1028 = vmatpush.msra.mxu0 0.0
    %1029 = vmatpush.msra.mxu0 0.0
    %1030 = vmatpush.msra.mxu0 0.0
    %1031 = vmatpush.msra.mxu0 0.0
    %1032 = vmatpush.msra.mxu0 0.0
    %1033 = vmatpush.msra.mxu0 0.0
    %1034 = vmatpush.msra.mxu0 0.0
    %1035 = vmatpush.msra.mxu0 %v953
    %1036 = vmatmul.f32.gmra.mxu0 %v945
    %v1037 = vpop.f32.mrf.mxu0
    %v1038 = vadd.f32 0.0, %v1037
    %1039 = vdwg.mxu0
    %1040 = vmatpush.msra.mxu0 0.0
    %1041 = vmatpush.msra.mxu0 0.0
    %1042 = vmatpush.msra.mxu0 0.0
    %1043 = vmatpush.msra.mxu0 0.0
    %1044 = vmatpush.msra.mxu0 0.0
    %1045 = vmatpush.msra.mxu0 0.0
    %1046 = vmatpush.msra.mxu0 0.0
    %1047 = vmatpush.msra.mxu0 0.0
    %1048 = vmatpush.msra.mxu0 0.0
    %1049 = vmatpush.msra.mxu0 0.0
    %1050 = vmatpush.msra.mxu0 0.0
    %1051 = vmatpush.msra.mxu0 0.0
    %1052 = vmatpush.msra.mxu0 0.0
    %1053 = vmatpush.msra.mxu0 0.0
    %1054 = vmatpush.msra.mxu0 0.0
    %1055 = vmatpush.msra.mxu0 %v955
    %1056 = vmatmul.f32.gmra.mxu0 %v945
    %v1057 = vpop.f32.mrf.mxu0
    %v1058 = vadd.f32 0.0, %v1057
    %1059 = vdwg.mxu0
    %1060 = vmatpush.msra.mxu0 0.0
    %1061 = vmatpush.msra.mxu0 0.0
    %1062 = vmatpush.msra.mxu0 0.0
    %1063 = vmatpush.msra.mxu0 0.0
    %1064 = vmatpush.msra.mxu0 0.0
    %1065 = vmatpush.msra.mxu0 0.0
    %1066 = vmatpush.msra.mxu0 0.0
    %1067 = vmatpush.msra.mxu0 0.0
    %1068 = vmatpush.msra.mxu0 0.0
    %1069 = vmatpush.msra.mxu0 0.0
    %1070 = vmatpush.msra.mxu0 0.0
    %1071 = vmatpush.msra.mxu0 0.0
    %1072 = vmatpush.msra.mxu0 0.0
    %1073 = vmatpush.msra.mxu0 0.0
    %1074 = vmatpush.msra.mxu0 0.0
    %1075 = vmatpush.msra.mxu0 %v958
    %1076 = vmatmul.f32.gmra.mxu0 %v945
    %v1077 = vpop.f32.mrf.mxu0
    %v1078 = vadd.f32 0.0, %v1077
    %1079 = vdwg.mxu0
    %v1080 = vadd.f32 %v821, %v978
    %v1081 = vadd.f32 %v841, %v998
    %v1082 = vadd.f32 %v861, %v1018
    %v1083 = vadd.f32 %v881, %v1038
    %v1084 = vadd.f32 %v901, %v1058
    %v1085 = vadd.f32 %v921, %v1078
    %s1086 = scalar_lea.vmem %s1, 12
    %v1087 = vld [vmem:[%s1086] sm:$0xf]
    %1088 = vrot.lane.b32.xlu0 %v540, 110
    %v1089 = vpop.permute.xlu0 %1088
    %1090 = vrot.lane.b32.xlu0 %v541, 110
    %v1091 = vpop.permute.xlu0 %1090
    %1092 = vrot.lane.b32.xlu0 %v542, 110
    %v1093 = vpop.permute.xlu0 %1092
    %1094 = vrot.lane.b32.xlu0 %v620, 110
    %v1095 = vpop.permute.xlu0 %1094
    %1096 = vrot.lane.b32.xlu0 %v621, 110
    %v1097 = vpop.permute.xlu0 %1096
    %1098 = vrot.lane.b32.xlu0 %v622, 110
    %v1099 = vpop.permute.xlu0 %1098
    %v1100 = vsel %vm265, %v1089, %v1091
    %v1101 = vsel %vm265, %v1091, %v1093
    %v1102 = vsel %vm265, %v1093, %v1095
    %v1103 = vsel %vm265, %v1095, %v1097
    %v1104 = vsel %vm265, %v1097, %v1099
    %v1106 = vsel %vm265, %v1099, 0.0
    %v1108 = vsel %vm651, %v1087, 0
    %v1110 = vsel %vm185, %v1100, 0
    %v1112 = vsel %vm185, %v1101, 0
    %v1114 = vsel %vm185, %v1102, 0
    %v1116 = vsel %vm185, %v1103, 0
    %v1118 = vsel %vm185, %v1104, 0
    %v1121 = vsel %vm185, %v1106, 0
    %1123 = vmatpush.msra.mxu0 0.0
    %1124 = vmatpush.msra.mxu0 0.0
    %1125 = vmatpush.msra.mxu0 0.0
    %1126 = vmatpush.msra.mxu0 0.0
    %1127 = vmatpush.msra.mxu0 0.0
    %1128 = vmatpush.msra.mxu0 0.0
    %1129 = vmatpush.msra.mxu0 0.0
    %1130 = vmatpush.msra.mxu0 0.0
    %1131 = vmatpush.msra.mxu0 0.0
    %1132 = vmatpush.msra.mxu0 0.0
    %1133 = vmatpush.msra.mxu0 0.0
    %1134 = vmatpush.msra.mxu0 0.0
    %1135 = vmatpush.msra.mxu0 0.0
    %1136 = vmatpush.msra.mxu0 0.0
    %1137 = vmatpush.msra.mxu0 0.0
    %1138 = vmatpush.msra.mxu0 %v1110
    %1139 = vmatmul.f32.gmra.mxu0 %v1108
    %v1140 = vpop.f32.mrf.mxu0
    %v1141 = vadd.f32 0.0, %v1140
    %1142 = vdwg.mxu0
    %1143 = vmatpush.msra.mxu0 0.0
    %1144 = vmatpush.msra.mxu0 0.0
    %1145 = vmatpush.msra.mxu0 0.0
    %1146 = vmatpush.msra.mxu0 0.0
    %1147 = vmatpush.msra.mxu0 0.0
    %1148 = vmatpush.msra.mxu0 0.0
    %1149 = vmatpush.msra.mxu0 0.0
    %1150 = vmatpush.msra.mxu0 0.0
    %1151 = vmatpush.msra.mxu0 0.0
    %1152 = vmatpush.msra.mxu0 0.0
    %1153 = vmatpush.msra.mxu0 0.0
    %1154 = vmatpush.msra.mxu0 0.0
    %1155 = vmatpush.msra.mxu0 0.0
    %1156 = vmatpush.msra.mxu0 0.0
    %1157 = vmatpush.msra.mxu0 0.0
    %1158 = vmatpush.msra.mxu0 %v1112
    %1159 = vmatmul.f32.gmra.mxu0 %v1108
    %v1160 = vpop.f32.mrf.mxu0
    %v1161 = vadd.f32 0.0, %v1160
    %1162 = vdwg.mxu0
    %1163 = vmatpush.msra.mxu0 0.0
    %1164 = vmatpush.msra.mxu0 0.0
    %1165 = vmatpush.msra.mxu0 0.0
    %1166 = vmatpush.msra.mxu0 0.0
    %1167 = vmatpush.msra.mxu0 0.0
    %1168 = vmatpush.msra.mxu0 0.0
    %1169 = vmatpush.msra.mxu0 0.0
    %1170 = vmatpush.msra.mxu0 0.0
    %1171 = vmatpush.msra.mxu0 0.0
    %1172 = vmatpush.msra.mxu0 0.0
    %1173 = vmatpush.msra.mxu0 0.0
    %1174 = vmatpush.msra.mxu0 0.0
    %1175 = vmatpush.msra.mxu0 0.0
    %1176 = vmatpush.msra.mxu0 0.0
    %1177 = vmatpush.msra.mxu0 0.0
    %1178 = vmatpush.msra.mxu0 %v1114
    %1179 = vmatmul.f32.gmra.mxu0 %v1108
    %v1180 = vpop.f32.mrf.mxu0
    %v1181 = vadd.f32 0.0, %v1180
    %1182 = vdwg.mxu0
    %1183 = vmatpush.msra.mxu0 0.0
    %1184 = vmatpush.msra.mxu0 0.0
    %1185 = vmatpush.msra.mxu0 0.0
    %1186 = vmatpush.msra.mxu0 0.0
    %1187 = vmatpush.msra.mxu0 0.0
    %1188 = vmatpush.msra.mxu0 0.0
    %1189 = vmatpush.msra.mxu0 0.0
    %1190 = vmatpush.msra.mxu0 0.0
    %1191 = vmatpush.msra.mxu0 0.0
    %1192 = vmatpush.msra.mxu0 0.0
    %1193 = vmatpush.msra.mxu0 0.0
    %1194 = vmatpush.msra.mxu0 0.0
    %1195 = vmatpush.msra.mxu0 0.0
    %1196 = vmatpush.msra.mxu0 0.0
    %1197 = vmatpush.msra.mxu0 0.0
    %1198 = vmatpush.msra.mxu0 %v1116
    %1199 = vmatmul.f32.gmra.mxu0 %v1108
    %v1200 = vpop.f32.mrf.mxu0
    %v1201 = vadd.f32 0.0, %v1200
    %1202 = vdwg.mxu0
    %1203 = vmatpush.msra.mxu0 0.0
    %1204 = vmatpush.msra.mxu0 0.0
    %1205 = vmatpush.msra.mxu0 0.0
    %1206 = vmatpush.msra.mxu0 0.0
    %1207 = vmatpush.msra.mxu0 0.0
    %1208 = vmatpush.msra.mxu0 0.0
    %1209 = vmatpush.msra.mxu0 0.0
    %1210 = vmatpush.msra.mxu0 0.0
    %1211 = vmatpush.msra.mxu0 0.0
    %1212 = vmatpush.msra.mxu0 0.0
    %1213 = vmatpush.msra.mxu0 0.0
    %1214 = vmatpush.msra.mxu0 0.0
    %1215 = vmatpush.msra.mxu0 0.0
    %1216 = vmatpush.msra.mxu0 0.0
    %1217 = vmatpush.msra.mxu0 0.0
    %1218 = vmatpush.msra.mxu0 %v1118
    %1219 = vmatmul.f32.gmra.mxu0 %v1108
    %v1220 = vpop.f32.mrf.mxu0
    %v1221 = vadd.f32 0.0, %v1220
    %1222 = vdwg.mxu0
    %1223 = vmatpush.msra.mxu0 0.0
    %1224 = vmatpush.msra.mxu0 0.0
    %1225 = vmatpush.msra.mxu0 0.0
    %1226 = vmatpush.msra.mxu0 0.0
    %1227 = vmatpush.msra.mxu0 0.0
    %1228 = vmatpush.msra.mxu0 0.0
    %1229 = vmatpush.msra.mxu0 0.0
    %1230 = vmatpush.msra.mxu0 0.0
    %1231 = vmatpush.msra.mxu0 0.0
    %1232 = vmatpush.msra.mxu0 0.0
    %1233 = vmatpush.msra.mxu0 0.0
    %1234 = vmatpush.msra.mxu0 0.0
    %1235 = vmatpush.msra.mxu0 0.0
    %1236 = vmatpush.msra.mxu0 0.0
    %1237 = vmatpush.msra.mxu0 0.0
    %1238 = vmatpush.msra.mxu0 %v1121
    %1239 = vmatmul.f32.gmra.mxu0 %v1108
    %v1240 = vpop.f32.mrf.mxu0
    %v1241 = vadd.f32 0.0, %v1240
    %1242 = vdwg.mxu0
    %v1243 = vadd.f32 %v1080, %v1141
    %v1244 = vadd.f32 %v1081, %v1161
    %v1245 = vadd.f32 %v1082, %v1181
    %v1246 = vadd.f32 %v1083, %v1201
    %v1247 = vadd.f32 %v1084, %v1221
    %v1248 = vadd.f32 %v1085, %v1241
    %s1249 = scalar_lea.vmem %s1, 16
    %v1250 = vld [vmem:[%s1249] sm:$0xf]
    %1251 = vrot.lane.b32.xlu0 %v540, 109
    %v1252 = vpop.permute.xlu0 %1251
    %1253 = vrot.lane.b32.xlu0 %v541, 109
    %v1254 = vpop.permute.xlu0 %1253
    %1255 = vrot.lane.b32.xlu0 %v542, 109
    %v1256 = vpop.permute.xlu0 %1255
    %1257 = vrot.lane.b32.xlu0 %v620, 109
    %v1258 = vpop.permute.xlu0 %1257
    %1259 = vrot.lane.b32.xlu0 %v621, 109
    %v1260 = vpop.permute.xlu0 %1259
    %1261 = vrot.lane.b32.xlu0 %v622, 109
    %v1262 = vpop.permute.xlu0 %1261
    %vm1263 = vcmask 891904
    %v1264 = vsel %vm1263, %v1252, %v1254
    %v1265 = vsel %vm1263, %v1254, %v1256
    %v1266 = vsel %vm1263, %v1256, %v1258
    %v1267 = vsel %vm1263, %v1258, %v1260
    %v1268 = vsel %vm1263, %v1260, %v1262
    %v1270 = vsel %vm1263, %v1262, 0.0
    %v1272 = vsel %vm651, %v1250, 0
    %v1274 = vsel %vm185, %v1264, 0
    %v1276 = vsel %vm185, %v1265, 0
    %v1278 = vsel %vm185, %v1266, 0
    %v1280 = vsel %vm185, %v1267, 0
    %v1282 = vsel %vm185, %v1268, 0
    %v1285 = vsel %vm185, %v1270, 0
    %1287 = vmatpush.msra.mxu0 0.0
    %1288 = vmatpush.msra.mxu0 0.0
    %1289 = vmatpush.msra.mxu0 0.0
    %1290 = vmatpush.msra.mxu0 0.0
    %1291 = vmatpush.msra.mxu0 0.0
    %1292 = vmatpush.msra.mxu0 0.0
    %1293 = vmatpush.msra.mxu0 0.0
    %1294 = vmatpush.msra.mxu0 0.0
    %1295 = vmatpush.msra.mxu0 0.0
    %1296 = vmatpush.msra.mxu0 0.0
    %1297 = vmatpush.msra.mxu0 0.0
    %1298 = vmatpush.msra.mxu0 0.0
    %1299 = vmatpush.msra.mxu0 0.0
    %1300 = vmatpush.msra.mxu0 0.0
    %1301 = vmatpush.msra.mxu0 0.0
    %1302 = vmatpush.msra.mxu0 %v1274
    %1303 = vmatmul.f32.gmra.mxu0 %v1272
    %v1304 = vpop.f32.mrf.mxu0
    %v1305 = vadd.f32 0.0, %v1304
    %1306 = vdwg.mxu0
    %1307 = vmatpush.msra.mxu0 0.0
    %1308 = vmatpush.msra.mxu0 0.0
    %1309 = vmatpush.msra.mxu0 0.0
    %1310 = vmatpush.msra.mxu0 0.0
    %1311 = vmatpush.msra.mxu0 0.0
    %1312 = vmatpush.msra.mxu0 0.0
    %1313 = vmatpush.msra.mxu0 0.0
    %1314 = vmatpush.msra.mxu0 0.0
    %1315 = vmatpush.msra.mxu0 0.0
    %1316 = vmatpush.msra.mxu0 0.0
    %1317 = vmatpush.msra.mxu0 0.0
    %1318 = vmatpush.msra.mxu0 0.0
    %1319 = vmatpush.msra.mxu0 0.0
    %1320 = vmatpush.msra.mxu0 0.0
    %1321 = vmatpush.msra.mxu0 0.0
    %1322 = vmatpush.msra.mxu0 %v1276
    %1323 = vmatmul.f32.gmra.mxu0 %v1272
    %v1324 = vpop.f32.mrf.mxu0
    %v1325 = vadd.f32 0.0, %v1324
    %1326 = vdwg.mxu0
    %1327 = vmatpush.msra.mxu0 0.0
    %1328 = vmatpush.msra.mxu0 0.0
    %1329 = vmatpush.msra.mxu0 0.0
    %1330 = vmatpush.msra.mxu0 0.0
    %1331 = vmatpush.msra.mxu0 0.0
    %1332 = vmatpush.msra.mxu0 0.0
    %1333 = vmatpush.msra.mxu0 0.0
    %1334 = vmatpush.msra.mxu0 0.0
    %1335 = vmatpush.msra.mxu0 0.0
    %1336 = vmatpush.msra.mxu0 0.0
    %1337 = vmatpush.msra.mxu0 0.0
    %1338 = vmatpush.msra.mxu0 0.0
    %1339 = vmatpush.msra.mxu0 0.0
    %1340 = vmatpush.msra.mxu0 0.0
    %1341 = vmatpush.msra.mxu0 0.0
    %1342 = vmatpush.msra.mxu0 %v1278
    %1343 = vmatmul.f32.gmra.mxu0 %v1272
    %v1344 = vpop.f32.mrf.mxu0
    %v1345 = vadd.f32 0.0, %v1344
    %1346 = vdwg.mxu0
    %1347 = vmatpush.msra.mxu0 0.0
    %1348 = vmatpush.msra.mxu0 0.0
    %1349 = vmatpush.msra.mxu0 0.0
    %1350 = vmatpush.msra.mxu0 0.0
    %1351 = vmatpush.msra.mxu0 0.0
    %1352 = vmatpush.msra.mxu0 0.0
    %1353 = vmatpush.msra.mxu0 0.0
    %1354 = vmatpush.msra.mxu0 0.0
    %1355 = vmatpush.msra.mxu0 0.0
    %1356 = vmatpush.msra.mxu0 0.0
    %1357 = vmatpush.msra.mxu0 0.0
    %1358 = vmatpush.msra.mxu0 0.0
    %1359 = vmatpush.msra.mxu0 0.0
    %1360 = vmatpush.msra.mxu0 0.0
    %1361 = vmatpush.msra.mxu0 0.0
    %1362 = vmatpush.msra.mxu0 %v1280
    %1363 = vmatmul.f32.gmra.mxu0 %v1272
    %v1364 = vpop.f32.mrf.mxu0
    %v1365 = vadd.f32 0.0, %v1364
    %1366 = vdwg.mxu0
    %1367 = vmatpush.msra.mxu0 0.0
    %1368 = vmatpush.msra.mxu0 0.0
    %1369 = vmatpush.msra.mxu0 0.0
    %1370 = vmatpush.msra.mxu0 0.0
    %1371 = vmatpush.msra.mxu0 0.0
    %1372 = vmatpush.msra.mxu0 0.0
    %1373 = vmatpush.msra.mxu0 0.0
    %1374 = vmatpush.msra.mxu0 0.0
    %1375 = vmatpush.msra.mxu0 0.0
    %1376 = vmatpush.msra.mxu0 0.0
    %1377 = vmatpush.msra.mxu0 0.0
    %1378 = vmatpush.msra.mxu0 0.0
    %1379 = vmatpush.msra.mxu0 0.0
    %1380 = vmatpush.msra.mxu0 0.0
    %1381 = vmatpush.msra.mxu0 0.0
    %1382 = vmatpush.msra.mxu0 %v1282
    %1383 = vmatmul.f32.gmra.mxu0 %v1272
    %v1384 = vpop.f32.mrf.mxu0
    %v1385 = vadd.f32 0.0, %v1384
    %1386 = vdwg.mxu0
    %1387 = vmatpush.msra.mxu0 0.0
    %1388 = vmatpush.msra.mxu0 0.0
    %1389 = vmatpush.msra.mxu0 0.0
    %1390 = vmatpush.msra.mxu0 0.0
    %1391 = vmatpush.msra.mxu0 0.0
    %1392 = vmatpush.msra.mxu0 0.0
    %1393 = vmatpush.msra.mxu0 0.0
    %1394 = vmatpush.msra.mxu0 0.0
    %1395 = vmatpush.msra.mxu0 0.0
    %1396 = vmatpush.msra.mxu0 0.0
    %1397 = vmatpush.msra.mxu0 0.0
    %1398 = vmatpush.msra.mxu0 0.0
    %1399 = vmatpush.msra.mxu0 0.0
    %1400 = vmatpush.msra.mxu0 0.0
    %1401 = vmatpush.msra.mxu0 0.0
    %1402 = vmatpush.msra.mxu0 %v1285
    %1403 = vmatmul.f32.gmra.mxu0 %v1272
    %v1404 = vpop.f32.mrf.mxu0
    %v1405 = vadd.f32 0.0, %v1404
    %1406 = vdwg.mxu0
    %v1407 = vadd.f32 %v1243, %v1305
    %v1408 = vadd.f32 %v1244, %v1325
    %v1409 = vadd.f32 %v1245, %v1345
    %v1410 = vadd.f32 %v1246, %v1365
    %v1411 = vadd.f32 %v1247, %v1385
    %v1412 = vadd.f32 %v1248, %v1405
    %s1413 = scalar_lea.vmem %s1, 20
    %v1414 = vld [vmem:[%s1413] sm:$0xf]
    %1415 = vrot.lane.b32.xlu0 %v540, 108
    %v1416 = vpop.permute.xlu0 %1415
    %1417 = vrot.lane.b32.xlu0 %v541, 108
    %v1418 = vpop.permute.xlu0 %1417
    %1419 = vrot.lane.b32.xlu0 %v542, 108
    %v1420 = vpop.permute.xlu0 %1419
    %1421 = vrot.lane.b32.xlu0 %v620, 108
    %v1422 = vpop.permute.xlu0 %1421
    %1423 = vrot.lane.b32.xlu0 %v621, 108
    %v1424 = vpop.permute.xlu0 %1423
    %1425 = vrot.lane.b32.xlu0 %v622, 108
    %v1426 = vpop.permute.xlu0 %1425
    %vm1427 = vcmask 883712
    %v1428 = vsel %vm1427, %v1416, %v1418
    %v1429 = vsel %vm1427, %v1418, %v1420
    %v1430 = vsel %vm1427, %v1420, %v1422
    %v1431 = vsel %vm1427, %v1422, %v1424
    %v1432 = vsel %vm1427, %v1424, %v1426
    %v1434 = vsel %vm1427, %v1426, 0.0
    %v1436 = vsel %vm651, %v1414, 0
    %v1438 = vsel %vm185, %v1428, 0
    %v1440 = vsel %vm185, %v1429, 0
    %v1442 = vsel %vm185, %v1430, 0
    %v1444 = vsel %vm185, %v1431, 0
    %v1446 = vsel %vm185, %v1432, 0
    %v1449 = vsel %vm185, %v1434, 0
    %1451 = vmatpush.msra.mxu0 0.0
    %1452 = vmatpush.msra.mxu0 0.0
    %1453 = vmatpush.msra.mxu0 0.0
    %1454 = vmatpush.msra.mxu0 0.0
    %1455 = vmatpush.msra.mxu0 0.0
    %1456 = vmatpush.msra.mxu0 0.0
    %1457 = vmatpush.msra.mxu0 0.0
    %1458 = vmatpush.msra.mxu0 0.0
    %1459 = vmatpush.msra.mxu0 0.0
    %1460 = vmatpush.msra.mxu0 0.0
    %1461 = vmatpush.msra.mxu0 0.0
    %1462 = vmatpush.msra.mxu0 0.0
    %1463 = vmatpush.msra.mxu0 0.0
    %1464 = vmatpush.msra.mxu0 0.0
    %1465 = vmatpush.msra.mxu0 0.0
    %1466 = vmatpush.msra.mxu0 %v1438
    %1467 = vmatmul.f32.gmra.mxu0 %v1436
    %v1468 = vpop.f32.mrf.mxu0
    %v1469 = vadd.f32 0.0, %v1468
    %1470 = vdwg.mxu0
    %1471 = vmatpush.msra.mxu0 0.0
    %1472 = vmatpush.msra.mxu0 0.0
    %1473 = vmatpush.msra.mxu0 0.0
    %1474 = vmatpush.msra.mxu0 0.0
    %1475 = vmatpush.msra.mxu0 0.0
    %1476 = vmatpush.msra.mxu0 0.0
    %1477 = vmatpush.msra.mxu0 0.0
    %1478 = vmatpush.msra.mxu0 0.0
    %1479 = vmatpush.msra.mxu0 0.0
    %1480 = vmatpush.msra.mxu0 0.0
    %1481 = vmatpush.msra.mxu0 0.0
    %1482 = vmatpush.msra.mxu0 0.0
    %1483 = vmatpush.msra.mxu0 0.0
    %1484 = vmatpush.msra.mxu0 0.0
    %1485 = vmatpush.msra.mxu0 0.0
    %1486 = vmatpush.msra.mxu0 %v1440
    %1487 = vmatmul.f32.gmra.mxu0 %v1436
    %v1488 = vpop.f32.mrf.mxu0
    %v1489 = vadd.f32 0.0, %v1488
    %1490 = vdwg.mxu0
    %1491 = vmatpush.msra.mxu0 0.0
    %1492 = vmatpush.msra.mxu0 0.0
    %1493 = vmatpush.msra.mxu0 0.0
    %1494 = vmatpush.msra.mxu0 0.0
    %1495 = vmatpush.msra.mxu0 0.0
    %1496 = vmatpush.msra.mxu0 0.0
    %1497 = vmatpush.msra.mxu0 0.0
    %1498 = vmatpush.msra.mxu0 0.0
    %1499 = vmatpush.msra.mxu0 0.0
    %1500 = vmatpush.msra.mxu0 0.0
    %1501 = vmatpush.msra.mxu0 0.0
    %1502 = vmatpush.msra.mxu0 0.0
    %1503 = vmatpush.msra.mxu0 0.0
    %1504 = vmatpush.msra.mxu0 0.0
    %1505 = vmatpush.msra.mxu0 0.0
    %1506 = vmatpush.msra.mxu0 %v1442
    %1507 = vmatmul.f32.gmra.mxu0 %v1436
    %v1508 = vpop.f32.mrf.mxu0
    %v1509 = vadd.f32 0.0, %v1508
    %1510 = vdwg.mxu0
    %1511 = vmatpush.msra.mxu0 0.0
    %1512 = vmatpush.msra.mxu0 0.0
    %1513 = vmatpush.msra.mxu0 0.0
    %1514 = vmatpush.msra.mxu0 0.0
    %1515 = vmatpush.msra.mxu0 0.0
    %1516 = vmatpush.msra.mxu0 0.0
    %1517 = vmatpush.msra.mxu0 0.0
    %1518 = vmatpush.msra.mxu0 0.0
    %1519 = vmatpush.msra.mxu0 0.0
    %1520 = vmatpush.msra.mxu0 0.0
    %1521 = vmatpush.msra.mxu0 0.0
    %1522 = vmatpush.msra.mxu0 0.0
    %1523 = vmatpush.msra.mxu0 0.0
    %1524 = vmatpush.msra.mxu0 0.0
    %1525 = vmatpush.msra.mxu0 0.0
    %1526 = vmatpush.msra.mxu0 %v1444
    %1527 = vmatmul.f32.gmra.mxu0 %v1436
    %v1528 = vpop.f32.mrf.mxu0
    %v1529 = vadd.f32 0.0, %v1528
    %1530 = vdwg.mxu0
    %1531 = vmatpush.msra.mxu0 0.0
    %1532 = vmatpush.msra.mxu0 0.0
    %1533 = vmatpush.msra.mxu0 0.0
    %1534 = vmatpush.msra.mxu0 0.0
    %1535 = vmatpush.msra.mxu0 0.0
    %1536 = vmatpush.msra.mxu0 0.0
    %1537 = vmatpush.msra.mxu0 0.0
    %1538 = vmatpush.msra.mxu0 0.0
    %1539 = vmatpush.msra.mxu0 0.0
    %1540 = vmatpush.msra.mxu0 0.0
    %1541 = vmatpush.msra.mxu0 0.0
    %1542 = vmatpush.msra.mxu0 0.0
    %1543 = vmatpush.msra.mxu0 0.0
    %1544 = vmatpush.msra.mxu0 0.0
    %1545 = vmatpush.msra.mxu0 0.0
    %1546 = vmatpush.msra.mxu0 %v1446
    %1547 = vmatmul.f32.gmra.mxu0 %v1436
    %v1548 = vpop.f32.mrf.mxu0
    %v1549 = vadd.f32 0.0, %v1548
    %1550 = vdwg.mxu0
    %1551 = vmatpush.msra.mxu0 0.0
    %1552 = vmatpush.msra.mxu0 0.0
    %1553 = vmatpush.msra.mxu0 0.0
    %1554 = vmatpush.msra.mxu0 0.0
    %1555 = vmatpush.msra.mxu0 0.0
    %1556 = vmatpush.msra.mxu0 0.0
    %1557 = vmatpush.msra.mxu0 0.0
    %1558 = vmatpush.msra.mxu0 0.0
    %1559 = vmatpush.msra.mxu0 0.0
    %1560 = vmatpush.msra.mxu0 0.0
    %1561 = vmatpush.msra.mxu0 0.0
    %1562 = vmatpush.msra.mxu0 0.0
    %1563 = vmatpush.msra.mxu0 0.0
    %1564 = vmatpush.msra.mxu0 0.0
    %1565 = vmatpush.msra.mxu0 0.0
    %1566 = vmatpush.msra.mxu0 %v1449
    %1567 = vmatmul.f32.gmra.mxu0 %v1436
    %v1568 = vpop.f32.mrf.mxu0
    %v1569 = vadd.f32 0.0, %v1568
    %1570 = vdwg.mxu0
    %v1571 = vadd.f32 %v1407, %v1469
    %v1572 = vadd.f32 %v1408, %v1489
    %v1573 = vadd.f32 %v1409, %v1509
    %v1574 = vadd.f32 %v1410, %v1529
    %v1575 = vadd.f32 %v1411, %v1549
    %v1576 = vadd.f32 %v1412, %v1569
    %s1577 = scalar_lea.vmem %s1, 24
    %v1578 = vld [vmem:[%s1577] sm:$0xf]
    %1579 = vrot.lane.b32.xlu0 %v540, 92
    %v1580 = vpop.permute.xlu0 %1579
    %1581 = vrot.lane.b32.xlu0 %v541, 92
    %v1582 = vpop.permute.xlu0 %1581
    %1583 = vrot.lane.b32.xlu0 %v542, 92
    %v1584 = vpop.permute.xlu0 %1583
    %1585 = vrot.lane.b32.xlu0 %v620, 92
    %v1586 = vpop.permute.xlu0 %1585
    %1587 = vrot.lane.b32.xlu0 %v621, 92
    %v1588 = vpop.permute.xlu0 %1587
    %1589 = vrot.lane.b32.xlu0 %v622, 92
    %v1590 = vpop.permute.xlu0 %1589
    %v1591 = vsel %vm309, %v1580, %v1582
    %v1592 = vsel %vm309, %v1582, %v1584
    %v1593 = vsel %vm309, %v1584, %v1586
    %v1594 = vsel %vm309, %v1586, %v1588
    %v1595 = vsel %vm309, %v1588, %v1590
    %v1597 = vsel %vm309, %v1590, 0.0
    %v1599 = vsel %vm651, %v1578, 0
    %v1601 = vsel %vm185, %v1591, 0
    %v1603 = vsel %vm185, %v1592, 0
    %v1605 = vsel %vm185, %v1593, 0
    %v1607 = vsel %vm185, %v1594, 0
    %v1609 = vsel %vm185, %v1595, 0
    %v1612 = vsel %vm185, %v1597, 0
    %1614 = vmatpush.msra.mxu0 0.0
    %1615 = vmatpush.msra.mxu0 0.0
    %1616 = vmatpush.msra.mxu0 0.0
    %1617 = vmatpush.msra.mxu0 0.0
    %1618 = vmatpush.msra.mxu0 0.0
    %1619 = vmatpush.msra.mxu0 0.0
    %1620 = vmatpush.msra.mxu0 0.0
    %1621 = vmatpush.msra.mxu0 0.0
    %1622 = vmatpush.msra.mxu0 0.0
    %1623 = vmatpush.msra.mxu0 0.0
    %1624 = vmatpush.msra.mxu0 0.0
    %1625 = vmatpush.msra.mxu0 0.0
    %1626 = vmatpush.msra.mxu0 0.0
    %1627 = vmatpush.msra.mxu0 0.0
    %1628 = vmatpush.msra.mxu0 0.0
    %1629 = vmatpush.msra.mxu0 %v1601
    %1630 = vmatmul.f32.gmra.mxu0 %v1599
    %v1631 = vpop.f32.mrf.mxu0
    %v1632 = vadd.f32 0.0, %v1631
    %1633 = vdwg.mxu0
    %1634 = vmatpush.msra.mxu0 0.0
    %1635 = vmatpush.msra.mxu0 0.0
    %1636 = vmatpush.msra.mxu0 0.0
    %1637 = vmatpush.msra.mxu0 0.0
    %1638 = vmatpush.msra.mxu0 0.0
    %1639 = vmatpush.msra.mxu0 0.0
    %1640 = vmatpush.msra.mxu0 0.0
    %1641 = vmatpush.msra.mxu0 0.0
    %1642 = vmatpush.msra.mxu0 0.0
    %1643 = vmatpush.msra.mxu0 0.0
    %1644 = vmatpush.msra.mxu0 0.0
    %1645 = vmatpush.msra.mxu0 0.0
    %1646 = vmatpush.msra.mxu0 0.0
    %1647 = vmatpush.msra.mxu0 0.0
    %1648 = vmatpush.msra.mxu0 0.0
    %1649 = vmatpush.msra.mxu0 %v1603
    %1650 = vmatmul.f32.gmra.mxu0 %v1599
    %v1651 = vpop.f32.mrf.mxu0
    %v1652 = vadd.f32 0.0, %v1651
    %1653 = vdwg.mxu0
    %1654 = vmatpush.msra.mxu0 0.0
    %1655 = vmatpush.msra.mxu0 0.0
    %1656 = vmatpush.msra.mxu0 0.0
    %1657 = vmatpush.msra.mxu0 0.0
    %1658 = vmatpush.msra.mxu0 0.0
    %1659 = vmatpush.msra.mxu0 0.0
    %1660 = vmatpush.msra.mxu0 0.0
    %1661 = vmatpush.msra.mxu0 0.0
    %1662 = vmatpush.msra.mxu0 0.0
    %1663 = vmatpush.msra.mxu0 0.0
    %1664 = vmatpush.msra.mxu0 0.0
    %1665 = vmatpush.msra.mxu0 0.0
    %1666 = vmatpush.msra.mxu0 0.0
    %1667 = vmatpush.msra.mxu0 0.0
    %1668 = vmatpush.msra.mxu0 0.0
    %1669 = vmatpush.msra.mxu0 %v1605
    %1670 = vmatmul.f32.gmra.mxu0 %v1599
    %v1671 = vpop.f32.mrf.mxu0
    %v1672 = vadd.f32 0.0, %v1671
    %1673 = vdwg.mxu0
    %1674 = vmatpush.msra.mxu0 0.0
    %1675 = vmatpush.msra.mxu0 0.0
    %1676 = vmatpush.msra.mxu0 0.0
    %1677 = vmatpush.msra.mxu0 0.0
    %1678 = vmatpush.msra.mxu0 0.0
    %1679 = vmatpush.msra.mxu0 0.0
    %1680 = vmatpush.msra.mxu0 0.0
    %1681 = vmatpush.msra.mxu0 0.0
    %1682 = vmatpush.msra.mxu0 0.0
    %1683 = vmatpush.msra.mxu0 0.0
    %1684 = vmatpush.msra.mxu0 0.0
    %1685 = vmatpush.msra.mxu0 0.0
    %1686 = vmatpush.msra.mxu0 0.0
    %1687 = vmatpush.msra.mxu0 0.0
    %1688 = vmatpush.msra.mxu0 0.0
    %1689 = vmatpush.msra.mxu0 %v1607
    %1690 = vmatmul.f32.gmra.mxu0 %v1599
    %v1691 = vpop.f32.mrf.mxu0
    %v1692 = vadd.f32 0.0, %v1691
    %1693 = vdwg.mxu0
    %1694 = vmatpush.msra.mxu0 0.0
    %1695 = vmatpush.msra.mxu0 0.0
    %1696 = vmatpush.msra.mxu0 0.0
    %1697 = vmatpush.msra.mxu0 0.0
    %1698 = vmatpush.msra.mxu0 0.0
    %1699 = vmatpush.msra.mxu0 0.0
    %1700 = vmatpush.msra.mxu0 0.0
    %1701 = vmatpush.msra.mxu0 0.0
    %1702 = vmatpush.msra.mxu0 0.0
    %1703 = vmatpush.msra.mxu0 0.0
    %1704 = vmatpush.msra.mxu0 0.0
    %1705 = vmatpush.msra.mxu0 0.0
    %1706 = vmatpush.msra.mxu0 0.0
    %1707 = vmatpush.msra.mxu0 0.0
    %1708 = vmatpush.msra.mxu0 0.0
    %1709 = vmatpush.msra.mxu0 %v1609
    %1710 = vmatmul.f32.gmra.mxu0 %v1599
    %v1711 = vpop.f32.mrf.mxu0
    %v1712 = vadd.f32 0.0, %v1711
    %1713 = vdwg.mxu0
    %1714 = vmatpush.msra.mxu0 0.0
    %1715 = vmatpush.msra.mxu0 0.0
    %1716 = vmatpush.msra.mxu0 0.0
    %1717 = vmatpush.msra.mxu0 0.0
    %1718 = vmatpush.msra.mxu0 0.0
    %1719 = vmatpush.msra.mxu0 0.0
    %1720 = vmatpush.msra.mxu0 0.0
    %1721 = vmatpush.msra.mxu0 0.0
    %1722 = vmatpush.msra.mxu0 0.0
    %1723 = vmatpush.msra.mxu0 0.0
    %1724 = vmatpush.msra.mxu0 0.0
    %1725 = vmatpush.msra.mxu0 0.0
    %1726 = vmatpush.msra.mxu0 0.0
    %1727 = vmatpush.msra.mxu0 0.0
    %1728 = vmatpush.msra.mxu0 0.0
    %1729 = vmatpush.msra.mxu0 %v1612
    %1730 = vmatmul.f32.gmra.mxu0 %v1599
    %v1731 = vpop.f32.mrf.mxu0
    %v1732 = vadd.f32 0.0, %v1731
    %1733 = vdwg.mxu0
    %v1734 = vadd.f32 %v1571, %v1632
    %v1735 = vadd.f32 %v1572, %v1652
    %v1736 = vadd.f32 %v1573, %v1672
    %v1737 = vadd.f32 %v1574, %v1692
    %v1738 = vadd.f32 %v1575, %v1712
    %v1739 = vadd.f32 %v1576, %v1732
    %s1740 = scalar_lea.vmem %s1, 28
    %v1741 = vld [vmem:[%s1740] sm:$0xf]
    %1742 = vrot.lane.b32.xlu0 %v540, 91
    %v1743 = vpop.permute.xlu0 %1742
    %1744 = vrot.lane.b32.xlu0 %v541, 91
    %v1745 = vpop.permute.xlu0 %1744
    %1746 = vrot.lane.b32.xlu0 %v542, 91
    %v1747 = vpop.permute.xlu0 %1746
    %1748 = vrot.lane.b32.xlu0 %v620, 91
    %v1749 = vpop.permute.xlu0 %1748
    %1750 = vrot.lane.b32.xlu0 %v621, 91
    %v1751 = vpop.permute.xlu0 %1750
    %1752 = vrot.lane.b32.xlu0 %v622, 91
    %v1753 = vpop.permute.xlu0 %1752
    %vm1754 = vcmask 744448
    %v1755 = vsel %vm1754, %v1743, %v1745
    %v1756 = vsel %vm1754, %v1745, %v1747
    %v1757 = vsel %vm1754, %v1747, %v1749
    %v1758 = vsel %vm1754, %v1749, %v1751
    %v1759 = vsel %vm1754, %v1751, %v1753
    %v1761 = vsel %vm1754, %v1753, 0.0
    %v1763 = vsel %vm651, %v1741, 0
    %v1765 = vsel %vm185, %v1755, 0
    %v1767 = vsel %vm185, %v1756, 0
    %v1769 = vsel %vm185, %v1757, 0
    %v1771 = vsel %vm185, %v1758, 0
    %v1773 = vsel %vm185, %v1759, 0
    %v1776 = vsel %vm185, %v1761, 0
    %1778 = vmatpush.msra.mxu0 0.0
    %1779 = vmatpush.msra.mxu0 0.0
    %1780 = vmatpush.msra.mxu0 0.0
    %1781 = vmatpush.msra.mxu0 0.0
    %1782 = vmatpush.msra.mxu0 0.0
    %1783 = vmatpush.msra.mxu0 0.0
    %1784 = vmatpush.msra.mxu0 0.0
    %1785 = vmatpush.msra.mxu0 0.0
    %1786 = vmatpush.msra.mxu0 0.0
    %1787 = vmatpush.msra.mxu0 0.0
    %1788 = vmatpush.msra.mxu0 0.0
    %1789 = vmatpush.msra.mxu0 0.0
    %1790 = vmatpush.msra.mxu0 0.0
    %1791 = vmatpush.msra.mxu0 0.0
    %1792 = vmatpush.msra.mxu0 0.0
    %1793 = vmatpush.msra.mxu0 %v1765
    %1794 = vmatmul.f32.gmra.mxu0 %v1763
    %v1795 = vpop.f32.mrf.mxu0
    %v1796 = vadd.f32 0.0, %v1795
    %1797 = vdwg.mxu0
    %1798 = vmatpush.msra.mxu0 0.0
    %1799 = vmatpush.msra.mxu0 0.0
    %1800 = vmatpush.msra.mxu0 0.0
    %1801 = vmatpush.msra.mxu0 0.0
    %1802 = vmatpush.msra.mxu0 0.0
    %1803 = vmatpush.msra.mxu0 0.0
    %1804 = vmatpush.msra.mxu0 0.0
    %1805 = vmatpush.msra.mxu0 0.0
    %1806 = vmatpush.msra.mxu0 0.0
    %1807 = vmatpush.msra.mxu0 0.0
    %1808 = vmatpush.msra.mxu0 0.0
    %1809 = vmatpush.msra.mxu0 0.0
    %1810 = vmatpush.msra.mxu0 0.0
    %1811 = vmatpush.msra.mxu0 0.0
    %1812 = vmatpush.msra.mxu0 0.0
    %1813 = vmatpush.msra.mxu0 %v1767
    %1814 = vmatmul.f32.gmra.mxu0 %v1763
    %v1815 = vpop.f32.mrf.mxu0
    %v1816 = vadd.f32 0.0, %v1815
    %1817 = vdwg.mxu0
    %1818 = vmatpush.msra.mxu0 0.0
    %1819 = vmatpush.msra.mxu0 0.0
    %1820 = vmatpush.msra.mxu0 0.0
    %1821 = vmatpush.msra.mxu0 0.0
    %1822 = vmatpush.msra.mxu0 0.0
    %1823 = vmatpush.msra.mxu0 0.0
    %1824 = vmatpush.msra.mxu0 0.0
    %1825 = vmatpush.msra.mxu0 0.0
    %1826 = vmatpush.msra.mxu0 0.0
    %1827 = vmatpush.msra.mxu0 0.0
    %1828 = vmatpush.msra.mxu0 0.0
    %1829 = vmatpush.msra.mxu0 0.0
    %1830 = vmatpush.msra.mxu0 0.0
    %1831 = vmatpush.msra.mxu0 0.0
    %1832 = vmatpush.msra.mxu0 0.0
    %1833 = vmatpush.msra.mxu0 %v1769
    %1834 = vmatmul.f32.gmra.mxu0 %v1763
    %v1835 = vpop.f32.mrf.mxu0
    %v1836 = vadd.f32 0.0, %v1835
    %1837 = vdwg.mxu0
    %1838 = vmatpush.msra.mxu0 0.0
    %1839 = vmatpush.msra.mxu0 0.0
    %1840 = vmatpush.msra.mxu0 0.0
    %1841 = vmatpush.msra.mxu0 0.0
    %1842 = vmatpush.msra.mxu0 0.0
    %1843 = vmatpush.msra.mxu0 0.0
    %1844 = vmatpush.msra.mxu0 0.0
    %1845 = vmatpush.msra.mxu0 0.0
    %1846 = vmatpush.msra.mxu0 0.0
    %1847 = vmatpush.msra.mxu0 0.0
    %1848 = vmatpush.msra.mxu0 0.0
    %1849 = vmatpush.msra.mxu0 0.0
    %1850 = vmatpush.msra.mxu0 0.0
    %1851 = vmatpush.msra.mxu0 0.0
    %1852 = vmatpush.msra.mxu0 0.0
    %1853 = vmatpush.msra.mxu0 %v1771
    %1854 = vmatmul.f32.gmra.mxu0 %v1763
    %v1855 = vpop.f32.mrf.mxu0
    %v1856 = vadd.f32 0.0, %v1855
    %1857 = vdwg.mxu0
    %1858 = vmatpush.msra.mxu0 0.0
    %1859 = vmatpush.msra.mxu0 0.0
    %1860 = vmatpush.msra.mxu0 0.0
    %1861 = vmatpush.msra.mxu0 0.0
    %1862 = vmatpush.msra.mxu0 0.0
    %1863 = vmatpush.msra.mxu0 0.0
    %1864 = vmatpush.msra.mxu0 0.0
    %1865 = vmatpush.msra.mxu0 0.0
    %1866 = vmatpush.msra.mxu0 0.0
    %1867 = vmatpush.msra.mxu0 0.0
    %1868 = vmatpush.msra.mxu0 0.0
    %1869 = vmatpush.msra.mxu0 0.0
    %1870 = vmatpush.msra.mxu0 0.0
    %1871 = vmatpush.msra.mxu0 0.0
    %1872 = vmatpush.msra.mxu0 0.0
    %1873 = vmatpush.msra.mxu0 %v1773
    %1874 = vmatmul.f32.gmra.mxu0 %v1763
    %v1875 = vpop.f32.mrf.mxu0
    %v1876 = vadd.f32 0.0, %v1875
    %1877 = vdwg.mxu0
    %1878 = vmatpush.msra.mxu0 0.0
    %1879 = vmatpush.msra.mxu0 0.0
    %1880 = vmatpush.msra.mxu0 0.0
    %1881 = vmatpush.msra.mxu0 0.0
    %1882 = vmatpush.msra.mxu0 0.0
    %1883 = vmatpush.msra.mxu0 0.0
    %1884 = vmatpush.msra.mxu0 0.0
    %1885 = vmatpush.msra.mxu0 0.0
    %1886 = vmatpush.msra.mxu0 0.0
    %1887 = vmatpush.msra.mxu0 0.0
    %1888 = vmatpush.msra.mxu0 0.0
    %1889 = vmatpush.msra.mxu0 0.0
    %1890 = vmatpush.msra.mxu0 0.0
    %1891 = vmatpush.msra.mxu0 0.0
    %1892 = vmatpush.msra.mxu0 0.0
    %1893 = vmatpush.msra.mxu0 %v1776
    %1894 = vmatmul.f32.gmra.mxu0 %v1763
    %v1895 = vpop.f32.mrf.mxu0
    %v1896 = vadd.f32 0.0, %v1895
    %1897 = vdwg.mxu0
    %v1898 = vadd.f32 %v1734, %v1796
    %v1899 = vadd.f32 %v1735, %v1816
    %v1900 = vadd.f32 %v1736, %v1836
    %v1901 = vadd.f32 %v1737, %v1856
    %v1902 = vadd.f32 %v1738, %v1876
    %v1903 = vadd.f32 %v1739, %v1896
    %s1904 = scalar_lea.vmem %s1, 32
    %v1905 = vld [vmem:[%s1904] sm:$0xf]
    %1906 = vrot.lane.b32.xlu0 %v540, 90
    %v1907 = vpop.permute.xlu0 %1906
    %1908 = vrot.lane.b32.xlu0 %v541, 90
    %v1909 = vpop.permute.xlu0 %1908
    %1910 = vrot.lane.b32.xlu0 %v542, 90
    %v1911 = vpop.permute.xlu0 %1910
    %1912 = vrot.lane.b32.xlu0 %v620, 90
    %v1913 = vpop.permute.xlu0 %1912
    %1914 = vrot.lane.b32.xlu0 %v621, 90
    %v1915 = vpop.permute.xlu0 %1914
    %1916 = vrot.lane.b32.xlu0 %v622, 90
    %v1917 = vpop.permute.xlu0 %1916
    %vm1918 = vcmask 736256
    %v1919 = vsel %vm1918, %v1907, %v1909
    %v1920 = vsel %vm1918, %v1909, %v1911
    %v1921 = vsel %vm1918, %v1911, %v1913
    %v1922 = vsel %vm1918, %v1913, %v1915
    %v1923 = vsel %vm1918, %v1915, %v1917
    %v1925 = vsel %vm1918, %v1917, 0.0
    %v1927 = vsel %vm651, %v1905, 0
    %v1929 = vsel %vm185, %v1919, 0
    %v1931 = vsel %vm185, %v1920, 0
    %v1933 = vsel %vm185, %v1921, 0
    %v1935 = vsel %vm185, %v1922, 0
    %v1937 = vsel %vm185, %v1923, 0
    %v1940 = vsel %vm185, %v1925, 0
    %1942 = vmatpush.msra.mxu0 0.0
    %1943 = vmatpush.msra.mxu0 0.0
    %1944 = vmatpush.msra.mxu0 0.0
    %1945 = vmatpush.msra.mxu0 0.0
    %1946 = vmatpush.msra.mxu0 0.0
    %1947 = vmatpush.msra.mxu0 0.0
    %1948 = vmatpush.msra.mxu0 0.0
    %1949 = vmatpush.msra.mxu0 0.0
    %1950 = vmatpush.msra.mxu0 0.0
    %1951 = vmatpush.msra.mxu0 0.0
    %1952 = vmatpush.msra.mxu0 0.0
    %1953 = vmatpush.msra.mxu0 0.0
    %1954 = vmatpush.msra.mxu0 0.0
    %1955 = vmatpush.msra.mxu0 0.0
    %1956 = vmatpush.msra.mxu0 0.0
    %1957 = vmatpush.msra.mxu0 %v1929
    %1958 = vmatmul.f32.gmra.mxu0 %v1927
    %v1959 = vpop.f32.mrf.mxu0
    %v1960 = vadd.f32 0.0, %v1959
    %1961 = vdwg.mxu0
    %1962 = vmatpush.msra.mxu0 0.0
    %1963 = vmatpush.msra.mxu0 0.0
    %1964 = vmatpush.msra.mxu0 0.0
    %1965 = vmatpush.msra.mxu0 0.0
    %1966 = vmatpush.msra.mxu0 0.0
    %1967 = vmatpush.msra.mxu0 0.0
    %1968 = vmatpush.msra.mxu0 0.0
    %1969 = vmatpush.msra.mxu0 0.0
    %1970 = vmatpush.msra.mxu0 0.0
    %1971 = vmatpush.msra.mxu0 0.0
    %1972 = vmatpush.msra.mxu0 0.0
    %1973 = vmatpush.msra.mxu0 0.0
    %1974 = vmatpush.msra.mxu0 0.0
    %1975 = vmatpush.msra.mxu0 0.0
    %1976 = vmatpush.msra.mxu0 0.0
    %1977 = vmatpush.msra.mxu0 %v1931
    %1978 = vmatmul.f32.gmra.mxu0 %v1927
    %v1979 = vpop.f32.mrf.mxu0
    %v1980 = vadd.f32 0.0, %v1979
    %1981 = vdwg.mxu0
    %1982 = vmatpush.msra.mxu0 0.0
    %1983 = vmatpush.msra.mxu0 0.0
    %1984 = vmatpush.msra.mxu0 0.0
    %1985 = vmatpush.msra.mxu0 0.0
    %1986 = vmatpush.msra.mxu0 0.0
    %1987 = vmatpush.msra.mxu0 0.0
    %1988 = vmatpush.msra.mxu0 0.0
    %1989 = vmatpush.msra.mxu0 0.0
    %1990 = vmatpush.msra.mxu0 0.0
    %1991 = vmatpush.msra.mxu0 0.0
    %1992 = vmatpush.msra.mxu0 0.0
    %1993 = vmatpush.msra.mxu0 0.0
    %1994 = vmatpush.msra.mxu0 0.0
    %1995 = vmatpush.msra.mxu0 0.0
    %1996 = vmatpush.msra.mxu0 0.0
    %1997 = vmatpush.msra.mxu0 %v1933
    %1998 = vmatmul.f32.gmra.mxu0 %v1927
    %v1999 = vpop.f32.mrf.mxu0
    %v2000 = vadd.f32 0.0, %v1999
    %2001 = vdwg.mxu0
    %2002 = vmatpush.msra.mxu0 0.0
    %2003 = vmatpush.msra.mxu0 0.0
    %2004 = vmatpush.msra.mxu0 0.0
    %2005 = vmatpush.msra.mxu0 0.0
    %2006 = vmatpush.msra.mxu0 0.0
    %2007 = vmatpush.msra.mxu0 0.0
    %2008 = vmatpush.msra.mxu0 0.0
    %2009 = vmatpush.msra.mxu0 0.0
    %2010 = vmatpush.msra.mxu0 0.0
    %2011 = vmatpush.msra.mxu0 0.0
    %2012 = vmatpush.msra.mxu0 0.0
    %2013 = vmatpush.msra.mxu0 0.0
    %2014 = vmatpush.msra.mxu0 0.0
    %2015 = vmatpush.msra.mxu0 0.0
    %2016 = vmatpush.msra.mxu0 0.0
    %2017 = vmatpush.msra.mxu0 %v1935
    %2018 = vmatmul.f32.gmra.mxu0 %v1927
    %v2019 = vpop.f32.mrf.mxu0
    %v2020 = vadd.f32 0.0, %v2019
    %2021 = vdwg.mxu0
    %2022 = vmatpush.msra.mxu0 0.0
    %2023 = vmatpush.msra.mxu0 0.0
    %2024 = vmatpush.msra.mxu0 0.0
    %2025 = vmatpush.msra.mxu0 0.0
    %2026 = vmatpush.msra.mxu0 0.0
    %2027 = vmatpush.msra.mxu0 0.0
    %2028 = vmatpush.msra.mxu0 0.0
    %2029 = vmatpush.msra.mxu0 0.0
    %2030 = vmatpush.msra.mxu0 0.0
    %2031 = vmatpush.msra.mxu0 0.0
    %2032 = vmatpush.msra.mxu0 0.0
    %2033 = vmatpush.msra.mxu0 0.0
    %2034 = vmatpush.msra.mxu0 0.0
    %2035 = vmatpush.msra.mxu0 0.0
    %2036 = vmatpush.msra.mxu0 0.0
    %2037 = vmatpush.msra.mxu0 %v1937
    %2038 = vmatmul.f32.gmra.mxu0 %v1927
    %v2039 = vpop.f32.mrf.mxu0
    %v2040 = vadd.f32 0.0, %v2039
    %2041 = vdwg.mxu0
    %2042 = vmatpush.msra.mxu0 0.0
    %2043 = vmatpush.msra.mxu0 0.0
    %2044 = vmatpush.msra.mxu0 0.0
    %2045 = vmatpush.msra.mxu0 0.0
    %2046 = vmatpush.msra.mxu0 0.0
    %2047 = vmatpush.msra.mxu0 0.0
    %2048 = vmatpush.msra.mxu0 0.0
    %2049 = vmatpush.msra.mxu0 0.0
    %2050 = vmatpush.msra.mxu0 0.0
    %2051 = vmatpush.msra.mxu0 0.0
    %2052 = vmatpush.msra.mxu0 0.0
    %2053 = vmatpush.msra.mxu0 0.0
    %2054 = vmatpush.msra.mxu0 0.0
    %2055 = vmatpush.msra.mxu0 0.0
    %2056 = vmatpush.msra.mxu0 0.0
    %2057 = vmatpush.msra.mxu0 %v1940
    %2058 = vmatmul.f32.gmra.mxu0 %v1927
    %v2059 = vpop.f32.mrf.mxu0
    %v2060 = vadd.f32 0.0, %v2059
    %2061 = vdwg.mxu0
    %v2062 = vadd.f32 %v1898, %v1960
    %v2063 = vadd.f32 %v1899, %v1980
    %v2064 = vadd.f32 %v1900, %v2000
    %v2065 = vadd.f32 %v1901, %v2020
    %v2066 = vadd.f32 %v1902, %v2040
    %v2067 = vadd.f32 %v1903, %v2060
    %v2068 = vld [vmem:[%s2] sm:$0xf]
    %2070 = vset.pattern.permute.xlu0 0
    %2071 = vperm.xlu0 %2070, %v2068
    %v2072 = vpop.permute.xlu0 %2071
    %v2074 = vadd.f32 %v2062, %v2072
    %v2075 = vadd.f32 %v2063, %v2072
    %v2076 = vadd.f32 %v2064, %v2072
    %v2077 = vadd.f32 %v2065, %v2072
    %v2078 = vadd.f32 %v2066, %v2072
    %v2079 = vadd.f32 %v2067, %v2072
    %vm2080 = vcmp.gt.f32.partialorder %v2074, 0.0
    %vm2081 = vcmp.gt.f32.partialorder %v2075, 0.0
    %vm2082 = vcmp.gt.f32.partialorder %v2076, 0.0
    %vm2083 = vcmp.gt.f32.partialorder %v2077, 0.0
    %vm2084 = vcmp.gt.f32.partialorder %v2078, 0.0
    %vm2085 = vcmp.gt.f32.partialorder %v2079, 0.0
    %v2086 = vmul.f32 %v2074, 0.01
    %v2087 = vmul.f32 %v2075, 0.01
    %v2088 = vmul.f32 %v2076, 0.01
    %v2089 = vmul.f32 %v2077, 0.01
    %v2090 = vmul.f32 %v2078, 0.01
    %v2091 = vmul.f32 %v2079, 0.01
    %v2092 = vsel %vm2080, %v2074, %v2086
    %v2093 = vsel %vm2081, %v2075, %v2087
    %v2094 = vsel %vm2082, %v2076, %v2088
    %v2095 = vsel %vm2083, %v2077, %v2089
    %v2096 = vsel %vm2084, %v2078, %v2090
    %v2097 = vsel %vm2085, %v2079, %v2091
    %vm2098 = vcmp.gt.f32.partialorder %v50, 0.0
    %2105 = vrot.lane.b32.xlu0 %v2092, 19
    %v2106 = vpop.permute.xlu0 %2105
    %2107 = vrot.lane.b32.xlu0 %v2093, 19
    %v2108 = vpop.permute.xlu0 %2107
    %2109 = vrot.lane.b32.xlu0 %v2094, 19
    %v2110 = vpop.permute.xlu0 %2109
    %2111 = vrot.lane.b32.xlu0 %v2095, 19
    %v2112 = vpop.permute.xlu0 %2111
    %2113 = vrot.lane.b32.xlu0 %v2096, 19
    %v2114 = vpop.permute.xlu0 %2113
    %2115 = vrot.lane.b32.xlu0 %v2097, 19
    %v2116 = vpop.permute.xlu0 %2115
    %vm2117 = vcmask 154624
    %v2118 = vsel %vm2117, %v2106, %v2108
    %v2119 = vsel %vm2117, %v2108, %v2110
    %v2120 = vsel %vm2117, %v2110, %v2112
    %v2121 = vsel %vm2117, %v2112, %v2114
    %v2122 = vsel %vm2117, %v2114, %v2116
    %v2129 = vsel %vm2117, 0.0, %v2106
    %v2130 = vsel %vm2098, 1, 0
    %v2131 = vperm.slane %v2130, 0
    %v2132 = vperm.slane %v2130, 1
    %v2133 = vperm.slane %v2130, 2
    %v2134 = vperm.slane %v2130, 3
    %v2135 = vperm.slane %v2130, 4
    %v2136 = vperm.slane %v2130, 5
    %vm2137 = vcmp.eq.s32.totalorder %v2131, 1
    %vm2138 = vcmp.eq.s32.totalorder %v2132, 1
    %vm2139 = vcmp.eq.s32.totalorder %v2133, 1
    %vm2140 = vcmp.eq.s32.totalorder %v2134, 1
    %vm2141 = vcmp.eq.s32.totalorder %v2135, 1
    %vm2142 = vcmp.eq.s32.totalorder %v2136, 1
    %v2143 = vsel %vm2137, %v2129, 0.0
    %v2144 = vsel %vm2138, %v2118, 0.0
    %v2145 = vsel %vm2139, %v2119, 0.0
    %v2146 = vsel %vm2140, %v2120, 0.0
    %v2147 = vsel %vm2141, %v2121, 0.0
    %v2148 = vsel %vm2142, %v2122, 0.0
    %v2149 = vsel %vm185, %v2143, 0.0
    %v2150 = vsel %vm185, %v2144, 0.0
    %v2151 = vadd.f32 %v2149, %v2150
    %v2152 = vsel %vm185, %v2145, 0.0
    %v2153 = vadd.f32 %v2151, %v2152
    %2154 = vadd.xlane.f32.xlu0 %v2153
    %v2155 = vpop.xlane.xlu0 %2154
    %v2156 = vmul.f32 %v2155, 0.00390625
    %v2157 = vsub.f32 %v2143, %v2156
    %v2158 = vsub.f32 %v2144, %v2156
    %v2159 = vsub.f32 %v2145, %v2156
    %v2160 = vsel %vm2137, %v2157, 0.0
    %v2161 = vsel %vm2138, %v2158, 0.0
    %v2162 = vsel %vm2139, %v2159, 0.0
    %v2163 = vmul.f32 %v2160, %v2160
    %v2164 = vmul.f32 %v2161, %v2161
    %v2165 = vmul.f32 %v2162, %v2162
    %v2166 = vsel %vm185, %v2163, 0.0
    %v2167 = vsel %vm185, %v2164, 0.0
    %v2168 = vadd.f32 %v2166, %v2167
    %v2169 = vsel %vm185, %v2165, 0.0
    %v2170 = vadd.f32 %v2168, %v2169
    %2171 = vadd.xlane.f32.xlu0 %v2170
    %v2172 = vpop.xlane.xlu0 %2171
    %v2173 = vmul.f32 %v2172, 0.00390625
    %v2174 = vadd.f32 %v2173, 1e-05
    %v2175 = vrsqrt.pop %v2174
    %v2176 = vmul.f32 %v2175, %v2174
    %v2177 = vmul.f32 %v2176, %v2175
    %v2178 = vmul.f32 0.5, %v2177
    %v2179 = vsub.f32 1.5, %v2178
    %v2180 = vmul.f32 %v2175, %v2179
    %vm2181 = vweird.f32 %v2174
    %vm2182 = vweird.f32 %v2175
    %vm2183 = vmor %vm2181, %vm2182
    %v2184 = vsel %vm2183, %v2175, %v2180
    %v2185 = vmul.f32 %v2160, %v2184
    %v2186 = vmul.f32 %v2161, %v2184
    %v2187 = vmul.f32 %v2162, %v2184
    %v2188 = vsel %vm185, %v2146, 0.0
    %v2189 = vsel %vm185, %v2147, 0.0
    %v2190 = vadd.f32 %v2188, %v2189
    %v2191 = vsel %vm185, %v2148, 0.0
    %v2192 = vadd.f32 %v2190, %v2191
    %2193 = vadd.xlane.f32.xlu0 %v2192
    %v2194 = vpop.xlane.xlu0 %2193
    %v2195 = vmul.f32 %v2194, 0.00390625
    %v2197 = vrot.slane %v50, 3
    %vm2199 = vcmp.gt.f32.partialorder %v2197, 0.0
    %v2200 = vsub.f32 %v2146, %v2195
    %v2201 = vsub.f32 %v2147, %v2195
    %v2202 = vsub.f32 %v2148, %v2195
    %v2203 = vsel %vm2199, 1, 0
    %v2204 = vperm.slane %v2203, 0
    %v2205 = vperm.slane %v2203, 1
    %v2206 = vperm.slane %v2203, 2
    %vm2207 = vcmp.eq.s32.totalorder %v2204, 1
    %vm2208 = vcmp.eq.s32.totalorder %v2205, 1
    %vm2209 = vcmp.eq.s32.totalorder %v2206, 1
    %v2210 = vsel %vm2207, %v2200, 0.0
    %v2211 = vsel %vm2208, %v2201, 0.0
    %v2212 = vsel %vm2209, %v2202, 0.0
    %v2213 = vmul.f32 %v2210, %v2210
    %v2214 = vmul.f32 %v2211, %v2211
    %v2215 = vmul.f32 %v2212, %v2212
    %v2216 = vsel %vm185, %v2213, 0.0
    %v2217 = vsel %vm185, %v2214, 0.0
    %v2218 = vadd.f32 %v2216, %v2217
    %v2219 = vsel %vm185, %v2215, 0.0
    %v2220 = vadd.f32 %v2218, %v2219
    %2221 = vadd.xlane.f32.xlu0 %v2220
    %v2222 = vpop.xlane.xlu0 %2221
    %v2223 = vmul.f32 %v2222, 0.00390625
    %v2224 = vadd.f32 %v2223, 1e-05
    %v2225 = vrsqrt.pop %v2224
    %v2226 = vmul.f32 %v2225, %v2224
    %v2227 = vmul.f32 %v2226, %v2225
    %v2228 = vmul.f32 0.5, %v2227
    %v2229 = vsub.f32 1.5, %v2228
    %v2230 = vmul.f32 %v2225, %v2229
    %vm2231 = vweird.f32 %v2224
    %vm2232 = vweird.f32 %v2225
    %vm2233 = vmor %vm2231, %vm2232
    %v2234 = vsel %vm2233, %v2225, %v2230
    %v2235 = vmul.f32 %v2210, %v2234
    %v2236 = vmul.f32 %v2211, %v2234
    %v2237 = vmul.f32 %v2212, %v2234
    %v2238 = vld [vmem:[%s3] sm:$0xf]
    %s2239 = scalar_lea.vmem %s3, 4
    %v2240 = vld [vmem:[%s2239] sm:$0xf]
    %2247 = vrot.lane.b32.xlu0 %v2185, 127
    %v2248 = vpop.permute.xlu0 %2247
    %2249 = vrot.lane.b32.xlu0 %v2186, 127
    %v2250 = vpop.permute.xlu0 %2249
    %2251 = vrot.lane.b32.xlu0 %v2187, 127
    %v2252 = vpop.permute.xlu0 %2251
    %2253 = vrot.lane.b32.xlu0 %v2235, 127
    %v2254 = vpop.permute.xlu0 %2253
    %2255 = vrot.lane.b32.xlu0 %v2236, 127
    %v2256 = vpop.permute.xlu0 %2255
    %2257 = vrot.lane.b32.xlu0 %v2237, 127
    %v2258 = vpop.permute.xlu0 %2257
    %v2259 = vsel %vm173, %v2248, %v2250
    %v2260 = vsel %vm173, %v2250, %v2252
    %v2261 = vsel %vm173, %v2252, %v2254
    %v2262 = vsel %vm173, %v2254, %v2256
    %v2263 = vsel %vm173, %v2256, %v2258
    %v2265 = vsel %vm173, %v2258, 0.0
    %v2267 = vsel %vm651, %v2240, 0
    %v2269 = vsel %vm185, %v2259, 0
    %v2271 = vsel %vm185, %v2260, 0
    %v2273 = vsel %vm185, %v2261, 0
    %v2275 = vsel %vm185, %v2262, 0
    %v2277 = vsel %vm185, %v2263, 0
    %v2280 = vsel %vm185, %v2265, 0
    %2282 = vmatpush.msra.mxu0 0.0
    %2283 = vmatpush.msra.mxu0 0.0
    %2284 = vmatpush.msra.mxu0 0.0
    %2285 = vmatpush.msra.mxu0 0.0
    %2286 = vmatpush.msra.mxu0 0.0
    %2287 = vmatpush.msra.mxu0 0.0
    %2288 = vmatpush.msra.mxu0 0.0
    %2289 = vmatpush.msra.mxu0 0.0
    %2290 = vmatpush.msra.mxu0 0.0
    %2291 = vmatpush.msra.mxu0 0.0
    %2292 = vmatpush.msra.mxu0 0.0
    %2293 = vmatpush.msra.mxu0 0.0
    %2294 = vmatpush.msra.mxu0 0.0
    %2295 = vmatpush.msra.mxu0 0.0
    %2296 = vmatpush.msra.mxu0 0.0
    %2297 = vmatpush.msra.mxu0 %v2269
    %2298 = vmatmul.f32.gmra.mxu0 %v2267
    %v2299 = vpop.f32.mrf.mxu0
    %v2300 = vadd.f32 0.0, %v2299
    %2301 = vdwg.mxu0
    %2302 = vmatpush.msra.mxu0 0.0
    %2303 = vmatpush.msra.mxu0 0.0
    %2304 = vmatpush.msra.mxu0 0.0
    %2305 = vmatpush.msra.mxu0 0.0
    %2306 = vmatpush.msra.mxu0 0.0
    %2307 = vmatpush.msra.mxu0 0.0
    %2308 = vmatpush.msra.mxu0 0.0
    %2309 = vmatpush.msra.mxu0 0.0
    %2310 = vmatpush.msra.mxu0 0.0
    %2311 = vmatpush.msra.mxu0 0.0
    %2312 = vmatpush.msra.mxu0 0.0
    %2313 = vmatpush.msra.mxu0 0.0
    %2314 = vmatpush.msra.mxu0 0.0
    %2315 = vmatpush.msra.mxu0 0.0
    %2316 = vmatpush.msra.mxu0 0.0
    %2317 = vmatpush.msra.mxu0 %v2271
    %2318 = vmatmul.f32.gmra.mxu0 %v2267
    %v2319 = vpop.f32.mrf.mxu0
    %v2320 = vadd.f32 0.0, %v2319
    %2321 = vdwg.mxu0
    %2322 = vmatpush.msra.mxu0 0.0
    %2323 = vmatpush.msra.mxu0 0.0
    %2324 = vmatpush.msra.mxu0 0.0
    %2325 = vmatpush.msra.mxu0 0.0
    %2326 = vmatpush.msra.mxu0 0.0
    %2327 = vmatpush.msra.mxu0 0.0
    %2328 = vmatpush.msra.mxu0 0.0
    %2329 = vmatpush.msra.mxu0 0.0
    %2330 = vmatpush.msra.mxu0 0.0
    %2331 = vmatpush.msra.mxu0 0.0
    %2332 = vmatpush.msra.mxu0 0.0
    %2333 = vmatpush.msra.mxu0 0.0
    %2334 = vmatpush.msra.mxu0 0.0
    %2335 = vmatpush.msra.mxu0 0.0
    %2336 = vmatpush.msra.mxu0 0.0
    %2337 = vmatpush.msra.mxu0 %v2273
    %2338 = vmatmul.f32.gmra.mxu0 %v2267
    %v2339 = vpop.f32.mrf.mxu0
    %v2340 = vadd.f32 0.0, %v2339
    %2341 = vdwg.mxu0
    %2342 = vmatpush.msra.mxu0 0.0
    %2343 = vmatpush.msra.mxu0 0.0
    %2344 = vmatpush.msra.mxu0 0.0
    %2345 = vmatpush.msra.mxu0 0.0
    %2346 = vmatpush.msra.mxu0 0.0
    %2347 = vmatpush.msra.mxu0 0.0
    %2348 = vmatpush.msra.mxu0 0.0
    %2349 = vmatpush.msra.mxu0 0.0
    %2350 = vmatpush.msra.mxu0 0.0
    %2351 = vmatpush.msra.mxu0 0.0
    %2352 = vmatpush.msra.mxu0 0.0
    %2353 = vmatpush.msra.mxu0 0.0
    %2354 = vmatpush.msra.mxu0 0.0
    %2355 = vmatpush.msra.mxu0 0.0
    %2356 = vmatpush.msra.mxu0 0.0
    %2357 = vmatpush.msra.mxu0 %v2275
    %2358 = vmatmul.f32.gmra.mxu0 %v2267
    %v2359 = vpop.f32.mrf.mxu0
    %v2360 = vadd.f32 0.0, %v2359
    %2361 = vdwg.mxu0
    %2362 = vmatpush.msra.mxu0 0.0
    %2363 = vmatpush.msra.mxu0 0.0
    %2364 = vmatpush.msra.mxu0 0.0
    %2365 = vmatpush.msra.mxu0 0.0
    %2366 = vmatpush.msra.mxu0 0.0
    %2367 = vmatpush.msra.mxu0 0.0
    %2368 = vmatpush.msra.mxu0 0.0
    %2369 = vmatpush.msra.mxu0 0.0
    %2370 = vmatpush.msra.mxu0 0.0
    %2371 = vmatpush.msra.mxu0 0.0
    %2372 = vmatpush.msra.mxu0 0.0
    %2373 = vmatpush.msra.mxu0 0.0
    %2374 = vmatpush.msra.mxu0 0.0
    %2375 = vmatpush.msra.mxu0 0.0
    %2376 = vmatpush.msra.mxu0 0.0
    %2377 = vmatpush.msra.mxu0 %v2277
    %2378 = vmatmul.f32.gmra.mxu0 %v2267
    %v2379 = vpop.f32.mrf.mxu0
    %v2380 = vadd.f32 0.0, %v2379
    %2381 = vdwg.mxu0
    %2382 = vmatpush.msra.mxu0 0.0
    %2383 = vmatpush.msra.mxu0 0.0
    %2384 = vmatpush.msra.mxu0 0.0
    %2385 = vmatpush.msra.mxu0 0.0
    %2386 = vmatpush.msra.mxu0 0.0
    %2387 = vmatpush.msra.mxu0 0.0
    %2388 = vmatpush.msra.mxu0 0.0
    %2389 = vmatpush.msra.mxu0 0.0
    %2390 = vmatpush.msra.mxu0 0.0
    %2391 = vmatpush.msra.mxu0 0.0
    %2392 = vmatpush.msra.mxu0 0.0
    %2393 = vmatpush.msra.mxu0 0.0
    %2394 = vmatpush.msra.mxu0 0.0
    %2395 = vmatpush.msra.mxu0 0.0
    %2396 = vmatpush.msra.mxu0 0.0
    %2397 = vmatpush.msra.mxu0 %v2280
    %2398 = vmatmul.f32.gmra.mxu0 %v2267
    %v2399 = vpop.f32.mrf.mxu0
    %v2400 = vadd.f32 0.0, %v2399
    %2401 = vdwg.mxu0
    %v2403 = vsel %vm651, %v2238, 0
    %v2405 = vsel %vm185, %v2185, 0
    %v2407 = vsel %vm185, %v2186, 0
    %v2409 = vsel %vm185, %v2187, 0
    %v2411 = vsel %vm185, %v2235, 0
    %v2413 = vsel %vm185, %v2236, 0
    %v2415 = vsel %vm185, %v2237, 0
    %2417 = vmatpush.msra.mxu0 0.0
    %2418 = vmatpush.msra.mxu0 0.0
    %2419 = vmatpush.msra.mxu0 0.0
    %2420 = vmatpush.msra.mxu0 0.0
    %2421 = vmatpush.msra.mxu0 0.0
    %2422 = vmatpush.msra.mxu0 0.0
    %2423 = vmatpush.msra.mxu0 0.0
    %2424 = vmatpush.msra.mxu0 0.0
    %2425 = vmatpush.msra.mxu0 0.0
    %2426 = vmatpush.msra.mxu0 0.0
    %2427 = vmatpush.msra.mxu0 0.0
    %2428 = vmatpush.msra.mxu0 0.0
    %2429 = vmatpush.msra.mxu0 0.0
    %2430 = vmatpush.msra.mxu0 0.0
    %2431 = vmatpush.msra.mxu0 0.0
    %2432 = vmatpush.msra.mxu0 %v2405
    %2433 = vmatmul.f32.gmra.mxu0 %v2403
    %v2434 = vpop.f32.mrf.mxu0
    %v2435 = vadd.f32 %v2300, %v2434
    %2436 = vdwg.mxu0
    %2437 = vmatpush.msra.mxu0 0.0
    %2438 = vmatpush.msra.mxu0 0.0
    %2439 = vmatpush.msra.mxu0 0.0
    %2440 = vmatpush.msra.mxu0 0.0
    %2441 = vmatpush.msra.mxu0 0.0
    %2442 = vmatpush.msra.mxu0 0.0
    %2443 = vmatpush.msra.mxu0 0.0
    %2444 = vmatpush.msra.mxu0 0.0
    %2445 = vmatpush.msra.mxu0 0.0
    %2446 = vmatpush.msra.mxu0 0.0
    %2447 = vmatpush.msra.mxu0 0.0
    %2448 = vmatpush.msra.mxu0 0.0
    %2449 = vmatpush.msra.mxu0 0.0
    %2450 = vmatpush.msra.mxu0 0.0
    %2451 = vmatpush.msra.mxu0 0.0
    %2452 = vmatpush.msra.mxu0 %v2407
    %2453 = vmatmul.f32.gmra.mxu0 %v2403
    %v2454 = vpop.f32.mrf.mxu0
    %v2455 = vadd.f32 %v2320, %v2454
    %2456 = vdwg.mxu0
    %2457 = vmatpush.msra.mxu0 0.0
    %2458 = vmatpush.msra.mxu0 0.0
    %2459 = vmatpush.msra.mxu0 0.0
    %2460 = vmatpush.msra.mxu0 0.0
    %2461 = vmatpush.msra.mxu0 0.0
    %2462 = vmatpush.msra.mxu0 0.0
    %2463 = vmatpush.msra.mxu0 0.0
    %2464 = vmatpush.msra.mxu0 0.0
    %2465 = vmatpush.msra.mxu0 0.0
    %2466 = vmatpush.msra.mxu0 0.0
    %2467 = vmatpush.msra.mxu0 0.0
    %2468 = vmatpush.msra.mxu0 0.0
    %2469 = vmatpush.msra.mxu0 0.0
    %2470 = vmatpush.msra.mxu0 0.0
    %2471 = vmatpush.msra.mxu0 0.0
    %2472 = vmatpush.msra.mxu0 %v2409
    %2473 = vmatmul.f32.gmra.mxu0 %v2403
    %v2474 = vpop.f32.mrf.mxu0
    %v2475 = vadd.f32 %v2340, %v2474
    %2476 = vdwg.mxu0
    %2477 = vmatpush.msra.mxu0 0.0
    %2478 = vmatpush.msra.mxu0 0.0
    %2479 = vmatpush.msra.mxu0 0.0
    %2480 = vmatpush.msra.mxu0 0.0
    %2481 = vmatpush.msra.mxu0 0.0
    %2482 = vmatpush.msra.mxu0 0.0
    %2483 = vmatpush.msra.mxu0 0.0
    %2484 = vmatpush.msra.mxu0 0.0
    %2485 = vmatpush.msra.mxu0 0.0
    %2486 = vmatpush.msra.mxu0 0.0
    %2487 = vmatpush.msra.mxu0 0.0
    %2488 = vmatpush.msra.mxu0 0.0
    %2489 = vmatpush.msra.mxu0 0.0
    %2490 = vmatpush.msra.mxu0 0.0
    %2491 = vmatpush.msra.mxu0 0.0
    %2492 = vmatpush.msra.mxu0 %v2411
    %2493 = vmatmul.f32.gmra.mxu0 %v2403
    %v2494 = vpop.f32.mrf.mxu0
    %v2495 = vadd.f32 %v2360, %v2494
    %2496 = vdwg.mxu0
    %2497 = vmatpush.msra.mxu0 0.0
    %2498 = vmatpush.msra.mxu0 0.0
    %2499 = vmatpush.msra.mxu0 0.0
    %2500 = vmatpush.msra.mxu0 0.0
    %2501 = vmatpush.msra.mxu0 0.0
    %2502 = vmatpush.msra.mxu0 0.0
    %2503 = vmatpush.msra.mxu0 0.0
    %2504 = vmatpush.msra.mxu0 0.0
    %2505 = vmatpush.msra.mxu0 0.0
    %2506 = vmatpush.msra.mxu0 0.0
    %2507 = vmatpush.msra.mxu0 0.0
    %2508 = vmatpush.msra.mxu0 0.0
    %2509 = vmatpush.msra.mxu0 0.0
    %2510 = vmatpush.msra.mxu0 0.0
    %2511 = vmatpush.msra.mxu0 0.0
    %2512 = vmatpush.msra.mxu0 %v2413
    %2513 = vmatmul.f32.gmra.mxu0 %v2403
    %v2514 = vpop.f32.mrf.mxu0
    %v2515 = vadd.f32 %v2380, %v2514
    %2516 = vdwg.mxu0
    %2517 = vmatpush.msra.mxu0 0.0
    %2518 = vmatpush.msra.mxu0 0.0
    %2519 = vmatpush.msra.mxu0 0.0
    %2520 = vmatpush.msra.mxu0 0.0
    %2521 = vmatpush.msra.mxu0 0.0
    %2522 = vmatpush.msra.mxu0 0.0
    %2523 = vmatpush.msra.mxu0 0.0
    %2524 = vmatpush.msra.mxu0 0.0
    %2525 = vmatpush.msra.mxu0 0.0
    %2526 = vmatpush.msra.mxu0 0.0
    %2527 = vmatpush.msra.mxu0 0.0
    %2528 = vmatpush.msra.mxu0 0.0
    %2529 = vmatpush.msra.mxu0 0.0
    %2530 = vmatpush.msra.mxu0 0.0
    %2531 = vmatpush.msra.mxu0 0.0
    %2532 = vmatpush.msra.mxu0 %v2415
    %2533 = vmatmul.f32.gmra.mxu0 %v2403
    %v2534 = vpop.f32.mrf.mxu0
    %v2535 = vadd.f32 %v2400, %v2534
    %2536 = vdwg.mxu0
    %s2537 = scalar_lea.vmem %s3, 8
    %v2538 = vld [vmem:[%s2537] sm:$0xf]
    %2539 = vrot.lane.b32.xlu0 %v2185, 126
    %v2540 = vpop.permute.xlu0 %2539
    %2541 = vrot.lane.b32.xlu0 %v2186, 126
    %v2542 = vpop.permute.xlu0 %2541
    %2543 = vrot.lane.b32.xlu0 %v2187, 126
    %v2544 = vpop.permute.xlu0 %2543
    %2545 = vrot.lane.b32.xlu0 %v2235, 126
    %v2546 = vpop.permute.xlu0 %2545
    %2547 = vrot.lane.b32.xlu0 %v2236, 126
    %v2548 = vpop.permute.xlu0 %2547
    %2549 = vrot.lane.b32.xlu0 %v2237, 126
    %v2550 = vpop.permute.xlu0 %2549
    %v2551 = vsel %vm218, %v2540, %v2542
    %v2552 = vsel %vm218, %v2542, %v2544
    %v2553 = vsel %vm218, %v2544, %v2546
    %v2554 = vsel %vm218, %v2546, %v2548
    %v2555 = vsel %vm218, %v2548, %v2550
    %v2557 = vsel %vm218, %v2550, 0.0
    %v2559 = vsel %vm651, %v2538, 0
    %v2561 = vsel %vm185, %v2551, 0
    %v2563 = vsel %vm185, %v2552, 0
    %v2565 = vsel %vm185, %v2553, 0
    %v2567 = vsel %vm185, %v2554, 0
    %v2569 = vsel %vm185, %v2555, 0
    %v2572 = vsel %vm185, %v2557, 0
    %2574 = vmatpush.msra.mxu0 0.0
    %2575 = vmatpush.msra.mxu0 0.0
    %2576 = vmatpush.msra.mxu0 0.0
    %2577 = vmatpush.msra.mxu0 0.0
    %2578 = vmatpush.msra.mxu0 0.0
    %2579 = vmatpush.msra.mxu0 0.0
    %2580 = vmatpush.msra.mxu0 0.0
    %2581 = vmatpush.msra.mxu0 0.0
    %2582 = vmatpush.msra.mxu0 0.0
    %2583 = vmatpush.msra.mxu0 0.0
    %2584 = vmatpush.msra.mxu0 0.0
    %2585 = vmatpush.msra.mxu0 0.0
    %2586 = vmatpush.msra.mxu0 0.0
    %2587 = vmatpush.msra.mxu0 0.0
    %2588 = vmatpush.msra.mxu0 0.0
    %2589 = vmatpush.msra.mxu0 %v2561
    %2590 = vmatmul.f32.gmra.mxu0 %v2559
    %v2591 = vpop.f32.mrf.mxu0
    %v2592 = vadd.f32 0.0, %v2591
    %2593 = vdwg.mxu0
    %2594 = vmatpush.msra.mxu0 0.0
    %2595 = vmatpush.msra.mxu0 0.0
    %2596 = vmatpush.msra.mxu0 0.0
    %2597 = vmatpush.msra.mxu0 0.0
    %2598 = vmatpush.msra.mxu0 0.0
    %2599 = vmatpush.msra.mxu0 0.0
    %2600 = vmatpush.msra.mxu0 0.0
    %2601 = vmatpush.msra.mxu0 0.0
    %2602 = vmatpush.msra.mxu0 0.0
    %2603 = vmatpush.msra.mxu0 0.0
    %2604 = vmatpush.msra.mxu0 0.0
    %2605 = vmatpush.msra.mxu0 0.0
    %2606 = vmatpush.msra.mxu0 0.0
    %2607 = vmatpush.msra.mxu0 0.0
    %2608 = vmatpush.msra.mxu0 0.0
    %2609 = vmatpush.msra.mxu0 %v2563
    %2610 = vmatmul.f32.gmra.mxu0 %v2559
    %v2611 = vpop.f32.mrf.mxu0
    %v2612 = vadd.f32 0.0, %v2611
    %2613 = vdwg.mxu0
    %2614 = vmatpush.msra.mxu0 0.0
    %2615 = vmatpush.msra.mxu0 0.0
    %2616 = vmatpush.msra.mxu0 0.0
    %2617 = vmatpush.msra.mxu0 0.0
    %2618 = vmatpush.msra.mxu0 0.0
    %2619 = vmatpush.msra.mxu0 0.0
    %2620 = vmatpush.msra.mxu0 0.0
    %2621 = vmatpush.msra.mxu0 0.0
    %2622 = vmatpush.msra.mxu0 0.0
    %2623 = vmatpush.msra.mxu0 0.0
    %2624 = vmatpush.msra.mxu0 0.0
    %2625 = vmatpush.msra.mxu0 0.0
    %2626 = vmatpush.msra.mxu0 0.0
    %2627 = vmatpush.msra.mxu0 0.0
    %2628 = vmatpush.msra.mxu0 0.0
    %2629 = vmatpush.msra.mxu0 %v2565
    %2630 = vmatmul.f32.gmra.mxu0 %v2559
    %v2631 = vpop.f32.mrf.mxu0
    %v2632 = vadd.f32 0.0, %v2631
    %2633 = vdwg.mxu0
    %2634 = vmatpush.msra.mxu0 0.0
    %2635 = vmatpush.msra.mxu0 0.0
    %2636 = vmatpush.msra.mxu0 0.0
    %2637 = vmatpush.msra.mxu0 0.0
    %2638 = vmatpush.msra.mxu0 0.0
    %2639 = vmatpush.msra.mxu0 0.0
    %2640 = vmatpush.msra.mxu0 0.0
    %2641 = vmatpush.msra.mxu0 0.0
    %2642 = vmatpush.msra.mxu0 0.0
    %2643 = vmatpush.msra.mxu0 0.0
    %2644 = vmatpush.msra.mxu0 0.0
    %2645 = vmatpush.msra.mxu0 0.0
    %2646 = vmatpush.msra.mxu0 0.0
    %2647 = vmatpush.msra.mxu0 0.0
    %2648 = vmatpush.msra.mxu0 0.0
    %2649 = vmatpush.msra.mxu0 %v2567
    %2650 = vmatmul.f32.gmra.mxu0 %v2559
    %v2651 = vpop.f32.mrf.mxu0
    %v2652 = vadd.f32 0.0, %v2651
    %2653 = vdwg.mxu0
    %2654 = vmatpush.msra.mxu0 0.0
    %2655 = vmatpush.msra.mxu0 0.0
    %2656 = vmatpush.msra.mxu0 0.0
    %2657 = vmatpush.msra.mxu0 0.0
    %2658 = vmatpush.msra.mxu0 0.0
    %2659 = vmatpush.msra.mxu0 0.0
    %2660 = vmatpush.msra.mxu0 0.0
    %2661 = vmatpush.msra.mxu0 0.0
    %2662 = vmatpush.msra.mxu0 0.0
    %2663 = vmatpush.msra.mxu0 0.0
    %2664 = vmatpush.msra.mxu0 0.0
    %2665 = vmatpush.msra.mxu0 0.0
    %2666 = vmatpush.msra.mxu0 0.0
    %2667 = vmatpush.msra.mxu0 0.0
    %2668 = vmatpush.msra.mxu0 0.0
    %2669 = vmatpush.msra.mxu0 %v2569
    %2670 = vmatmul.f32.gmra.mxu0 %v2559
    %v2671 = vpop.f32.mrf.mxu0
    %v2672 = vadd.f32 0.0, %v2671
    %2673 = vdwg.mxu0
    %2674 = vmatpush.msra.mxu0 0.0
    %2675 = vmatpush.msra.mxu0 0.0
    %2676 = vmatpush.msra.mxu0 0.0
    %2677 = vmatpush.msra.mxu0 0.0
    %2678 = vmatpush.msra.mxu0 0.0
    %2679 = vmatpush.msra.mxu0 0.0
    %2680 = vmatpush.msra.mxu0 0.0
    %2681 = vmatpush.msra.mxu0 0.0
    %2682 = vmatpush.msra.mxu0 0.0
    %2683 = vmatpush.msra.mxu0 0.0
    %2684 = vmatpush.msra.mxu0 0.0
    %2685 = vmatpush.msra.mxu0 0.0
    %2686 = vmatpush.msra.mxu0 0.0
    %2687 = vmatpush.msra.mxu0 0.0
    %2688 = vmatpush.msra.mxu0 0.0
    %2689 = vmatpush.msra.mxu0 %v2572
    %2690 = vmatmul.f32.gmra.mxu0 %v2559
    %v2691 = vpop.f32.mrf.mxu0
    %v2692 = vadd.f32 0.0, %v2691
    %2693 = vdwg.mxu0
    %v2694 = vadd.f32 %v2435, %v2592
    %v2695 = vadd.f32 %v2455, %v2612
    %v2696 = vadd.f32 %v2475, %v2632
    %v2697 = vadd.f32 %v2495, %v2652
    %v2698 = vadd.f32 %v2515, %v2672
    %v2699 = vadd.f32 %v2535, %v2692
    %s2700 = scalar_lea.vmem %s3, 12
    %v2701 = vld [vmem:[%s2700] sm:$0xf]
    %2702 = vrot.lane.b32.xlu0 %v2185, 110
    %v2703 = vpop.permute.xlu0 %2702
    %2704 = vrot.lane.b32.xlu0 %v2186, 110
    %v2705 = vpop.permute.xlu0 %2704
    %2706 = vrot.lane.b32.xlu0 %v2187, 110
    %v2707 = vpop.permute.xlu0 %2706
    %2708 = vrot.lane.b32.xlu0 %v2235, 110
    %v2709 = vpop.permute.xlu0 %2708
    %2710 = vrot.lane.b32.xlu0 %v2236, 110
    %v2711 = vpop.permute.xlu0 %2710
    %2712 = vrot.lane.b32.xlu0 %v2237, 110
    %v2713 = vpop.permute.xlu0 %2712
    %v2714 = vsel %vm265, %v2703, %v2705
    %v2715 = vsel %vm265, %v2705, %v2707
    %v2716 = vsel %vm265, %v2707, %v2709
    %v2717 = vsel %vm265, %v2709, %v2711
    %v2718 = vsel %vm265, %v2711, %v2713
    %v2720 = vsel %vm265, %v2713, 0.0
    %v2722 = vsel %vm651, %v2701, 0
    %v2724 = vsel %vm185, %v2714, 0
    %v2726 = vsel %vm185, %v2715, 0
    %v2728 = vsel %vm185, %v2716, 0
    %v2730 = vsel %vm185, %v2717, 0
    %v2732 = vsel %vm185, %v2718, 0
    %v2735 = vsel %vm185, %v2720, 0
    %2737 = vmatpush.msra.mxu0 0.0
    %2738 = vmatpush.msra.mxu0 0.0
    %2739 = vmatpush.msra.mxu0 0.0
    %2740 = vmatpush.msra.mxu0 0.0
    %2741 = vmatpush.msra.mxu0 0.0
    %2742 = vmatpush.msra.mxu0 0.0
    %2743 = vmatpush.msra.mxu0 0.0
    %2744 = vmatpush.msra.mxu0 0.0
    %2745 = vmatpush.msra.mxu0 0.0
    %2746 = vmatpush.msra.mxu0 0.0
    %2747 = vmatpush.msra.mxu0 0.0
    %2748 = vmatpush.msra.mxu0 0.0
    %2749 = vmatpush.msra.mxu0 0.0
    %2750 = vmatpush.msra.mxu0 0.0
    %2751 = vmatpush.msra.mxu0 0.0
    %2752 = vmatpush.msra.mxu0 %v2724
    %2753 = vmatmul.f32.gmra.mxu0 %v2722
    %v2754 = vpop.f32.mrf.mxu0
    %v2755 = vadd.f32 0.0, %v2754
    %2756 = vdwg.mxu0
    %2757 = vmatpush.msra.mxu0 0.0
    %2758 = vmatpush.msra.mxu0 0.0
    %2759 = vmatpush.msra.mxu0 0.0
    %2760 = vmatpush.msra.mxu0 0.0
    %2761 = vmatpush.msra.mxu0 0.0
    %2762 = vmatpush.msra.mxu0 0.0
    %2763 = vmatpush.msra.mxu0 0.0
    %2764 = vmatpush.msra.mxu0 0.0
    %2765 = vmatpush.msra.mxu0 0.0
    %2766 = vmatpush.msra.mxu0 0.0
    %2767 = vmatpush.msra.mxu0 0.0
    %2768 = vmatpush.msra.mxu0 0.0
    %2769 = vmatpush.msra.mxu0 0.0
    %2770 = vmatpush.msra.mxu0 0.0
    %2771 = vmatpush.msra.mxu0 0.0
    %2772 = vmatpush.msra.mxu0 %v2726
    %2773 = vmatmul.f32.gmra.mxu0 %v2722
    %v2774 = vpop.f32.mrf.mxu0
    %v2775 = vadd.f32 0.0, %v2774
    %2776 = vdwg.mxu0
    %2777 = vmatpush.msra.mxu0 0.0
    %2778 = vmatpush.msra.mxu0 0.0
    %2779 = vmatpush.msra.mxu0 0.0
    %2780 = vmatpush.msra.mxu0 0.0
    %2781 = vmatpush.msra.mxu0 0.0
    %2782 = vmatpush.msra.mxu0 0.0
    %2783 = vmatpush.msra.mxu0 0.0
    %2784 = vmatpush.msra.mxu0 0.0
    %2785 = vmatpush.msra.mxu0 0.0
    %2786 = vmatpush.msra.mxu0 0.0
    %2787 = vmatpush.msra.mxu0 0.0
    %2788 = vmatpush.msra.mxu0 0.0
    %2789 = vmatpush.msra.mxu0 0.0
    %2790 = vmatpush.msra.mxu0 0.0
    %2791 = vmatpush.msra.mxu0 0.0
    %2792 = vmatpush.msra.mxu0 %v2728
    %2793 = vmatmul.f32.gmra.mxu0 %v2722
    %v2794 = vpop.f32.mrf.mxu0
    %v2795 = vadd.f32 0.0, %v2794
    %2796 = vdwg.mxu0
    %2797 = vmatpush.msra.mxu0 0.0
    %2798 = vmatpush.msra.mxu0 0.0
    %2799 = vmatpush.msra.mxu0 0.0
    %2800 = vmatpush.msra.mxu0 0.0
    %2801 = vmatpush.msra.mxu0 0.0
    %2802 = vmatpush.msra.mxu0 0.0
    %2803 = vmatpush.msra.mxu0 0.0
    %2804 = vmatpush.msra.mxu0 0.0
    %2805 = vmatpush.msra.mxu0 0.0
    %2806 = vmatpush.msra.mxu0 0.0
    %2807 = vmatpush.msra.mxu0 0.0
    %2808 = vmatpush.msra.mxu0 0.0
    %2809 = vmatpush.msra.mxu0 0.0
    %2810 = vmatpush.msra.mxu0 0.0
    %2811 = vmatpush.msra.mxu0 0.0
    %2812 = vmatpush.msra.mxu0 %v2730
    %2813 = vmatmul.f32.gmra.mxu0 %v2722
    %v2814 = vpop.f32.mrf.mxu0
    %v2815 = vadd.f32 0.0, %v2814
    %2816 = vdwg.mxu0
    %2817 = vmatpush.msra.mxu0 0.0
    %2818 = vmatpush.msra.mxu0 0.0
    %2819 = vmatpush.msra.mxu0 0.0
    %2820 = vmatpush.msra.mxu0 0.0
    %2821 = vmatpush.msra.mxu0 0.0
    %2822 = vmatpush.msra.mxu0 0.0
    %2823 = vmatpush.msra.mxu0 0.0
    %2824 = vmatpush.msra.mxu0 0.0
    %2825 = vmatpush.msra.mxu0 0.0
    %2826 = vmatpush.msra.mxu0 0.0
    %2827 = vmatpush.msra.mxu0 0.0
    %2828 = vmatpush.msra.mxu0 0.0
    %2829 = vmatpush.msra.mxu0 0.0
    %2830 = vmatpush.msra.mxu0 0.0
    %2831 = vmatpush.msra.mxu0 0.0
    %2832 = vmatpush.msra.mxu0 %v2732
    %2833 = vmatmul.f32.gmra.mxu0 %v2722
    %v2834 = vpop.f32.mrf.mxu0
    %v2835 = vadd.f32 0.0, %v2834
    %2836 = vdwg.mxu0
    %2837 = vmatpush.msra.mxu0 0.0
    %2838 = vmatpush.msra.mxu0 0.0
    %2839 = vmatpush.msra.mxu0 0.0
    %2840 = vmatpush.msra.mxu0 0.0
    %2841 = vmatpush.msra.mxu0 0.0
    %2842 = vmatpush.msra.mxu0 0.0
    %2843 = vmatpush.msra.mxu0 0.0
    %2844 = vmatpush.msra.mxu0 0.0
    %2845 = vmatpush.msra.mxu0 0.0
    %2846 = vmatpush.msra.mxu0 0.0
    %2847 = vmatpush.msra.mxu0 0.0
    %2848 = vmatpush.msra.mxu0 0.0
    %2849 = vmatpush.msra.mxu0 0.0
    %2850 = vmatpush.msra.mxu0 0.0
    %2851 = vmatpush.msra.mxu0 0.0
    %2852 = vmatpush.msra.mxu0 %v2735
    %2853 = vmatmul.f32.gmra.mxu0 %v2722
    %v2854 = vpop.f32.mrf.mxu0
    %v2855 = vadd.f32 0.0, %v2854
    %2856 = vdwg.mxu0
    %v2857 = vadd.f32 %v2694, %v2755
    %v2858 = vadd.f32 %v2695, %v2775
    %v2859 = vadd.f32 %v2696, %v2795
    %v2860 = vadd.f32 %v2697, %v2815
    %v2861 = vadd.f32 %v2698, %v2835
    %v2862 = vadd.f32 %v2699, %v2855
    %s2863 = scalar_lea.vmem %s3, 16
    %v2864 = vld [vmem:[%s2863] sm:$0xf]
    %2865 = vrot.lane.b32.xlu0 %v2185, 109
    %v2866 = vpop.permute.xlu0 %2865
    %2867 = vrot.lane.b32.xlu0 %v2186, 109
    %v2868 = vpop.permute.xlu0 %2867
    %2869 = vrot.lane.b32.xlu0 %v2187, 109
    %v2870 = vpop.permute.xlu0 %2869
    %2871 = vrot.lane.b32.xlu0 %v2235, 109
    %v2872 = vpop.permute.xlu0 %2871
    %2873 = vrot.lane.b32.xlu0 %v2236, 109
    %v2874 = vpop.permute.xlu0 %2873
    %2875 = vrot.lane.b32.xlu0 %v2237, 109
    %v2876 = vpop.permute.xlu0 %2875
    %v2877 = vsel %vm1263, %v2866, %v2868
    %v2878 = vsel %vm1263, %v2868, %v2870
    %v2879 = vsel %vm1263, %v2870, %v2872
    %v2880 = vsel %vm1263, %v2872, %v2874
    %v2881 = vsel %vm1263, %v2874, %v2876
    %v2883 = vsel %vm1263, %v2876, 0.0
    %v2885 = vsel %vm651, %v2864, 0
    %v2887 = vsel %vm185, %v2877, 0
    %v2889 = vsel %vm185, %v2878, 0
    %v2891 = vsel %vm185, %v2879, 0
    %v2893 = vsel %vm185, %v2880, 0
    %v2895 = vsel %vm185, %v2881, 0
    %v2898 = vsel %vm185, %v2883, 0
    %2900 = vmatpush.msra.mxu0 0.0
    %2901 = vmatpush.msra.mxu0 0.0
    %2902 = vmatpush.msra.mxu0 0.0
    %2903 = vmatpush.msra.mxu0 0.0
    %2904 = vmatpush.msra.mxu0 0.0
    %2905 = vmatpush.msra.mxu0 0.0
    %2906 = vmatpush.msra.mxu0 0.0
    %2907 = vmatpush.msra.mxu0 0.0
    %2908 = vmatpush.msra.mxu0 0.0
    %2909 = vmatpush.msra.mxu0 0.0
    %2910 = vmatpush.msra.mxu0 0.0
    %2911 = vmatpush.msra.mxu0 0.0
    %2912 = vmatpush.msra.mxu0 0.0
    %2913 = vmatpush.msra.mxu0 0.0
    %2914 = vmatpush.msra.mxu0 0.0
    %2915 = vmatpush.msra.mxu0 %v2887
    %2916 = vmatmul.f32.gmra.mxu0 %v2885
    %v2917 = vpop.f32.mrf.mxu0
    %v2918 = vadd.f32 0.0, %v2917
    %2919 = vdwg.mxu0
    %2920 = vmatpush.msra.mxu0 0.0
    %2921 = vmatpush.msra.mxu0 0.0
    %2922 = vmatpush.msra.mxu0 0.0
    %2923 = vmatpush.msra.mxu0 0.0
    %2924 = vmatpush.msra.mxu0 0.0
    %2925 = vmatpush.msra.mxu0 0.0
    %2926 = vmatpush.msra.mxu0 0.0
    %2927 = vmatpush.msra.mxu0 0.0
    %2928 = vmatpush.msra.mxu0 0.0
    %2929 = vmatpush.msra.mxu0 0.0
    %2930 = vmatpush.msra.mxu0 0.0
    %2931 = vmatpush.msra.mxu0 0.0
    %2932 = vmatpush.msra.mxu0 0.0
    %2933 = vmatpush.msra.mxu0 0.0
    %2934 = vmatpush.msra.mxu0 0.0
    %2935 = vmatpush.msra.mxu0 %v2889
    %2936 = vmatmul.f32.gmra.mxu0 %v2885
    %v2937 = vpop.f32.mrf.mxu0
    %v2938 = vadd.f32 0.0, %v2937
    %2939 = vdwg.mxu0
    %2940 = vmatpush.msra.mxu0 0.0
    %2941 = vmatpush.msra.mxu0 0.0
    %2942 = vmatpush.msra.mxu0 0.0
    %2943 = vmatpush.msra.mxu0 0.0
    %2944 = vmatpush.msra.mxu0 0.0
    %2945 = vmatpush.msra.mxu0 0.0
    %2946 = vmatpush.msra.mxu0 0.0
    %2947 = vmatpush.msra.mxu0 0.0
    %2948 = vmatpush.msra.mxu0 0.0
    %2949 = vmatpush.msra.mxu0 0.0
    %2950 = vmatpush.msra.mxu0 0.0
    %2951 = vmatpush.msra.mxu0 0.0
    %2952 = vmatpush.msra.mxu0 0.0
    %2953 = vmatpush.msra.mxu0 0.0
    %2954 = vmatpush.msra.mxu0 0.0
    %2955 = vmatpush.msra.mxu0 %v2891
    %2956 = vmatmul.f32.gmra.mxu0 %v2885
    %v2957 = vpop.f32.mrf.mxu0
    %v2958 = vadd.f32 0.0, %v2957
    %2959 = vdwg.mxu0
    %2960 = vmatpush.msra.mxu0 0.0
    %2961 = vmatpush.msra.mxu0 0.0
    %2962 = vmatpush.msra.mxu0 0.0
    %2963 = vmatpush.msra.mxu0 0.0
    %2964 = vmatpush.msra.mxu0 0.0
    %2965 = vmatpush.msra.mxu0 0.0
    %2966 = vmatpush.msra.mxu0 0.0
    %2967 = vmatpush.msra.mxu0 0.0
    %2968 = vmatpush.msra.mxu0 0.0
    %2969 = vmatpush.msra.mxu0 0.0
    %2970 = vmatpush.msra.mxu0 0.0
    %2971 = vmatpush.msra.mxu0 0.0
    %2972 = vmatpush.msra.mxu0 0.0
    %2973 = vmatpush.msra.mxu0 0.0
    %2974 = vmatpush.msra.mxu0 0.0
    %2975 = vmatpush.msra.mxu0 %v2893
    %2976 = vmatmul.f32.gmra.mxu0 %v2885
    %v2977 = vpop.f32.mrf.mxu0
    %v2978 = vadd.f32 0.0, %v2977
    %2979 = vdwg.mxu0
    %2980 = vmatpush.msra.mxu0 0.0
    %2981 = vmatpush.msra.mxu0 0.0
    %2982 = vmatpush.msra.mxu0 0.0
    %2983 = vmatpush.msra.mxu0 0.0
    %2984 = vmatpush.msra.mxu0 0.0
    %2985 = vmatpush.msra.mxu0 0.0
    %2986 = vmatpush.msra.mxu0 0.0
    %2987 = vmatpush.msra.mxu0 0.0
    %2988 = vmatpush.msra.mxu0 0.0
    %2989 = vmatpush.msra.mxu0 0.0
    %2990 = vmatpush.msra.mxu0 0.0
    %2991 = vmatpush.msra.mxu0 0.0
    %2992 = vmatpush.msra.mxu0 0.0
    %2993 = vmatpush.msra.mxu0 0.0
    %2994 = vmatpush.msra.mxu0 0.0
    %2995 = vmatpush.msra.mxu0 %v2895
    %2996 = vmatmul.f32.gmra.mxu0 %v2885
    %v2997 = vpop.f32.mrf.mxu0
    %v2998 = vadd.f32 0.0, %v2997
    %2999 = vdwg.mxu0
    %3000 = vmatpush.msra.mxu0 0.0
    %3001 = vmatpush.msra.mxu0 0.0
    %3002 = vmatpush.msra.mxu0 0.0
    %3003 = vmatpush.msra.mxu0 0.0
    %3004 = vmatpush.msra.mxu0 0.0
    %3005 = vmatpush.msra.mxu0 0.0
    %3006 = vmatpush.msra.mxu0 0.0
    %3007 = vmatpush.msra.mxu0 0.0
    %3008 = vmatpush.msra.mxu0 0.0
    %3009 = vmatpush.msra.mxu0 0.0
    %3010 = vmatpush.msra.mxu0 0.0
    %3011 = vmatpush.msra.mxu0 0.0
    %3012 = vmatpush.msra.mxu0 0.0
    %3013 = vmatpush.msra.mxu0 0.0
    %3014 = vmatpush.msra.mxu0 0.0
    %3015 = vmatpush.msra.mxu0 %v2898
    %3016 = vmatmul.f32.gmra.mxu0 %v2885
    %v3017 = vpop.f32.mrf.mxu0
    %v3018 = vadd.f32 0.0, %v3017
    %3019 = vdwg.mxu0
    %v3020 = vadd.f32 %v2857, %v2918
    %v3021 = vadd.f32 %v2858, %v2938
    %v3022 = vadd.f32 %v2859, %v2958
    %v3023 = vadd.f32 %v2860, %v2978
    %v3024 = vadd.f32 %v2861, %v2998
    %v3025 = vadd.f32 %v2862, %v3018
    %s3026 = scalar_lea.vmem %s3, 20
    %v3027 = vld [vmem:[%s3026] sm:$0xf]
    %3028 = vrot.lane.b32.xlu0 %v2185, 108
    %v3029 = vpop.permute.xlu0 %3028
    %3030 = vrot.lane.b32.xlu0 %v2186, 108
    %v3031 = vpop.permute.xlu0 %3030
    %3032 = vrot.lane.b32.xlu0 %v2187, 108
    %v3033 = vpop.permute.xlu0 %3032
    %3034 = vrot.lane.b32.xlu0 %v2235, 108
    %v3035 = vpop.permute.xlu0 %3034
    %3036 = vrot.lane.b32.xlu0 %v2236, 108
    %v3037 = vpop.permute.xlu0 %3036
    %3038 = vrot.lane.b32.xlu0 %v2237, 108
    %v3039 = vpop.permute.xlu0 %3038
    %v3040 = vsel %vm1427, %v3029, %v3031
    %v3041 = vsel %vm1427, %v3031, %v3033
    %v3042 = vsel %vm1427, %v3033, %v3035
    %v3043 = vsel %vm1427, %v3035, %v3037
    %v3044 = vsel %vm1427, %v3037, %v3039
    %v3046 = vsel %vm1427, %v3039, 0.0
    %v3048 = vsel %vm651, %v3027, 0
    %v3050 = vsel %vm185, %v3040, 0
    %v3052 = vsel %vm185, %v3041, 0
    %v3054 = vsel %vm185, %v3042, 0
    %v3056 = vsel %vm185, %v3043, 0
    %v3058 = vsel %vm185, %v3044, 0
    %v3061 = vsel %vm185, %v3046, 0
    %3063 = vmatpush.msra.mxu0 0.0
    %3064 = vmatpush.msra.mxu0 0.0
    %3065 = vmatpush.msra.mxu0 0.0
    %3066 = vmatpush.msra.mxu0 0.0
    %3067 = vmatpush.msra.mxu0 0.0
    %3068 = vmatpush.msra.mxu0 0.0
    %3069 = vmatpush.msra.mxu0 0.0
    %3070 = vmatpush.msra.mxu0 0.0
    %3071 = vmatpush.msra.mxu0 0.0
    %3072 = vmatpush.msra.mxu0 0.0
    %3073 = vmatpush.msra.mxu0 0.0
    %3074 = vmatpush.msra.mxu0 0.0
    %3075 = vmatpush.msra.mxu0 0.0
    %3076 = vmatpush.msra.mxu0 0.0
    %3077 = vmatpush.msra.mxu0 0.0
    %3078 = vmatpush.msra.mxu0 %v3050
    %3079 = vmatmul.f32.gmra.mxu0 %v3048
    %v3080 = vpop.f32.mrf.mxu0
    %v3081 = vadd.f32 0.0, %v3080
    %3082 = vdwg.mxu0
    %3083 = vmatpush.msra.mxu0 0.0
    %3084 = vmatpush.msra.mxu0 0.0
    %3085 = vmatpush.msra.mxu0 0.0
    %3086 = vmatpush.msra.mxu0 0.0
    %3087 = vmatpush.msra.mxu0 0.0
    %3088 = vmatpush.msra.mxu0 0.0
    %3089 = vmatpush.msra.mxu0 0.0
    %3090 = vmatpush.msra.mxu0 0.0
    %3091 = vmatpush.msra.mxu0 0.0
    %3092 = vmatpush.msra.mxu0 0.0
    %3093 = vmatpush.msra.mxu0 0.0
    %3094 = vmatpush.msra.mxu0 0.0
    %3095 = vmatpush.msra.mxu0 0.0
    %3096 = vmatpush.msra.mxu0 0.0
    %3097 = vmatpush.msra.mxu0 0.0
    %3098 = vmatpush.msra.mxu0 %v3052
    %3099 = vmatmul.f32.gmra.mxu0 %v3048
    %v3100 = vpop.f32.mrf.mxu0
    %v3101 = vadd.f32 0.0, %v3100
    %3102 = vdwg.mxu0
    %3103 = vmatpush.msra.mxu0 0.0
    %3104 = vmatpush.msra.mxu0 0.0
    %3105 = vmatpush.msra.mxu0 0.0
    %3106 = vmatpush.msra.mxu0 0.0
    %3107 = vmatpush.msra.mxu0 0.0
    %3108 = vmatpush.msra.mxu0 0.0
    %3109 = vmatpush.msra.mxu0 0.0
    %3110 = vmatpush.msra.mxu0 0.0
    %3111 = vmatpush.msra.mxu0 0.0
    %3112 = vmatpush.msra.mxu0 0.0
    %3113 = vmatpush.msra.mxu0 0.0
    %3114 = vmatpush.msra.mxu0 0.0
    %3115 = vmatpush.msra.mxu0 0.0
    %3116 = vmatpush.msra.mxu0 0.0
    %3117 = vmatpush.msra.mxu0 0.0
    %3118 = vmatpush.msra.mxu0 %v3054
    %3119 = vmatmul.f32.gmra.mxu0 %v3048
    %v3120 = vpop.f32.mrf.mxu0
    %v3121 = vadd.f32 0.0, %v3120
    %3122 = vdwg.mxu0
    %3123 = vmatpush.msra.mxu0 0.0
    %3124 = vmatpush.msra.mxu0 0.0
    %3125 = vmatpush.msra.mxu0 0.0
    %3126 = vmatpush.msra.mxu0 0.0
    %3127 = vmatpush.msra.mxu0 0.0
    %3128 = vmatpush.msra.mxu0 0.0
    %3129 = vmatpush.msra.mxu0 0.0
    %3130 = vmatpush.msra.mxu0 0.0
    %3131 = vmatpush.msra.mxu0 0.0
    %3132 = vmatpush.msra.mxu0 0.0
    %3133 = vmatpush.msra.mxu0 0.0
    %3134 = vmatpush.msra.mxu0 0.0
    %3135 = vmatpush.msra.mxu0 0.0
    %3136 = vmatpush.msra.mxu0 0.0
    %3137 = vmatpush.msra.mxu0 0.0
    %3138 = vmatpush.msra.mxu0 %v3056
    %3139 = vmatmul.f32.gmra.mxu0 %v3048
    %v3140 = vpop.f32.mrf.mxu0
    %v3141 = vadd.f32 0.0, %v3140
    %3142 = vdwg.mxu0
    %3143 = vmatpush.msra.mxu0 0.0
    %3144 = vmatpush.msra.mxu0 0.0
    %3145 = vmatpush.msra.mxu0 0.0
    %3146 = vmatpush.msra.mxu0 0.0
    %3147 = vmatpush.msra.mxu0 0.0
    %3148 = vmatpush.msra.mxu0 0.0
    %3149 = vmatpush.msra.mxu0 0.0
    %3150 = vmatpush.msra.mxu0 0.0
    %3151 = vmatpush.msra.mxu0 0.0
    %3152 = vmatpush.msra.mxu0 0.0
    %3153 = vmatpush.msra.mxu0 0.0
    %3154 = vmatpush.msra.mxu0 0.0
    %3155 = vmatpush.msra.mxu0 0.0
    %3156 = vmatpush.msra.mxu0 0.0
    %3157 = vmatpush.msra.mxu0 0.0
    %3158 = vmatpush.msra.mxu0 %v3058
    %3159 = vmatmul.f32.gmra.mxu0 %v3048
    %v3160 = vpop.f32.mrf.mxu0
    %v3161 = vadd.f32 0.0, %v3160
    %3162 = vdwg.mxu0
    %3163 = vmatpush.msra.mxu0 0.0
    %3164 = vmatpush.msra.mxu0 0.0
    %3165 = vmatpush.msra.mxu0 0.0
    %3166 = vmatpush.msra.mxu0 0.0
    %3167 = vmatpush.msra.mxu0 0.0
    %3168 = vmatpush.msra.mxu0 0.0
    %3169 = vmatpush.msra.mxu0 0.0
    %3170 = vmatpush.msra.mxu0 0.0
    %3171 = vmatpush.msra.mxu0 0.0
    %3172 = vmatpush.msra.mxu0 0.0
    %3173 = vmatpush.msra.mxu0 0.0
    %3174 = vmatpush.msra.mxu0 0.0
    %3175 = vmatpush.msra.mxu0 0.0
    %3176 = vmatpush.msra.mxu0 0.0
    %3177 = vmatpush.msra.mxu0 0.0
    %3178 = vmatpush.msra.mxu0 %v3061
    %3179 = vmatmul.f32.gmra.mxu0 %v3048
    %v3180 = vpop.f32.mrf.mxu0
    %v3181 = vadd.f32 0.0, %v3180
    %3182 = vdwg.mxu0
    %v3183 = vadd.f32 %v3020, %v3081
    %v3184 = vadd.f32 %v3021, %v3101
    %v3185 = vadd.f32 %v3022, %v3121
    %v3186 = vadd.f32 %v3023, %v3141
    %v3187 = vadd.f32 %v3024, %v3161
    %v3188 = vadd.f32 %v3025, %v3181
    %s3189 = scalar_lea.vmem %s3, 24
    %v3190 = vld [vmem:[%s3189] sm:$0xf]
    %3191 = vrot.lane.b32.xlu0 %v2185, 92
    %v3192 = vpop.permute.xlu0 %3191
    %3193 = vrot.lane.b32.xlu0 %v2186, 92
    %v3194 = vpop.permute.xlu0 %3193
    %3195 = vrot.lane.b32.xlu0 %v2187, 92
    %v3196 = vpop.permute.xlu0 %3195
    %3197 = vrot.lane.b32.xlu0 %v2235, 92
    %v3198 = vpop.permute.xlu0 %3197
    %3199 = vrot.lane.b32.xlu0 %v2236, 92
    %v3200 = vpop.permute.xlu0 %3199
    %3201 = vrot.lane.b32.xlu0 %v2237, 92
    %v3202 = vpop.permute.xlu0 %3201
    %v3203 = vsel %vm309, %v3192, %v3194
    %v3204 = vsel %vm309, %v3194, %v3196
    %v3205 = vsel %vm309, %v3196, %v3198
    %v3206 = vsel %vm309, %v3198, %v3200
    %v3207 = vsel %vm309, %v3200, %v3202
    %v3209 = vsel %vm309, %v3202, 0.0
    %v3211 = vsel %vm651, %v3190, 0
    %v3213 = vsel %vm185, %v3203, 0
    %v3215 = vsel %vm185, %v3204, 0
    %v3217 = vsel %vm185, %v3205, 0
    %v3219 = vsel %vm185, %v3206, 0
    %v3221 = vsel %vm185, %v3207, 0
    %v3224 = vsel %vm185, %v3209, 0
    %3226 = vmatpush.msra.mxu0 0.0
    %3227 = vmatpush.msra.mxu0 0.0
    %3228 = vmatpush.msra.mxu0 0.0
    %3229 = vmatpush.msra.mxu0 0.0
    %3230 = vmatpush.msra.mxu0 0.0
    %3231 = vmatpush.msra.mxu0 0.0
    %3232 = vmatpush.msra.mxu0 0.0
    %3233 = vmatpush.msra.mxu0 0.0
    %3234 = vmatpush.msra.mxu0 0.0
    %3235 = vmatpush.msra.mxu0 0.0
    %3236 = vmatpush.msra.mxu0 0.0
    %3237 = vmatpush.msra.mxu0 0.0
    %3238 = vmatpush.msra.mxu0 0.0
    %3239 = vmatpush.msra.mxu0 0.0
    %3240 = vmatpush.msra.mxu0 0.0
    %3241 = vmatpush.msra.mxu0 %v3213
    %3242 = vmatmul.f32.gmra.mxu0 %v3211
    %v3243 = vpop.f32.mrf.mxu0
    %v3244 = vadd.f32 0.0, %v3243
    %3245 = vdwg.mxu0
    %3246 = vmatpush.msra.mxu0 0.0
    %3247 = vmatpush.msra.mxu0 0.0
    %3248 = vmatpush.msra.mxu0 0.0
    %3249 = vmatpush.msra.mxu0 0.0
    %3250 = vmatpush.msra.mxu0 0.0
    %3251 = vmatpush.msra.mxu0 0.0
    %3252 = vmatpush.msra.mxu0 0.0
    %3253 = vmatpush.msra.mxu0 0.0
    %3254 = vmatpush.msra.mxu0 0.0
    %3255 = vmatpush.msra.mxu0 0.0
    %3256 = vmatpush.msra.mxu0 0.0
    %3257 = vmatpush.msra.mxu0 0.0
    %3258 = vmatpush.msra.mxu0 0.0
    %3259 = vmatpush.msra.mxu0 0.0
    %3260 = vmatpush.msra.mxu0 0.0
    %3261 = vmatpush.msra.mxu0 %v3215
    %3262 = vmatmul.f32.gmra.mxu0 %v3211
    %v3263 = vpop.f32.mrf.mxu0
    %v3264 = vadd.f32 0.0, %v3263
    %3265 = vdwg.mxu0
    %3266 = vmatpush.msra.mxu0 0.0
    %3267 = vmatpush.msra.mxu0 0.0
    %3268 = vmatpush.msra.mxu0 0.0
    %3269 = vmatpush.msra.mxu0 0.0
    %3270 = vmatpush.msra.mxu0 0.0
    %3271 = vmatpush.msra.mxu0 0.0
    %3272 = vmatpush.msra.mxu0 0.0
    %3273 = vmatpush.msra.mxu0 0.0
    %3274 = vmatpush.msra.mxu0 0.0
    %3275 = vmatpush.msra.mxu0 0.0
    %3276 = vmatpush.msra.mxu0 0.0
    %3277 = vmatpush.msra.mxu0 0.0
    %3278 = vmatpush.msra.mxu0 0.0
    %3279 = vmatpush.msra.mxu0 0.0
    %3280 = vmatpush.msra.mxu0 0.0
    %3281 = vmatpush.msra.mxu0 %v3217
    %3282 = vmatmul.f32.gmra.mxu0 %v3211
    %v3283 = vpop.f32.mrf.mxu0
    %v3284 = vadd.f32 0.0, %v3283
    %3285 = vdwg.mxu0
    %3286 = vmatpush.msra.mxu0 0.0
    %3287 = vmatpush.msra.mxu0 0.0
    %3288 = vmatpush.msra.mxu0 0.0
    %3289 = vmatpush.msra.mxu0 0.0
    %3290 = vmatpush.msra.mxu0 0.0
    %3291 = vmatpush.msra.mxu0 0.0
    %3292 = vmatpush.msra.mxu0 0.0
    %3293 = vmatpush.msra.mxu0 0.0
    %3294 = vmatpush.msra.mxu0 0.0
    %3295 = vmatpush.msra.mxu0 0.0
    %3296 = vmatpush.msra.mxu0 0.0
    %3297 = vmatpush.msra.mxu0 0.0
    %3298 = vmatpush.msra.mxu0 0.0
    %3299 = vmatpush.msra.mxu0 0.0
    %3300 = vmatpush.msra.mxu0 0.0
    %3301 = vmatpush.msra.mxu0 %v3219
    %3302 = vmatmul.f32.gmra.mxu0 %v3211
    %v3303 = vpop.f32.mrf.mxu0
    %v3304 = vadd.f32 0.0, %v3303
    %3305 = vdwg.mxu0
    %3306 = vmatpush.msra.mxu0 0.0
    %3307 = vmatpush.msra.mxu0 0.0
    %3308 = vmatpush.msra.mxu0 0.0
    %3309 = vmatpush.msra.mxu0 0.0
    %3310 = vmatpush.msra.mxu0 0.0
    %3311 = vmatpush.msra.mxu0 0.0
    %3312 = vmatpush.msra.mxu0 0.0
    %3313 = vmatpush.msra.mxu0 0.0
    %3314 = vmatpush.msra.mxu0 0.0
    %3315 = vmatpush.msra.mxu0 0.0
    %3316 = vmatpush.msra.mxu0 0.0
    %3317 = vmatpush.msra.mxu0 0.0
    %3318 = vmatpush.msra.mxu0 0.0
    %3319 = vmatpush.msra.mxu0 0.0
    %3320 = vmatpush.msra.mxu0 0.0
    %3321 = vmatpush.msra.mxu0 %v3221
    %3322 = vmatmul.f32.gmra.mxu0 %v3211
    %v3323 = vpop.f32.mrf.mxu0
    %v3324 = vadd.f32 0.0, %v3323
    %3325 = vdwg.mxu0
    %3326 = vmatpush.msra.mxu0 0.0
    %3327 = vmatpush.msra.mxu0 0.0
    %3328 = vmatpush.msra.mxu0 0.0
    %3329 = vmatpush.msra.mxu0 0.0
    %3330 = vmatpush.msra.mxu0 0.0
    %3331 = vmatpush.msra.mxu0 0.0
    %3332 = vmatpush.msra.mxu0 0.0
    %3333 = vmatpush.msra.mxu0 0.0
    %3334 = vmatpush.msra.mxu0 0.0
    %3335 = vmatpush.msra.mxu0 0.0
    %3336 = vmatpush.msra.mxu0 0.0
    %3337 = vmatpush.msra.mxu0 0.0
    %3338 = vmatpush.msra.mxu0 0.0
    %3339 = vmatpush.msra.mxu0 0.0
    %3340 = vmatpush.msra.mxu0 0.0
    %3341 = vmatpush.msra.mxu0 %v3224
    %3342 = vmatmul.f32.gmra.mxu0 %v3211
    %v3343 = vpop.f32.mrf.mxu0
    %v3344 = vadd.f32 0.0, %v3343
    %3345 = vdwg.mxu0
    %v3346 = vadd.f32 %v3183, %v3244
    %v3347 = vadd.f32 %v3184, %v3264
    %v3348 = vadd.f32 %v3185, %v3284
    %v3349 = vadd.f32 %v3186, %v3304
    %v3350 = vadd.f32 %v3187, %v3324
    %v3351 = vadd.f32 %v3188, %v3344
    %s3352 = scalar_lea.vmem %s3, 28
    %v3353 = vld [vmem:[%s3352] sm:$0xf]
    %3354 = vrot.lane.b32.xlu0 %v2185, 91
    %v3355 = vpop.permute.xlu0 %3354
    %3356 = vrot.lane.b32.xlu0 %v2186, 91
    %v3357 = vpop.permute.xlu0 %3356
    %3358 = vrot.lane.b32.xlu0 %v2187, 91
    %v3359 = vpop.permute.xlu0 %3358
    %3360 = vrot.lane.b32.xlu0 %v2235, 91
    %v3361 = vpop.permute.xlu0 %3360
    %3362 = vrot.lane.b32.xlu0 %v2236, 91
    %v3363 = vpop.permute.xlu0 %3362
    %3364 = vrot.lane.b32.xlu0 %v2237, 91
    %v3365 = vpop.permute.xlu0 %3364
    %v3366 = vsel %vm1754, %v3355, %v3357
    %v3367 = vsel %vm1754, %v3357, %v3359
    %v3368 = vsel %vm1754, %v3359, %v3361
    %v3369 = vsel %vm1754, %v3361, %v3363
    %v3370 = vsel %vm1754, %v3363, %v3365
    %v3372 = vsel %vm1754, %v3365, 0.0
    %v3374 = vsel %vm651, %v3353, 0
    %v3376 = vsel %vm185, %v3366, 0
    %v3378 = vsel %vm185, %v3367, 0
    %v3380 = vsel %vm185, %v3368, 0
    %v3382 = vsel %vm185, %v3369, 0
    %v3384 = vsel %vm185, %v3370, 0
    %v3387 = vsel %vm185, %v3372, 0
    %3389 = vmatpush.msra.mxu0 0.0
    %3390 = vmatpush.msra.mxu0 0.0
    %3391 = vmatpush.msra.mxu0 0.0
    %3392 = vmatpush.msra.mxu0 0.0
    %3393 = vmatpush.msra.mxu0 0.0
    %3394 = vmatpush.msra.mxu0 0.0
    %3395 = vmatpush.msra.mxu0 0.0
    %3396 = vmatpush.msra.mxu0 0.0
    %3397 = vmatpush.msra.mxu0 0.0
    %3398 = vmatpush.msra.mxu0 0.0
    %3399 = vmatpush.msra.mxu0 0.0
    %3400 = vmatpush.msra.mxu0 0.0
    %3401 = vmatpush.msra.mxu0 0.0
    %3402 = vmatpush.msra.mxu0 0.0
    %3403 = vmatpush.msra.mxu0 0.0
    %3404 = vmatpush.msra.mxu0 %v3376
    %3405 = vmatmul.f32.gmra.mxu0 %v3374
    %v3406 = vpop.f32.mrf.mxu0
    %v3407 = vadd.f32 0.0, %v3406
    %3408 = vdwg.mxu0
    %3409 = vmatpush.msra.mxu0 0.0
    %3410 = vmatpush.msra.mxu0 0.0
    %3411 = vmatpush.msra.mxu0 0.0
    %3412 = vmatpush.msra.mxu0 0.0
    %3413 = vmatpush.msra.mxu0 0.0
    %3414 = vmatpush.msra.mxu0 0.0
    %3415 = vmatpush.msra.mxu0 0.0
    %3416 = vmatpush.msra.mxu0 0.0
    %3417 = vmatpush.msra.mxu0 0.0
    %3418 = vmatpush.msra.mxu0 0.0
    %3419 = vmatpush.msra.mxu0 0.0
    %3420 = vmatpush.msra.mxu0 0.0
    %3421 = vmatpush.msra.mxu0 0.0
    %3422 = vmatpush.msra.mxu0 0.0
    %3423 = vmatpush.msra.mxu0 0.0
    %3424 = vmatpush.msra.mxu0 %v3378
    %3425 = vmatmul.f32.gmra.mxu0 %v3374
    %v3426 = vpop.f32.mrf.mxu0
    %v3427 = vadd.f32 0.0, %v3426
    %3428 = vdwg.mxu0
    %3429 = vmatpush.msra.mxu0 0.0
    %3430 = vmatpush.msra.mxu0 0.0
    %3431 = vmatpush.msra.mxu0 0.0
    %3432 = vmatpush.msra.mxu0 0.0
    %3433 = vmatpush.msra.mxu0 0.0
    %3434 = vmatpush.msra.mxu0 0.0
    %3435 = vmatpush.msra.mxu0 0.0
    %3436 = vmatpush.msra.mxu0 0.0
    %3437 = vmatpush.msra.mxu0 0.0
    %3438 = vmatpush.msra.mxu0 0.0
    %3439 = vmatpush.msra.mxu0 0.0
    %3440 = vmatpush.msra.mxu0 0.0
    %3441 = vmatpush.msra.mxu0 0.0
    %3442 = vmatpush.msra.mxu0 0.0
    %3443 = vmatpush.msra.mxu0 0.0
    %3444 = vmatpush.msra.mxu0 %v3380
    %3445 = vmatmul.f32.gmra.mxu0 %v3374
    %v3446 = vpop.f32.mrf.mxu0
    %v3447 = vadd.f32 0.0, %v3446
    %3448 = vdwg.mxu0
    %3449 = vmatpush.msra.mxu0 0.0
    %3450 = vmatpush.msra.mxu0 0.0
    %3451 = vmatpush.msra.mxu0 0.0
    %3452 = vmatpush.msra.mxu0 0.0
    %3453 = vmatpush.msra.mxu0 0.0
    %3454 = vmatpush.msra.mxu0 0.0
    %3455 = vmatpush.msra.mxu0 0.0
    %3456 = vmatpush.msra.mxu0 0.0
    %3457 = vmatpush.msra.mxu0 0.0
    %3458 = vmatpush.msra.mxu0 0.0
    %3459 = vmatpush.msra.mxu0 0.0
    %3460 = vmatpush.msra.mxu0 0.0
    %3461 = vmatpush.msra.mxu0 0.0
    %3462 = vmatpush.msra.mxu0 0.0
    %3463 = vmatpush.msra.mxu0 0.0
    %3464 = vmatpush.msra.mxu0 %v3382
    %3465 = vmatmul.f32.gmra.mxu0 %v3374
    %v3466 = vpop.f32.mrf.mxu0
    %v3467 = vadd.f32 0.0, %v3466
    %3468 = vdwg.mxu0
    %3469 = vmatpush.msra.mxu0 0.0
    %3470 = vmatpush.msra.mxu0 0.0
    %3471 = vmatpush.msra.mxu0 0.0
    %3472 = vmatpush.msra.mxu0 0.0
    %3473 = vmatpush.msra.mxu0 0.0
    %3474 = vmatpush.msra.mxu0 0.0
    %3475 = vmatpush.msra.mxu0 0.0
    %3476 = vmatpush.msra.mxu0 0.0
    %3477 = vmatpush.msra.mxu0 0.0
    %3478 = vmatpush.msra.mxu0 0.0
    %3479 = vmatpush.msra.mxu0 0.0
    %3480 = vmatpush.msra.mxu0 0.0
    %3481 = vmatpush.msra.mxu0 0.0
    %3482 = vmatpush.msra.mxu0 0.0
    %3483 = vmatpush.msra.mxu0 0.0
    %3484 = vmatpush.msra.mxu0 %v3384
    %3485 = vmatmul.f32.gmra.mxu0 %v3374
    %v3486 = vpop.f32.mrf.mxu0
    %v3487 = vadd.f32 0.0, %v3486
    %3488 = vdwg.mxu0
    %3489 = vmatpush.msra.mxu0 0.0
    %3490 = vmatpush.msra.mxu0 0.0
    %3491 = vmatpush.msra.mxu0 0.0
    %3492 = vmatpush.msra.mxu0 0.0
    %3493 = vmatpush.msra.mxu0 0.0
    %3494 = vmatpush.msra.mxu0 0.0
    %3495 = vmatpush.msra.mxu0 0.0
    %3496 = vmatpush.msra.mxu0 0.0
    %3497 = vmatpush.msra.mxu0 0.0
    %3498 = vmatpush.msra.mxu0 0.0
    %3499 = vmatpush.msra.mxu0 0.0
    %3500 = vmatpush.msra.mxu0 0.0
    %3501 = vmatpush.msra.mxu0 0.0
    %3502 = vmatpush.msra.mxu0 0.0
    %3503 = vmatpush.msra.mxu0 0.0
    %3504 = vmatpush.msra.mxu0 %v3387
    %3505 = vmatmul.f32.gmra.mxu0 %v3374
    %v3506 = vpop.f32.mrf.mxu0
    %v3507 = vadd.f32 0.0, %v3506
    %3508 = vdwg.mxu0
    %v3509 = vadd.f32 %v3346, %v3407
    %v3510 = vadd.f32 %v3347, %v3427
    %v3511 = vadd.f32 %v3348, %v3447
    %v3512 = vadd.f32 %v3349, %v3467
    %v3513 = vadd.f32 %v3350, %v3487
    %v3514 = vadd.f32 %v3351, %v3507
    %s3515 = scalar_lea.vmem %s3, 32
    %v3516 = vld [vmem:[%s3515] sm:$0xf]
    %3517 = vrot.lane.b32.xlu0 %v2185, 90
    %v3518 = vpop.permute.xlu0 %3517
    %3519 = vrot.lane.b32.xlu0 %v2186, 90
    %v3520 = vpop.permute.xlu0 %3519
    %3521 = vrot.lane.b32.xlu0 %v2187, 90
    %v3522 = vpop.permute.xlu0 %3521
    %3523 = vrot.lane.b32.xlu0 %v2235, 90
    %v3524 = vpop.permute.xlu0 %3523
    %3525 = vrot.lane.b32.xlu0 %v2236, 90
    %v3526 = vpop.permute.xlu0 %3525
    %3527 = vrot.lane.b32.xlu0 %v2237, 90
    %v3528 = vpop.permute.xlu0 %3527
    %v3529 = vsel %vm1918, %v3518, %v3520
    %v3530 = vsel %vm1918, %v3520, %v3522
    %v3531 = vsel %vm1918, %v3522, %v3524
    %v3532 = vsel %vm1918, %v3524, %v3526
    %v3533 = vsel %vm1918, %v3526, %v3528
    %v3535 = vsel %vm1918, %v3528, 0.0
    %v3537 = vsel %vm651, %v3516, 0
    %v3539 = vsel %vm185, %v3529, 0
    %v3541 = vsel %vm185, %v3530, 0
    %v3543 = vsel %vm185, %v3531, 0
    %v3545 = vsel %vm185, %v3532, 0
    %v3547 = vsel %vm185, %v3533, 0
    %v3550 = vsel %vm185, %v3535, 0
    %3552 = vmatpush.msra.mxu0 0.0
    %3553 = vmatpush.msra.mxu0 0.0
    %3554 = vmatpush.msra.mxu0 0.0
    %3555 = vmatpush.msra.mxu0 0.0
    %3556 = vmatpush.msra.mxu0 0.0
    %3557 = vmatpush.msra.mxu0 0.0
    %3558 = vmatpush.msra.mxu0 0.0
    %3559 = vmatpush.msra.mxu0 0.0
    %3560 = vmatpush.msra.mxu0 0.0
    %3561 = vmatpush.msra.mxu0 0.0
    %3562 = vmatpush.msra.mxu0 0.0
    %3563 = vmatpush.msra.mxu0 0.0
    %3564 = vmatpush.msra.mxu0 0.0
    %3565 = vmatpush.msra.mxu0 0.0
    %3566 = vmatpush.msra.mxu0 0.0
    %3567 = vmatpush.msra.mxu0 %v3539
    %3568 = vmatmul.f32.gmra.mxu0 %v3537
    %v3569 = vpop.f32.mrf.mxu0
    %v3570 = vadd.f32 0.0, %v3569
    %3571 = vdwg.mxu0
    %3572 = vmatpush.msra.mxu0 0.0
    %3573 = vmatpush.msra.mxu0 0.0
    %3574 = vmatpush.msra.mxu0 0.0
    %3575 = vmatpush.msra.mxu0 0.0
    %3576 = vmatpush.msra.mxu0 0.0
    %3577 = vmatpush.msra.mxu0 0.0
    %3578 = vmatpush.msra.mxu0 0.0
    %3579 = vmatpush.msra.mxu0 0.0
    %3580 = vmatpush.msra.mxu0 0.0
    %3581 = vmatpush.msra.mxu0 0.0
    %3582 = vmatpush.msra.mxu0 0.0
    %3583 = vmatpush.msra.mxu0 0.0
    %3584 = vmatpush.msra.mxu0 0.0
    %3585 = vmatpush.msra.mxu0 0.0
    %3586 = vmatpush.msra.mxu0 0.0
    %3587 = vmatpush.msra.mxu0 %v3541
    %3588 = vmatmul.f32.gmra.mxu0 %v3537
    %v3589 = vpop.f32.mrf.mxu0
    %v3590 = vadd.f32 0.0, %v3589
    %3591 = vdwg.mxu0
    %3592 = vmatpush.msra.mxu0 0.0
    %3593 = vmatpush.msra.mxu0 0.0
    %3594 = vmatpush.msra.mxu0 0.0
    %3595 = vmatpush.msra.mxu0 0.0
    %3596 = vmatpush.msra.mxu0 0.0
    %3597 = vmatpush.msra.mxu0 0.0
    %3598 = vmatpush.msra.mxu0 0.0
    %3599 = vmatpush.msra.mxu0 0.0
    %3600 = vmatpush.msra.mxu0 0.0
    %3601 = vmatpush.msra.mxu0 0.0
    %3602 = vmatpush.msra.mxu0 0.0
    %3603 = vmatpush.msra.mxu0 0.0
    %3604 = vmatpush.msra.mxu0 0.0
    %3605 = vmatpush.msra.mxu0 0.0
    %3606 = vmatpush.msra.mxu0 0.0
    %3607 = vmatpush.msra.mxu0 %v3543
    %3608 = vmatmul.f32.gmra.mxu0 %v3537
    %v3609 = vpop.f32.mrf.mxu0
    %v3610 = vadd.f32 0.0, %v3609
    %3611 = vdwg.mxu0
    %3612 = vmatpush.msra.mxu0 0.0
    %3613 = vmatpush.msra.mxu0 0.0
    %3614 = vmatpush.msra.mxu0 0.0
    %3615 = vmatpush.msra.mxu0 0.0
    %3616 = vmatpush.msra.mxu0 0.0
    %3617 = vmatpush.msra.mxu0 0.0
    %3618 = vmatpush.msra.mxu0 0.0
    %3619 = vmatpush.msra.mxu0 0.0
    %3620 = vmatpush.msra.mxu0 0.0
    %3621 = vmatpush.msra.mxu0 0.0
    %3622 = vmatpush.msra.mxu0 0.0
    %3623 = vmatpush.msra.mxu0 0.0
    %3624 = vmatpush.msra.mxu0 0.0
    %3625 = vmatpush.msra.mxu0 0.0
    %3626 = vmatpush.msra.mxu0 0.0
    %3627 = vmatpush.msra.mxu0 %v3545
    %3628 = vmatmul.f32.gmra.mxu0 %v3537
    %v3629 = vpop.f32.mrf.mxu0
    %v3630 = vadd.f32 0.0, %v3629
    %3631 = vdwg.mxu0
    %3632 = vmatpush.msra.mxu0 0.0
    %3633 = vmatpush.msra.mxu0 0.0
    %3634 = vmatpush.msra.mxu0 0.0
    %3635 = vmatpush.msra.mxu0 0.0
    %3636 = vmatpush.msra.mxu0 0.0
    %3637 = vmatpush.msra.mxu0 0.0
    %3638 = vmatpush.msra.mxu0 0.0
    %3639 = vmatpush.msra.mxu0 0.0
    %3640 = vmatpush.msra.mxu0 0.0
    %3641 = vmatpush.msra.mxu0 0.0
    %3642 = vmatpush.msra.mxu0 0.0
    %3643 = vmatpush.msra.mxu0 0.0
    %3644 = vmatpush.msra.mxu0 0.0
    %3645 = vmatpush.msra.mxu0 0.0
    %3646 = vmatpush.msra.mxu0 0.0
    %3647 = vmatpush.msra.mxu0 %v3547
    %3648 = vmatmul.f32.gmra.mxu0 %v3537
    %v3649 = vpop.f32.mrf.mxu0
    %v3650 = vadd.f32 0.0, %v3649
    %3651 = vdwg.mxu0
    %3652 = vmatpush.msra.mxu0 0.0
    %3653 = vmatpush.msra.mxu0 0.0
    %3654 = vmatpush.msra.mxu0 0.0
    %3655 = vmatpush.msra.mxu0 0.0
    %3656 = vmatpush.msra.mxu0 0.0
    %3657 = vmatpush.msra.mxu0 0.0
    %3658 = vmatpush.msra.mxu0 0.0
    %3659 = vmatpush.msra.mxu0 0.0
    %3660 = vmatpush.msra.mxu0 0.0
    %3661 = vmatpush.msra.mxu0 0.0
    %3662 = vmatpush.msra.mxu0 0.0
    %3663 = vmatpush.msra.mxu0 0.0
    %3664 = vmatpush.msra.mxu0 0.0
    %3665 = vmatpush.msra.mxu0 0.0
    %3666 = vmatpush.msra.mxu0 0.0
    %3667 = vmatpush.msra.mxu0 %v3550
    %3668 = vmatmul.f32.gmra.mxu0 %v3537
    %v3669 = vpop.f32.mrf.mxu0
    %v3670 = vadd.f32 0.0, %v3669
    %3671 = vdwg.mxu0
    %v3672 = vadd.f32 %v3509, %v3570
    %v3673 = vadd.f32 %v3510, %v3590
    %v3674 = vadd.f32 %v3511, %v3610
    %v3675 = vadd.f32 %v3512, %v3630
    %v3676 = vadd.f32 %v3513, %v3650
    %v3677 = vadd.f32 %v3514, %v3670
    %v3678 = vld [vmem:[%s4] sm:$0xf]
    %3680 = vset.pattern.permute.xlu0 0
    %3681 = vperm.xlu0 %3680, %v3678
    %v3682 = vpop.permute.xlu0 %3681
    %3684 = vmatpush.msra.mxu0 %v66
    %3685 = vmatpush.msra.mxu0 %v65
    %3686 = vmatpush.msra.mxu0 %v64
    %3687 = vmatpush.msra.mxu0 %v63
    %3688 = vmatpush.msra.mxu0 %v62
    %3689 = vmatpush.msra.mxu0 %v61
    %3690 = vmatpush.msra.mxu0 %v60
    %3691 = vmatpush.msra.mxu0 %v59
    %3692 = vmatpush.msra.mxu0 %v58
    %3693 = vmatpush.msra.mxu0 %v57
    %3694 = vmatpush.msra.mxu0 %v56
    %3695 = vmatpush.msra.mxu0 %v55
    %3696 = vmatpush.msra.mxu0 %v54
    %3697 = vmatpush.msra.mxu0 %v53
    %3698 = vmatpush.msra.mxu0 %v52
    %3699 = vmatpush.msra.mxu0 %v51
    %3700 = vmatmul.f32.gmra.mxu0 %v3672
    %v3701 = vpop.f32.mrf.mxu0
    %v3702 = vadd.f32 %v3682, %v3701
    %3703 = vdwg.mxu0
    %3704 = vmatpush.msra.mxu0 %v82
    %3705 = vmatpush.msra.mxu0 %v81
    %3706 = vmatpush.msra.mxu0 %v80
    %3707 = vmatpush.msra.mxu0 %v79
    %3708 = vmatpush.msra.mxu0 %v78
    %3709 = vmatpush.msra.mxu0 %v77
    %3710 = vmatpush.msra.mxu0 %v76
    %3711 = vmatpush.msra.mxu0 %v75
    %3712 = vmatpush.msra.mxu0 %v74
    %3713 = vmatpush.msra.mxu0 %v73
    %3714 = vmatpush.msra.mxu0 %v72
    %3715 = vmatpush.msra.mxu0 %v71
    %3716 = vmatpush.msra.mxu0 %v70
    %3717 = vmatpush.msra.mxu0 %v69
    %3718 = vmatpush.msra.mxu0 %v68
    %3719 = vmatpush.msra.mxu0 %v67
    %3720 = vmatmul.f32.gmra.mxu0 %v3673
    %v3721 = vpop.f32.mrf.mxu0
    %v3722 = vadd.f32 %v3702, %v3721
    %3723 = vdwg.mxu0
    %3724 = vmatpush.msra.mxu0 %v98
    %3725 = vmatpush.msra.mxu0 %v97
    %3726 = vmatpush.msra.mxu0 %v96
    %3727 = vmatpush.msra.mxu0 %v95
    %3728 = vmatpush.msra.mxu0 %v94
    %3729 = vmatpush.msra.mxu0 %v93
    %3730 = vmatpush.msra.mxu0 %v92
    %3731 = vmatpush.msra.mxu0 %v91
    %3732 = vmatpush.msra.mxu0 %v90
    %3733 = vmatpush.msra.mxu0 %v89
    %3734 = vmatpush.msra.mxu0 %v88
    %3735 = vmatpush.msra.mxu0 %v87
    %3736 = vmatpush.msra.mxu0 %v86
    %3737 = vmatpush.msra.mxu0 %v85
    %3738 = vmatpush.msra.mxu0 %v84
    %3739 = vmatpush.msra.mxu0 %v83
    %3740 = vmatmul.f32.gmra.mxu0 %v3674
    %v3741 = vpop.f32.mrf.mxu0
    %v3742 = vadd.f32 %v3722, %v3741
    %3743 = vdwg.mxu0
    %3744 = vmatpush.msra.mxu0 %v114
    %3745 = vmatpush.msra.mxu0 %v113
    %3746 = vmatpush.msra.mxu0 %v112
    %3747 = vmatpush.msra.mxu0 %v111
    %3748 = vmatpush.msra.mxu0 %v110
    %3749 = vmatpush.msra.mxu0 %v109
    %3750 = vmatpush.msra.mxu0 %v108
    %3751 = vmatpush.msra.mxu0 %v107
    %3752 = vmatpush.msra.mxu0 %v106
    %3753 = vmatpush.msra.mxu0 %v105
    %3754 = vmatpush.msra.mxu0 %v104
    %3755 = vmatpush.msra.mxu0 %v103
    %3756 = vmatpush.msra.mxu0 %v102
    %3757 = vmatpush.msra.mxu0 %v101
    %3758 = vmatpush.msra.mxu0 %v100
    %3759 = vmatpush.msra.mxu0 %v99
    %3760 = vmatmul.f32.gmra.mxu0 %v3675
    %v3761 = vpop.f32.mrf.mxu0
    %v3762 = vadd.f32 %v3742, %v3761
    %3763 = vdwg.mxu0
    %3764 = vmatpush.msra.mxu0 %v130
    %3765 = vmatpush.msra.mxu0 %v129
    %3766 = vmatpush.msra.mxu0 %v128
    %3767 = vmatpush.msra.mxu0 %v127
    %3768 = vmatpush.msra.mxu0 %v126
    %3769 = vmatpush.msra.mxu0 %v125
    %3770 = vmatpush.msra.mxu0 %v124
    %3771 = vmatpush.msra.mxu0 %v123
    %3772 = vmatpush.msra.mxu0 %v122
    %3773 = vmatpush.msra.mxu0 %v121
    %3774 = vmatpush.msra.mxu0 %v120
    %3775 = vmatpush.msra.mxu0 %v119
    %3776 = vmatpush.msra.mxu0 %v118
    %3777 = vmatpush.msra.mxu0 %v117
    %3778 = vmatpush.msra.mxu0 %v116
    %3779 = vmatpush.msra.mxu0 %v115
    %3780 = vmatmul.f32.gmra.mxu0 %v3676
    %v3781 = vpop.f32.mrf.mxu0
    %v3782 = vadd.f32 %v3762, %v3781
    %3783 = vdwg.mxu0
    %3784 = vmatpush.msra.mxu0 %v146
    %3785 = vmatpush.msra.mxu0 %v145
    %3786 = vmatpush.msra.mxu0 %v144
    %3787 = vmatpush.msra.mxu0 %v143
    %3788 = vmatpush.msra.mxu0 %v142
    %3789 = vmatpush.msra.mxu0 %v141
    %3790 = vmatpush.msra.mxu0 %v140
    %3791 = vmatpush.msra.mxu0 %v139
    %3792 = vmatpush.msra.mxu0 %v138
    %3793 = vmatpush.msra.mxu0 %v137
    %3794 = vmatpush.msra.mxu0 %v136
    %3795 = vmatpush.msra.mxu0 %v135
    %3796 = vmatpush.msra.mxu0 %v134
    %3797 = vmatpush.msra.mxu0 %v133
    %3798 = vmatpush.msra.mxu0 %v132
    %3799 = vmatpush.msra.mxu0 %v131
    %3800 = vmatmul.f32.gmra.mxu0 %v3677
    %v3801 = vpop.f32.mrf.mxu0
    %v3802 = vadd.f32 %v3782, %v3801
    %3803 = vdwg.mxu0
    %vm3804 = vcmp.gt.f32.partialorder %v3802, 0.0
    %v3805 = vmul.f32 %v3802, 0.01
    %v3806 = vsel %vm3804, %v3802, %v3805
    %v3807 = vadd.f32 %v3806, %v470
    %3808 = vst [vmem:[#allocation5] sm:$0xf] %v3807
    // Predicated region
    $region38: #{tpu_custom_call.1} parent=1 // pred_check
      _
    $region39: #{tpu_custom_call.1} parent=1 // pred_check_branch
      %3810 = sbr.rel (0) target = $region41
    $region40: #{tpu_custom_call.1} parent=1 // pred_region
      %3812 = vsyncadd [#allocation4], 0
      %s3814 = sshll.u32 [#allocation5], 4
      %s3815 = int_to_ptr.vmem [resolvable:$true] %s3814
      %s3816 = sshll.u32 %s8, 4
      %s3817 = int_to_ptr.hbm [resolvable:$true] %s3816
      %3819 = dma.vmem_to_hbm [thread:$0]  %s3815, 64, %s3817, [#allocation4]
    $region41: #{tpu_custom_call.1} parent=1 // pred_fallthru
      _
    // Predicated region
    $region42: #{tpu_custom_call.1} parent=1 // pred_check
      _
    $region43: #{tpu_custom_call.1} parent=1 // pred_check_branch
      %3821 = sbr.rel (0) target = $region45
    $region44: #{tpu_custom_call.1} parent=1 // pred_region
      %3823 = dma.done [#allocation4], 64
    $region45: #{tpu_custom_call.1} parent=1 // pred_fallthru
      _
    %3824 = vsyncpa [#allocation3], 1
    %3825 = vsyncpa [#allocation4], 1

</llo_original>
